<compile_context>
chip_gen: v7x
topology: tpu7x:2x2x1
jax: 0.10.0
libtpu: 0.0.40
codegen_flags: <defaults>
</compile_context>

<pallas_src>
import numpy as np
import jax
import jax.numpy as jnp
from jax import lax
from jax.experimental import pallas as pl
from jax.experimental.pallas import tpu as pltpu


_H_IN = 28     # input spatial size (required by Linear(50*4*4) in the module)
_PW_PAD = 16   # pooled-conv1 W extent padded 12 -> 16 (8-aligned VMEM slabs)


# ----------------------------------------------------------------------------
# Static index / permutation helpers (numpy, evaluated at trace time)
# ----------------------------------------------------------------------------

def _conv1_patch_indices():
    """Gather indices building the conv1 im2col from the flat 28*28 image.

    Shape (4, 12, 16, 25): (pool1-phase, pooled-h, pooled-w[padded], 5x5 patch).
    Padded pw columns (12..15) are index-clipped; their values are never used.
    """
    py = np.array([0, 0, 1, 1])[:, None, None, None, None]
    px = np.array([0, 1, 0, 1])[:, None, None, None, None]
    ph = np.arange(12)[None, :, None, None, None]
    pw = np.arange(_PW_PAD)[None, None, :, None, None]
    ky = np.arange(5)[None, None, None, :, None]
    kx = np.arange(5)[None, None, None, None, :]
    hh = py + 2 * ph + ky                      # conv1 output row + kernel row
    ww = px + 2 * pw + kx                      # conv1 output col + kernel col
    hh, ww = np.broadcast_arrays(hh, ww)       # (4, 12, 16, 5, 5)
    flat = np.clip(hh * _H_IN + ww, 0, _H_IN * _H_IN - 1)
    return flat.reshape(4, 12, _PW_PAD, 25).astype(np.int32)


def _pool2_perm(batch):
    """(4*B*16, B*64) permutation: row (phase, b, i, j) selects conv2 row
    (b, 2i+py, 2j+px), so 2x2 max-pool2 becomes a max over 4 row blocks."""
    s = np.zeros((4 * batch * 16, batch * 64), np.float32)
    for p2 in range(4):
        py, px = p2 // 2, p2 % 2
        for b in range(batch):
            for i in range(4):
                for j in range(4):
                    q = ((p2 * batch + b) * 4 + i) * 4 + j
                    r = (b * 8 + (2 * i + py)) * 8 + (2 * j + px)
                    s[q, r] = 1.0
    return s


# ----------------------------------------------------------------------------
# Fused kernel
# ----------------------------------------------------------------------------

def cnn_kernel(p1_ref, w1_ref, b1_ref, w2_ref, b2_ref, s_ref,
               wf1_ref, bf1_ref, wf2_ref, bf2_ref, out_ref, a1_ref, p2_ref):
    f32 = jnp.float32
    bsz = out_ref.shape[0]

    # ---- conv1: one im2col matmul (rows ordered phase-major) ----------------
    c1 = jnp.dot(p1_ref[...], w1_ref[...], preferred_element_type=f32)
    c1 = c1 + b1_ref[...]                                  # (4*B*192, 20)

    # ---- pool1 (2x2 max) == max over the 4 phase row-blocks, then ReLU ------
    blk = bsz * 12 * _PW_PAD
    a1 = jnp.maximum(jnp.maximum(c1[0:blk], c1[blk:2 * blk]),
                     jnp.maximum(c1[2 * blk:3 * blk], c1[3 * blk:4 * blk]))
    a1 = jnp.maximum(a1, 0.0)                              # (B*192, 20)
    a1_ref[...] = a1.reshape(bsz, 12, _PW_PAD, 20)

    # ---- conv2: in-kernel im2col (B*64, 500) and a single matmul ------------
    x2 = jnp.concatenate(
        [a1_ref[:, ky:ky + 8, kx:kx + 8, :]
         for ky in range(5) for kx in range(5)],
        axis=3)                                            # (B, 8, 8, 500)
    x2 = x2.reshape(bsz * 64, 500)
    c2 = jnp.dot(x2, w2_ref[...], preferred_element_type=f32) + b2_ref[...]
    # TODO(synk): nn.Dropout2d is stochastic only in train mode; eval-mode
    # identity semantics are used here.

    # ---- pool2: permutation matmul -> block max, then ReLU ------------------
    z = jnp.dot(s_ref[...], c2, preferred_element_type=f32)   # (4*B*16, 50)
    blk2 = bsz * 16
    p2 = jnp.maximum(jnp.maximum(z[0:blk2], z[blk2:2 * blk2]),
                     jnp.maximum(z[2 * blk2:3 * blk2], z[3 * blk2:4 * blk2]))
    p2_ref[...] = jnp.maximum(p2, 0.0).reshape(bsz, 16, 50)

    # ---- flatten (NHWC order; wf1 rows pre-permuted) + fc1 + ReLU + fc2 -----
    xf = jnp.concatenate([p2_ref[:, r, :] for r in range(16)], axis=1)  # (B,800)
    h = jnp.dot(xf, wf1_ref[...], preferred_element_type=f32) + bf1_ref[...]
    h = jnp.maximum(h, 0.0)
    y = jnp.dot(h, wf2_ref[...], preferred_element_type=f32) + bf2_ref[...]
    out_ref[...] = y.astype(out_ref.dtype)                 # (B, 128) lane-dense


# ----------------------------------------------------------------------------
# Wrapper
# ----------------------------------------------------------------------------

def cnn_forward(x_nchw, params):
    """PyTorch-equivalent forward. x_nchw: (B, 1, 28, 28) float32 -> (B, 10)."""
    bsz = x_nchw.shape[0]
    xf = x_nchw.reshape(bsz, _H_IN * _H_IN)

    # conv1 im2col, rows ordered (pool1-phase, b, ph, pw_padded): (4*B*192, 25)
    idx = jnp.asarray(_conv1_patch_indices().reshape(-1))
    p1 = jnp.take(xf, idx, axis=1).reshape(bsz, 4, 12 * _PW_PAD, 25)
    p1 = p1.transpose(1, 0, 2, 3).reshape(4 * bsz * 12 * _PW_PAD, 25)

    sel = jnp.asarray(_pool2_perm(bsz))

    out = pl.pallas_call(
        cnn_kernel,
        out_shape=jax.ShapeDtypeStruct((bsz, 128), jnp.float32),
        in_specs=[pl.BlockSpec(memory_space=pltpu.MemorySpace.VMEM)
                  for _ in range(10)],
        out_specs=pl.BlockSpec(memory_space=pltpu.MemorySpace.VMEM),
        scratch_shapes=[
            pltpu.VMEM((bsz, 12, _PW_PAD, 20), jnp.float32),  # pooled conv1 act
            pltpu.VMEM((bsz, 16, 50), jnp.float32),           # pooled conv2 act
        ],
    )(p1, params["w1k"], params["b1r"], params["w2k"], params["b2r"], sel,
      params["wf1k"], params["bf1r"], params["wf2p"], params["bf2p"])
    return out[:, :10]


# ----------------------------------------------------------------------------
# Pure-JAX (XLA) reference for correctness checking
# ----------------------------------------------------------------------------

def ref_forward(x_nchw, params):
    h = lax.conv_general_dilated(
        x_nchw, params["w1"], (1, 1), "VALID",
        dimension_numbers=("NCHW", "HWIO", "NCHW"),
    ) + params["b1"].reshape(1, -1, 1, 1)
    h = lax.reduce_window(h, -jnp.inf, lax.max, (1, 1, 2, 2), (1, 1, 2, 2), "VALID")
    h = jnp.maximum(h, 0.0)
    h = lax.conv_general_dilated(
        h, params["w2"], (1, 1), "VALID",
        dimension_numbers=("NCHW", "HWIO", "NCHW"),
    ) + params["b2"].reshape(1, -1, 1, 1)
    h = lax.reduce_window(h, -jnp.inf, lax.max, (1, 1, 2, 2), (1, 1, 2, 2), "VALID")
    h = jnp.maximum(h, 0.0)
    h = h.reshape(h.shape[0], -1)                       # NCHW flatten (torch order)
    h = jnp.maximum(h @ params["wf1"] + params["bf1"], 0.0)
    return h @ params["wf2"] + params["bf2"]


# ----------------------------------------------------------------------------
# Params / main
# ----------------------------------------------------------------------------

def init_params(key):
    ks = jax.random.split(key, 8)
    w1 = jax.random.normal(ks[0], (5, 5, 1, 20), jnp.float32) * 0.10    # HWIO
    b1 = jax.random.normal(ks[1], (20,), jnp.float32) * 0.01
    w2 = jax.random.normal(ks[2], (5, 5, 20, 50), jnp.float32) * 0.05   # HWIO
    b2 = jax.random.normal(ks[3], (50,), jnp.float32) * 0.01
    wf1 = jax.random.normal(ks[4], (800, 200), jnp.float32) * 0.03      # rows: c*16+i*4+j
    bf1 = jax.random.normal(ks[5], (200,), jnp.float32) * 0.01
    wf2 = jax.random.normal(ks[6], (200, 10), jnp.float32) * 0.05
    bf2 = jax.random.normal(ks[7], (10,), jnp.float32) * 0.01

    params = {"w1": w1, "b1": b1, "w2": w2, "b2": b2,
              "wf1": wf1, "bf1": bf1, "wf2": wf2, "bf2": bf2}
    params.update(
        # kernel-layout weights (built once at init)
        w1k=w1.reshape(25, 20),                  # rows: ky*5+kx
        b1r=b1.reshape(1, 20),
        w2k=w2.reshape(500, 50),                 # rows: (ky*5+kx)*20 + cin
        b2r=b2.reshape(1, 50),
        # permute fc1 rows from torch NCHW-flatten order (c*16+i*4+j) to the
        # kernel's NHWC order ((i*4+j)*50 + c)
        wf1k=wf1.reshape(50, 16, 200).transpose(1, 0, 2).reshape(800, 200),
        bf1r=bf1.reshape(1, 200),
        # pad fc2 output 10 -> 128 lanes so the final store is lane-dense
        wf2p=jnp.pad(wf2, ((0, 0), (0, 118))),
        bf2p=jnp.pad(bf2, (0, 118)).reshape(1, 128),
    )
    return params


if __name__ == "__main__":
    key = jax.random.PRNGKey(0)
    pkey, xkey = jax.random.split(key)
    params = init_params(pkey)
    x = jax.random.normal(xkey, (2, 1, 28, 28), jnp.float32)  # MNIST-like input

    out = jax.block_until_ready(jax.jit(cnn_forward)(x, params))
    assert out.shape == (2, 10), out.shape

    ref = jax.block_until_ready(jax.jit(ref_forward)(x, params))
    np.testing.assert_allclose(np.asarray(out), np.asarray(ref),
                               rtol=1e-3, atol=1e-3)

    print("KERNEL_OK")
</pallas_src>

<mosaic_0001>
module attributes {stable_mosaic.version = 11 : i64} {
  func.func @cnn_kernel(%arg0: memref<1536x25xf32, #tpu.memory_space<vmem>>, %arg1: memref<25x20xf32, #tpu.memory_space<vmem>>, %arg2: memref<1x20xf32, #tpu.memory_space<vmem>>, %arg3: memref<500x50xf32, #tpu.memory_space<vmem>>, %arg4: memref<1x50xf32, #tpu.memory_space<vmem>>, %arg5: memref<128x128xf32, #tpu.memory_space<vmem>>, %arg6: memref<800x200xf32, #tpu.memory_space<vmem>>, %arg7: memref<1x200xf32, #tpu.memory_space<vmem>>, %arg8: memref<200x128xf32, #tpu.memory_space<vmem>>, %arg9: memref<1x128xf32, #tpu.memory_space<vmem>>, %arg10: memref<2x128xf32, #tpu.memory_space<vmem>>, %arg11: memref<2x12x16x20xf32, #tpu.memory_space<vmem>>, %arg12: memref<2x16x50xf32, #tpu.memory_space<vmem>>) attributes {dimension_semantics = [], scalar_prefetch = 0 : i64, scratch_operands = 2 : i64, tpu.core_type = #tpu.core_type<tc>} {
    %c0 = arith.constant 0 : index
    %c0_0 = arith.constant 0 : index
    %0 = vector.load %arg0[%c0, %c0_0] : memref<1536x25xf32, #tpu.memory_space<vmem>>, vector<1536x25xf32>
    %c0_1 = arith.constant 0 : index
    %c0_2 = arith.constant 0 : index
    %1 = vector.load %arg1[%c0_1, %c0_2] : memref<25x20xf32, #tpu.memory_space<vmem>>, vector<25x20xf32>
    %cst = arith.constant dense<0.000000e+00> : vector<1536x20xf32>
    %2 = tpu.matmul %0, %1, %cst {dimension_numbers = #tpu.dot_dimension_numbers<[1], [0], [0], [1], [0, 0, 1, 1], [], []>} : vector<1536x25xf32>, vector<25x20xf32>, vector<1536x20xf32> -> vector<1536x20xf32>
    %c0_3 = arith.constant 0 : index
    %c0_4 = arith.constant 0 : index
    %3 = vector.load %arg2[%c0_3, %c0_4] : memref<1x20xf32, #tpu.memory_space<vmem>>, vector<1x20xf32>
    %4 = vector.broadcast %3 : vector<1x20xf32> to vector<1536x20xf32>
    %5 = arith.addf %2, %4 : vector<1536x20xf32>
    %6 = vector.extract_strided_slice %5 {offsets = [0, 0], sizes = [384, 20], strides = [1, 1]} : vector<1536x20xf32> to vector<384x20xf32>
    %7 = vector.extract_strided_slice %5 {offsets = [384, 0], sizes = [384, 20], strides = [1, 1]} : vector<1536x20xf32> to vector<384x20xf32>
    %8 = arith.maximumf %6, %7 : vector<384x20xf32>
    %9 = vector.extract_strided_slice %5 {offsets = [768, 0], sizes = [384, 20], strides = [1, 1]} : vector<1536x20xf32> to vector<384x20xf32>
    %10 = vector.extract_strided_slice %5 {offsets = [1152, 0], sizes = [384, 20], strides = [1, 1]} : vector<1536x20xf32> to vector<384x20xf32>
    %11 = arith.maximumf %9, %10 : vector<384x20xf32>
    %12 = arith.maximumf %8, %11 : vector<384x20xf32>
    %cst_5 = arith.constant 0.000000e+00 : f32
    %13 = vector.broadcast %cst_5 : f32 to vector<384x20xf32>
    %14 = arith.maximumf %12, %13 : vector<384x20xf32>
    %15 = vector.shape_cast %14 : vector<384x20xf32> to vector<2x12x16x20xf32>
    %c0_6 = arith.constant 0 : index
    %c0_7 = arith.constant 0 : index
    %c0_8 = arith.constant 0 : index
    %c0_9 = arith.constant 0 : index
    %16 = vector.load %arg11[%c0_6, %c0_7, %c0_8, %c0_9] : memref<2x12x16x20xf32, #tpu.memory_space<vmem>>, vector<2x12x16x20xf32>
    tpu.vector_store %arg11[%c0_6, %c0_7, %c0_8, %c0_9], %15 {strides = array<i32>} : memref<2x12x16x20xf32, #tpu.memory_space<vmem>>, vector<2x12x16x20xf32>,
    %c0_10 = arith.constant 0 : index
    %c0_11 = arith.constant 0 : index
    %c0_12 = arith.constant 0 : index
    %c0_13 = arith.constant 0 : index
    %17 = vector.load %arg11[%c0_10, %c0_11, %c0_12, %c0_13] : memref<2x12x16x20xf32, #tpu.memory_space<vmem>>, vector<2x8x8x20xf32>
    %c0_14 = arith.constant 0 : index
    %c0_15 = arith.constant 0 : index
    %c1 = arith.constant 1 : index
    %c0_16 = arith.constant 0 : index
    %18 = vector.load %arg11[%c0_14, %c0_15, %c1, %c0_16] : memref<2x12x16x20xf32, #tpu.memory_space<vmem>>, vector<2x8x8x20xf32>
    %c0_17 = arith.constant 0 : index
    %c0_18 = arith.constant 0 : index
    %c2 = arith.constant 2 : index
    %c0_19 = arith.constant 0 : index
    %19 = vector.load %arg11[%c0_17, %c0_18, %c2, %c0_19] : memref<2x12x16x20xf32, #tpu.memory_space<vmem>>, vector<2x8x8x20xf32>
    %c0_20 = arith.constant 0 : index
    %c0_21 = arith.constant 0 : index
    %c3 = arith.constant 3 : index
    %c0_22 = arith.constant 0 : index
    %20 = vector.load %arg11[%c0_20, %c0_21, %c3, %c0_22] : memref<2x12x16x20xf32, #tpu.memory_space<vmem>>, vector<2x8x8x20xf32>
    %c0_23 = arith.constant 0 : index
    %c0_24 = arith.constant 0 : index
    %c4 = arith.constant 4 : index
    %c0_25 = arith.constant 0 : index
    %21 = vector.load %arg11[%c0_23, %c0_24, %c4, %c0_25] : memref<2x12x16x20xf32, #tpu.memory_space<vmem>>, vector<2x8x8x20xf32>
    %c0_26 = arith.constant 0 : index
    %c1_27 = arith.constant 1 : index
    %c0_28 = arith.constant 0 : index
    %c0_29 = arith.constant 0 : index
    %22 = vector.load %arg11[%c0_26, %c1_27, %c0_28, %c0_29] : memref<2x12x16x20xf32, #tpu.memory_space<vmem>>, vector<2x8x8x20xf32>
    %c0_30 = arith.constant 0 : index
    %c1_31 = arith.constant 1 : index
    %c1_32 = arith.constant 1 : index
    %c0_33 = arith.constant 0 : index
    %23 = vector.load %arg11[%c0_30, %c1_31, %c1_32, %c0_33] : memref<2x12x16x20xf32, #tpu.memory_space<vmem>>, vector<2x8x8x20xf32>
    %c0_34 = arith.constant 0 : index
    %c1_35 = arith.constant 1 : index
    %c2_36 = arith.constant 2 : index
    %c0_37 = arith.constant 0 : index
    %24 = vector.load %arg11[%c0_34, %c1_35, %c2_36, %c0_37] : memref<2x12x16x20xf32, #tpu.memory_space<vmem>>, vector<2x8x8x20xf32>
    %c0_38 = arith.constant 0 : index
    %c1_39 = arith.constant 1 : index
    %c3_40 = arith.constant 3 : index
    %c0_41 = arith.constant 0 : index
    %25 = vector.load %arg11[%c0_38, %c1_39, %c3_40, %c0_41] : memref<2x12x16x20xf32, #tpu.memory_space<vmem>>, vector<2x8x8x20xf32>
    %c0_42 = arith.constant 0 : index
    %c1_43 = arith.constant 1 : index
    %c4_44 = arith.constant 4 : index
    %c0_45 = arith.constant 0 : index
    %26 = vector.load %arg11[%c0_42, %c1_43, %c4_44, %c0_45] : memref<2x12x16x20xf32, #tpu.memory_space<vmem>>, vector<2x8x8x20xf32>
    %c0_46 = arith.constant 0 : index
    %c2_47 = arith.constant 2 : index
    %c0_48 = arith.constant 0 : index
    %c0_49 = arith.constant 0 : index
    %27 = vector.load %arg11[%c0_46, %c2_47, %c0_48, %c0_49] : memref<2x12x16x20xf32, #tpu.memory_space<vmem>>, vector<2x8x8x20xf32>
    %c0_50 = arith.constant 0 : index
    %c2_51 = arith.constant 2 : index
    %c1_52 = arith.constant 1 : index
    %c0_53 = arith.constant 0 : index
    %28 = vector.load %arg11[%c0_50, %c2_51, %c1_52, %c0_53] : memref<2x12x16x20xf32, #tpu.memory_space<vmem>>, vector<2x8x8x20xf32>
    %c0_54 = arith.constant 0 : index
    %c2_55 = arith.constant 2 : index
    %c2_56 = arith.constant 2 : index
    %c0_57 = arith.constant 0 : index
    %29 = vector.load %arg11[%c0_54, %c2_55, %c2_56, %c0_57] : memref<2x12x16x20xf32, #tpu.memory_space<vmem>>, vector<2x8x8x20xf32>
    %c0_58 = arith.constant 0 : index
    %c2_59 = arith.constant 2 : index
    %c3_60 = arith.constant 3 : index
    %c0_61 = arith.constant 0 : index
    %30 = vector.load %arg11[%c0_58, %c2_59, %c3_60, %c0_61] : memref<2x12x16x20xf32, #tpu.memory_space<vmem>>, vector<2x8x8x20xf32>
    %c0_62 = arith.constant 0 : index
    %c2_63 = arith.constant 2 : index
    %c4_64 = arith.constant 4 : index
    %c0_65 = arith.constant 0 : index
    %31 = vector.load %arg11[%c0_62, %c2_63, %c4_64, %c0_65] : memref<2x12x16x20xf32, #tpu.memory_space<vmem>>, vector<2x8x8x20xf32>
    %c0_66 = arith.constant 0 : index
    %c3_67 = arith.constant 3 : index
    %c0_68 = arith.constant 0 : index
    %c0_69 = arith.constant 0 : index
    %32 = vector.load %arg11[%c0_66, %c3_67, %c0_68, %c0_69] : memref<2x12x16x20xf32, #tpu.memory_space<vmem>>, vector<2x8x8x20xf32>
    %c0_70 = arith.constant 0 : index
    %c3_71 = arith.constant 3 : index
    %c1_72 = arith.constant 1 : index
    %c0_73 = arith.constant 0 : index
    %33 = vector.load %arg11[%c0_70, %c3_71, %c1_72, %c0_73] : memref<2x12x16x20xf32, #tpu.memory_space<vmem>>, vector<2x8x8x20xf32>
    %c0_74 = arith.constant 0 : index
    %c3_75 = arith.constant 3 : index
    %c2_76 = arith.constant 2 : index
    %c0_77 = arith.constant 0 : index
    %34 = vector.load %arg11[%c0_74, %c3_75, %c2_76, %c0_77] : memref<2x12x16x20xf32, #tpu.memory_space<vmem>>, vector<2x8x8x20xf32>
    %c0_78 = arith.constant 0 : index
    %c3_79 = arith.constant 3 : index
    %c3_80 = arith.constant 3 : index
    %c0_81 = arith.constant 0 : index
    %35 = vector.load %arg11[%c0_78, %c3_79, %c3_80, %c0_81] : memref<2x12x16x20xf32, #tpu.memory_space<vmem>>, vector<2x8x8x20xf32>
    %c0_82 = arith.constant 0 : index
    %c3_83 = arith.constant 3 : index
    %c4_84 = arith.constant 4 : index
    %c0_85 = arith.constant 0 : index
    %36 = vector.load %arg11[%c0_82, %c3_83, %c4_84, %c0_85] : memref<2x12x16x20xf32, #tpu.memory_space<vmem>>, vector<2x8x8x20xf32>
    %c0_86 = arith.constant 0 : index
    %c4_87 = arith.constant 4 : index
    %c0_88 = arith.constant 0 : index
    %c0_89 = arith.constant 0 : index
    %37 = vector.load %arg11[%c0_86, %c4_87, %c0_88, %c0_89] : memref<2x12x16x20xf32, #tpu.memory_space<vmem>>, vector<2x8x8x20xf32>
    %c0_90 = arith.constant 0 : index
    %c4_91 = arith.constant 4 : index
    %c1_92 = arith.constant 1 : index
    %c0_93 = arith.constant 0 : index
    %38 = vector.load %arg11[%c0_90, %c4_91, %c1_92, %c0_93] : memref<2x12x16x20xf32, #tpu.memory_space<vmem>>, vector<2x8x8x20xf32>
    %c0_94 = arith.constant 0 : index
    %c4_95 = arith.constant 4 : index
    %c2_96 = arith.constant 2 : index
    %c0_97 = arith.constant 0 : index
    %39 = vector.load %arg11[%c0_94, %c4_95, %c2_96, %c0_97] : memref<2x12x16x20xf32, #tpu.memory_space<vmem>>, vector<2x8x8x20xf32>
    %c0_98 = arith.constant 0 : index
    %c4_99 = arith.constant 4 : index
    %c3_100 = arith.constant 3 : index
    %c0_101 = arith.constant 0 : index
    %40 = vector.load %arg11[%c0_98, %c4_99, %c3_100, %c0_101] : memref<2x12x16x20xf32, #tpu.memory_space<vmem>>, vector<2x8x8x20xf32>
    %c0_102 = arith.constant 0 : index
    %c4_103 = arith.constant 4 : index
    %c4_104 = arith.constant 4 : index
    %c0_105 = arith.constant 0 : index
    %41 = vector.load %arg11[%c0_102, %c4_103, %c4_104, %c0_105] : memref<2x12x16x20xf32, #tpu.memory_space<vmem>>, vector<2x8x8x20xf32>
    %42 = tpu.concatenate %17, %18, %19, %20, %21, %22, %23, %24, %25, %26, %27, %28, %29, %30, %31, %32 in 3 : vector<2x8x8x20xf32>, vector<2x8x8x20xf32>, vector<2x8x8x20xf32>, vector<2x8x8x20xf32>, vector<2x8x8x20xf32>, vector<2x8x8x20xf32>, vector<2x8x8x20xf32>, vector<2x8x8x20xf32>, vector<2x8x8x20xf32>, vector<2x8x8x20xf32>, vector<2x8x8x20xf32>, vector<2x8x8x20xf32>, vector<2x8x8x20xf32>, vector<2x8x8x20xf32>, vector<2x8x8x20xf32>, vector<2x8x8x20xf32> -> vector<2x8x8x320xf32>
    %43 = tpu.concatenate %33, %34, %35, %36, %37, %38, %39, %40, %41 in 3 : vector<2x8x8x20xf32>, vector<2x8x8x20xf32>, vector<2x8x8x20xf32>, vector<2x8x8x20xf32>, vector<2x8x8x20xf32>, vector<2x8x8x20xf32>, vector<2x8x8x20xf32>, vector<2x8x8x20xf32>, vector<2x8x8x20xf32> -> vector<2x8x8x180xf32>
    %44 = tpu.concatenate %42, %43 in 3 : vector<2x8x8x320xf32>, vector<2x8x8x180xf32> -> vector<2x8x8x500xf32>
    %45 = vector.shape_cast %44 : vector<2x8x8x500xf32> to vector<128x500xf32>
    %c0_106 = arith.constant 0 : index
    %c0_107 = arith.constant 0 : index
    %46 = vector.load %arg3[%c0_106, %c0_107] : memref<500x50xf32, #tpu.memory_space<vmem>>, vector<500x50xf32>
    %cst_108 = arith.constant dense<0.000000e+00> : vector<128x50xf32>
    %47 = tpu.matmul %45, %46, %cst_108 {dimension_numbers = #tpu.dot_dimension_numbers<[1], [0], [0], [1], [0, 0, 1, 1], [], []>} : vector<128x500xf32>, vector<500x50xf32>, vector<128x50xf32> -> vector<128x50xf32>
    %c0_109 = arith.constant 0 : index
    %c0_110 = arith.constant 0 : index
    %48 = vector.load %arg4[%c0_109, %c0_110] : memref<1x50xf32, #tpu.memory_space<vmem>>, vector<1x50xf32>
    %49 = vector.broadcast %48 : vector<1x50xf32> to vector<128x50xf32>
    %50 = arith.addf %47, %49 : vector<128x50xf32>
    %c0_111 = arith.constant 0 : index
    %c0_112 = arith.constant 0 : index
    %51 = vector.load %arg5[%c0_111, %c0_112] : memref<128x128xf32, #tpu.memory_space<vmem>>, vector<128x128xf32>
    %cst_113 = arith.constant dense<0.000000e+00> : vector<128x50xf32>
    %52 = tpu.matmul %51, %50, %cst_113 {dimension_numbers = #tpu.dot_dimension_numbers<[1], [0], [0], [1], [0, 0, 1, 1], [], []>} : vector<128x128xf32>, vector<128x50xf32>, vector<128x50xf32> -> vector<128x50xf32>
    %53 = vector.extract_strided_slice %52 {offsets = [0, 0], sizes = [32, 50], strides = [1, 1]} : vector<128x50xf32> to vector<32x50xf32>
    %54 = vector.extract_strided_slice %52 {offsets = [32, 0], sizes = [32, 50], strides = [1, 1]} : vector<128x50xf32> to vector<32x50xf32>
    %55 = arith.maximumf %53, %54 : vector<32x50xf32>
    %56 = vector.extract_strided_slice %52 {offsets = [64, 0], sizes = [32, 50], strides = [1, 1]} : vector<128x50xf32> to vector<32x50xf32>
    %57 = vector.extract_strided_slice %52 {offsets = [96, 0], sizes = [32, 50], strides = [1, 1]} : vector<128x50xf32> to vector<32x50xf32>
    %58 = arith.maximumf %56, %57 : vector<32x50xf32>
    %59 = arith.maximumf %55, %58 : vector<32x50xf32>
    %cst_114 = arith.constant 0.000000e+00 : f32
    %60 = vector.broadcast %cst_114 : f32 to vector<32x50xf32>
    %61 = arith.maximumf %59, %60 : vector<32x50xf32>
    %62 = vector.shape_cast %61 : vector<32x50xf32> to vector<2x16x50xf32>
    %c0_115 = arith.constant 0 : index
    %c0_116 = arith.constant 0 : index
    %c0_117 = arith.constant 0 : index
    %63 = vector.load %arg12[%c0_115, %c0_116, %c0_117] : memref<2x16x50xf32, #tpu.memory_space<vmem>>, vector<2x16x50xf32>
    tpu.vector_store %arg12[%c0_115, %c0_116, %c0_117], %62 {strides = array<i32>} : memref<2x16x50xf32, #tpu.memory_space<vmem>>, vector<2x16x50xf32>,
    %c0_118 = arith.constant 0 : index
    %c0_119 = arith.constant 0 : index
    %c0_120 = arith.constant 0 : index
    %64 = vector.load %arg12[%c0_118, %c0_119, %c0_120] : memref<2x16x50xf32, #tpu.memory_space<vmem>>, vector<2x1x50xf32>
    %65 = vector.shape_cast %64 : vector<2x1x50xf32> to vector<2x50xf32>
    %c0_121 = arith.constant 0 : index
    %c1_122 = arith.constant 1 : index
    %c0_123 = arith.constant 0 : index
    %66 = vector.load %arg12[%c0_121, %c1_122, %c0_123] : memref<2x16x50xf32, #tpu.memory_space<vmem>>, vector<2x1x50xf32>
    %67 = vector.shape_cast %66 : vector<2x1x50xf32> to vector<2x50xf32>
    %c0_124 = arith.constant 0 : index
    %c2_125 = arith.constant 2 : index
    %c0_126 = arith.constant 0 : index
    %68 = vector.load %arg12[%c0_124, %c2_125, %c0_126] : memref<2x16x50xf32, #tpu.memory_space<vmem>>, vector<2x1x50xf32>
    %69 = vector.shape_cast %68 : vector<2x1x50xf32> to vector<2x50xf32>
    %c0_127 = arith.constant 0 : index
    %c3_128 = arith.constant 3 : index
    %c0_129 = arith.constant 0 : index
    %70 = vector.load %arg12[%c0_127, %c3_128, %c0_129] : memref<2x16x50xf32, #tpu.memory_space<vmem>>, vector<2x1x50xf32>
    %71 = vector.shape_cast %70 : vector<2x1x50xf32> to vector<2x50xf32>
    %c0_130 = arith.constant 0 : index
    %c4_131 = arith.constant 4 : index
    %c0_132 = arith.constant 0 : index
    %72 = vector.load %arg12[%c0_130, %c4_131, %c0_132] : memref<2x16x50xf32, #tpu.memory_space<vmem>>, vector<2x1x50xf32>
    %73 = vector.shape_cast %72 : vector<2x1x50xf32> to vector<2x50xf32>
    %c0_133 = arith.constant 0 : index
    %c5 = arith.constant 5 : index
    %c0_134 = arith.constant 0 : index
    %74 = vector.load %arg12[%c0_133, %c5, %c0_134] : memref<2x16x50xf32, #tpu.memory_space<vmem>>, vector<2x1x50xf32>
    %75 = vector.shape_cast %74 : vector<2x1x50xf32> to vector<2x50xf32>
    %c0_135 = arith.constant 0 : index
    %c6 = arith.constant 6 : index
    %c0_136 = arith.constant 0 : index
    %76 = vector.load %arg12[%c0_135, %c6, %c0_136] : memref<2x16x50xf32, #tpu.memory_space<vmem>>, vector<2x1x50xf32>
    %77 = vector.shape_cast %76 : vector<2x1x50xf32> to vector<2x50xf32>
    %c0_137 = arith.constant 0 : index
    %c7 = arith.constant 7 : index
    %c0_138 = arith.constant 0 : index
    %78 = vector.load %arg12[%c0_137, %c7, %c0_138] : memref<2x16x50xf32, #tpu.memory_space<vmem>>, vector<2x1x50xf32>
    %79 = vector.shape_cast %78 : vector<2x1x50xf32> to vector<2x50xf32>
    %c0_139 = arith.constant 0 : index
    %c8 = arith.constant 8 : index
    %c0_140 = arith.constant 0 : index
    %80 = vector.load %arg12[%c0_139, %c8, %c0_140] : memref<2x16x50xf32, #tpu.memory_space<vmem>>, vector<2x1x50xf32>
    %81 = vector.shape_cast %80 : vector<2x1x50xf32> to vector<2x50xf32>
    %c0_141 = arith.constant 0 : index
    %c9 = arith.constant 9 : index
    %c0_142 = arith.constant 0 : index
    %82 = vector.load %arg12[%c0_141, %c9, %c0_142] : memref<2x16x50xf32, #tpu.memory_space<vmem>>, vector<2x1x50xf32>
    %83 = vector.shape_cast %82 : vector<2x1x50xf32> to vector<2x50xf32>
    %c0_143 = arith.constant 0 : index
    %c10 = arith.constant 10 : index
    %c0_144 = arith.constant 0 : index
    %84 = vector.load %arg12[%c0_143, %c10, %c0_144] : memref<2x16x50xf32, #tpu.memory_space<vmem>>, vector<2x1x50xf32>
    %85 = vector.shape_cast %84 : vector<2x1x50xf32> to vector<2x50xf32>
    %c0_145 = arith.constant 0 : index
    %c11 = arith.constant 11 : index
    %c0_146 = arith.constant 0 : index
    %86 = vector.load %arg12[%c0_145, %c11, %c0_146] : memref<2x16x50xf32, #tpu.memory_space<vmem>>, vector<2x1x50xf32>
    %87 = vector.shape_cast %86 : vector<2x1x50xf32> to vector<2x50xf32>
    %c0_147 = arith.constant 0 : index
    %c12 = arith.constant 12 : index
    %c0_148 = arith.constant 0 : index
    %88 = vector.load %arg12[%c0_147, %c12, %c0_148] : memref<2x16x50xf32, #tpu.memory_space<vmem>>, vector<2x1x50xf32>
    %89 = vector.shape_cast %88 : vector<2x1x50xf32> to vector<2x50xf32>
    %c0_149 = arith.constant 0 : index
    %c13 = arith.constant 13 : index
    %c0_150 = arith.constant 0 : index
    %90 = vector.load %arg12[%c0_149, %c13, %c0_150] : memref<2x16x50xf32, #tpu.memory_space<vmem>>, vector<2x1x50xf32>
    %91 = vector.shape_cast %90 : vector<2x1x50xf32> to vector<2x50xf32>
    %c0_151 = arith.constant 0 : index
    %c14 = arith.constant 14 : index
    %c0_152 = arith.constant 0 : index
    %92 = vector.load %arg12[%c0_151, %c14, %c0_152] : memref<2x16x50xf32, #tpu.memory_space<vmem>>, vector<2x1x50xf32>
    %93 = vector.shape_cast %92 : vector<2x1x50xf32> to vector<2x50xf32>
    %c0_153 = arith.constant 0 : index
    %c15 = arith.constant 15 : index
    %c0_154 = arith.constant 0 : index
    %94 = vector.load %arg12[%c0_153, %c15, %c0_154] : memref<2x16x50xf32, #tpu.memory_space<vmem>>, vector<2x1x50xf32>
    %95 = vector.shape_cast %94 : vector<2x1x50xf32> to vector<2x50xf32>
    %96 = tpu.concatenate %65, %67, %69, %71, %73, %75, %77, %79, %81, %83, %85, %87, %89, %91, %93, %95 in 1 : vector<2x50xf32>, vector<2x50xf32>, vector<2x50xf32>, vector<2x50xf32>, vector<2x50xf32>, vector<2x50xf32>, vector<2x50xf32>, vector<2x50xf32>, vector<2x50xf32>, vector<2x50xf32>, vector<2x50xf32>, vector<2x50xf32>, vector<2x50xf32>, vector<2x50xf32>, vector<2x50xf32>, vector<2x50xf32> -> vector<2x800xf32>
    %c0_155 = arith.constant 0 : index
    %c0_156 = arith.constant 0 : index
    %97 = vector.load %arg6[%c0_155, %c0_156] : memref<800x200xf32, #tpu.memory_space<vmem>>, vector<800x200xf32>
    %cst_157 = arith.constant dense<0.000000e+00> : vector<2x200xf32>
    %98 = tpu.matmul %96, %97, %cst_157 {dimension_numbers = #tpu.dot_dimension_numbers<[1], [0], [0], [1], [0, 0, 1, 1], [], []>} : vector<2x800xf32>, vector<800x200xf32>, vector<2x200xf32> -> vector<2x200xf32>
    %c0_158 = arith.constant 0 : index
    %c0_159 = arith.constant 0 : index
    %99 = vector.load %arg7[%c0_158, %c0_159] : memref<1x200xf32, #tpu.memory_space<vmem>>, vector<1x200xf32>
    %100 = vector.broadcast %99 : vector<1x200xf32> to vector<2x200xf32>
    %101 = arith.addf %98, %100 : vector<2x200xf32>
    %cst_160 = arith.constant 0.000000e+00 : f32
    %102 = vector.broadcast %cst_160 : f32 to vector<2x200xf32>
    %103 = arith.maximumf %101, %102 : vector<2x200xf32>
    %c0_161 = arith.constant 0 : index
    %c0_162 = arith.constant 0 : index
    %104 = vector.load %arg8[%c0_161, %c0_162] : memref<200x128xf32, #tpu.memory_space<vmem>>, vector<200x128xf32>
    %cst_163 = arith.constant dense<0.000000e+00> : vector<2x128xf32>
    %105 = tpu.matmul %103, %104, %cst_163 {dimension_numbers = #tpu.dot_dimension_numbers<[1], [0], [0], [1], [0, 0, 1, 1], [], []>} : vector<2x200xf32>, vector<200x128xf32>, vector<2x128xf32> -> vector<2x128xf32>
    %c0_164 = arith.constant 0 : index
    %c0_165 = arith.constant 0 : index
    %106 = vector.load %arg9[%c0_164, %c0_165] : memref<1x128xf32, #tpu.memory_space<vmem>>, vector<1x128xf32>
    %107 = vector.broadcast %106 : vector<1x128xf32> to vector<2x128xf32>
    %108 = arith.addf %105, %107 : vector<2x128xf32>
    %c0_166 = arith.constant 0 : index
    %c0_167 = arith.constant 0 : index
    %109 = vector.load %arg10[%c0_166, %c0_167] : memref<2x128xf32, #tpu.memory_space<vmem>>, vector<2x128xf32>
    tpu.vector_store %arg10[%c0_166, %c0_167], %108 {strides = array<i32>} : memref<2x128xf32, #tpu.memory_space<vmem>>, vector<2x128xf32>,
    return
  }
}

</mosaic_0001>

<llo_original>
// kernel: cnn_forward.1
$region0: #{cnn_forward.1}
  #allocation0 [shape = 'u32[]', space=smem, size = 0x4, offset = 0x4, fixed_abs, tag = 'smem constant byte address 0x4 - core index']
  #allocation1 [shape = 'u32[144,128]{1,0:T(1,128)}', space=vmem, size = 0x12000, scoped, tag = 'internal scratch']
  #allocation2 [shape = 'f32[2,12,16,20]{3,2,1,0:T(8,128)}', space=vmem, size = 0x30000, scoped, tag = 'scratch operand']
  #allocation3 [shape = 'f32[2,16,50]{2,1,0:T(8,128)}', space=vmem, size = 0x4000, scoped, tag = 'scratch operand']
  %s0 = inlined_call_operand.vmem [shape: f32[1536,25], index: 0, kind: input, shape index: {}]
  %s1 = inlined_call_operand.vmem [shape: f32[25,20], index: 1, kind: input, shape index: {}]
  %s2 = inlined_call_operand.vmem [shape: f32[1,20], index: 2, kind: input, shape index: {}]
  %s3 = inlined_call_operand.vmem [shape: f32[500,50], index: 3, kind: input, shape index: {}]
  %s4 = inlined_call_operand.vmem [shape: f32[1,50], index: 4, kind: input, shape index: {}]
  %s5 = inlined_call_operand.vmem [shape: f32[128,128], index: 5, kind: input, shape index: {}]
  %s6 = inlined_call_operand.vmem [shape: f32[800,200], index: 6, kind: input, shape index: {}]
  %s7 = inlined_call_operand.vmem [shape: f32[1,200], index: 7, kind: input, shape index: {}]
  %s8 = inlined_call_operand.vmem [shape: f32[200,128], index: 8, kind: input, shape index: {}]
  %s9 = inlined_call_operand.vmem [shape: f32[1,128], index: 9, kind: input, shape index: {}]
  %s10 = inlined_call_operand.hbm [shape: f32[2,128], index: 10, kind: output, shape index: {}]
  %s11 = sld [smem:[#allocation0]]
  $region50: #{cnn_forward.1} parent=0
    _
  %s13 = ssub.s32 1, %s11
  %s14 = scalar_select 0, %s13, %s11
  $region1: #{cnn_forward.1} parent=0
    #allocation4 [shape = 'u8[1024]{0}', space=vmem, size = 0x400, scoped, tag = 'output window, operand 0, single buffered']
    #allocation5 [shape = 's32[1]{0}', space=sflag, size = 0x4, scoped, tag = 'scoped memory for cnn_forward.1']
    %15 = vsyncpa [#allocation5], 0
    // Predicated region
    $region2: #{cnn_forward.1} parent=1 // pred_check
      _
    $region3: #{cnn_forward.1} parent=1 // pred_check_branch
      %17 = sbr.rel (0) target = $region5
    $region4: #{cnn_forward.1} parent=1 // pred_region
      _
    $region5: #{cnn_forward.1} parent=1 // pred_fallthru
      _
    // Predicated region
    $region6: #{cnn_forward.1} parent=1 // pred_check
      _
    $region7: #{cnn_forward.1} parent=1 // pred_check_branch
      %19 = sbr.rel (0) target = $region9
    $region8: #{cnn_forward.1} parent=1 // pred_region
      _
    $region9: #{cnn_forward.1} parent=1 // pred_fallthru
      _
    // Predicated region
    $region10: #{cnn_forward.1} parent=1 // pred_check
      _
    $region11: #{cnn_forward.1} parent=1 // pred_check_branch
      %21 = sbr.rel (0) target = $region13
    $region12: #{cnn_forward.1} parent=1 // pred_region
      _
    $region13: #{cnn_forward.1} parent=1 // pred_fallthru
      _
    // Predicated region
    $region14: #{cnn_forward.1} parent=1 // pred_check
      _
    $region15: #{cnn_forward.1} parent=1 // pred_check_branch
      %23 = sbr.rel (0) target = $region17
    $region16: #{cnn_forward.1} parent=1 // pred_region
      _
    $region17: #{cnn_forward.1} parent=1 // pred_fallthru
      _
    // Predicated region
    $region18: #{cnn_forward.1} parent=1 // pred_check
      _
    $region19: #{cnn_forward.1} parent=1 // pred_check_branch
      %25 = sbr.rel (0) target = $region21
    $region20: #{cnn_forward.1} parent=1 // pred_region
      _
    $region21: #{cnn_forward.1} parent=1 // pred_fallthru
      _
    // Predicated region
    $region22: #{cnn_forward.1} parent=1 // pred_check
      _
    $region23: #{cnn_forward.1} parent=1 // pred_check_branch
      %27 = sbr.rel (0) target = $region25
    $region24: #{cnn_forward.1} parent=1 // pred_region
      _
    $region25: #{cnn_forward.1} parent=1 // pred_fallthru
      _
    // Predicated region
    $region26: #{cnn_forward.1} parent=1 // pred_check
      _
    $region27: #{cnn_forward.1} parent=1 // pred_check_branch
      %29 = sbr.rel (0) target = $region29
    $region28: #{cnn_forward.1} parent=1 // pred_region
      _
    $region29: #{cnn_forward.1} parent=1 // pred_fallthru
      _
    // Predicated region
    $region30: #{cnn_forward.1} parent=1 // pred_check
      _
    $region31: #{cnn_forward.1} parent=1 // pred_check_branch
      %31 = sbr.rel (0) target = $region33
    $region32: #{cnn_forward.1} parent=1 // pred_region
      _
    $region33: #{cnn_forward.1} parent=1 // pred_fallthru
      _
    // Predicated region
    $region34: #{cnn_forward.1} parent=1 // pred_check
      _
    $region35: #{cnn_forward.1} parent=1 // pred_check_branch
      %33 = sbr.rel (0) target = $region37
    $region36: #{cnn_forward.1} parent=1 // pred_region
      _
    $region37: #{cnn_forward.1} parent=1 // pred_fallthru
      _
    // Predicated region
    $region38: #{cnn_forward.1} parent=1 // pred_check
      _
    $region39: #{cnn_forward.1} parent=1 // pred_check_branch
      %35 = sbr.rel (0) target = $region41
    $region40: #{cnn_forward.1} parent=1 // pred_region
      _
    $region41: #{cnn_forward.1} parent=1 // pred_fallthru
      _
    %v36 = vld [vmem:[%s0] sm:$0xff]
    %v37 = vld [vmem:[%s0 + $0x8] sm:$0xff]
    %v38 = vld [vmem:[%s0 + $0x10] sm:$0xff]
    %v39 = vld [vmem:[%s0 + $0x18] sm:$0xff]
    %v40 = vld [vmem:[%s0 + $0x20] sm:$0xff]
    %v41 = vld [vmem:[%s0 + $0x28] sm:$0xff]
    %v42 = vld [vmem:[%s0 + $0x30] sm:$0xff]
    %v43 = vld [vmem:[%s0 + $0x38] sm:$0xff]
    %v44 = vld [vmem:[%s0 + $0x40] sm:$0xff]
    %v45 = vld [vmem:[%s0 + $0x48] sm:$0xff]
    %v46 = vld [vmem:[%s0 + $0x50] sm:$0xff]
    %v47 = vld [vmem:[%s0 + $0x58] sm:$0xff]
    %v48 = vld [vmem:[%s0 + $0x60] sm:$0xff]
    %v49 = vld [vmem:[%s0 + $0x68] sm:$0xff]
    %v50 = vld [vmem:[%s0 + $0x70] sm:$0xff]
    %v51 = vld [vmem:[%s0 + $0x78] sm:$0xff]
    %v52 = vld [vmem:[%s0 + $0x80] sm:$0xff]
    %v53 = vld [vmem:[%s0 + $0x88] sm:$0xff]
    %v54 = vld [vmem:[%s0 + $0x90] sm:$0xff]
    %v55 = vld [vmem:[%s0 + $0x98] sm:$0xff]
    %v56 = vld [vmem:[%s0 + $0xa0] sm:$0xff]
    %v57 = vld [vmem:[%s0 + $0xa8] sm:$0xff]
    %v58 = vld [vmem:[%s0 + $0xb0] sm:$0xff]
    %v59 = vld [vmem:[%s0 + $0xb8] sm:$0xff]
    %v60 = vld [vmem:[%s0 + $0xc0] sm:$0xff]
    %v61 = vld [vmem:[%s0 + $0xc8] sm:$0xff]
    %v62 = vld [vmem:[%s0 + $0xd0] sm:$0xff]
    %v63 = vld [vmem:[%s0 + $0xd8] sm:$0xff]
    %v64 = vld [vmem:[%s0 + $0xe0] sm:$0xff]
    %v65 = vld [vmem:[%s0 + $0xe8] sm:$0xff]
    %v66 = vld [vmem:[%s0 + $0xf0] sm:$0xff]
    %v67 = vld [vmem:[%s0 + $0xf8] sm:$0xff]
    %v68 = vld [vmem:[%s0 + $0x100] sm:$0xff]
    %v69 = vld [vmem:[%s0 + $0x108] sm:$0xff]
    %v70 = vld [vmem:[%s0 + $0x110] sm:$0xff]
    %v71 = vld [vmem:[%s0 + $0x118] sm:$0xff]
    %v72 = vld [vmem:[%s0 + $0x120] sm:$0xff]
    %v73 = vld [vmem:[%s0 + $0x128] sm:$0xff]
    %v74 = vld [vmem:[%s0 + $0x130] sm:$0xff]
    %v75 = vld [vmem:[%s0 + $0x138] sm:$0xff]
    %v76 = vld [vmem:[%s0 + $0x140] sm:$0xff]
    %v77 = vld [vmem:[%s0 + $0x148] sm:$0xff]
    %v78 = vld [vmem:[%s0 + $0x150] sm:$0xff]
    %v79 = vld [vmem:[%s0 + $0x158] sm:$0xff]
    %v80 = vld [vmem:[%s0 + $0x160] sm:$0xff]
    %v81 = vld [vmem:[%s0 + $0x168] sm:$0xff]
    %v82 = vld [vmem:[%s0 + $0x170] sm:$0xff]
    %v83 = vld [vmem:[%s0 + $0x178] sm:$0xff]
    %v84 = vld [vmem:[%s0 + $0x180] sm:$0xff]
    %v85 = vld [vmem:[%s0 + $0x188] sm:$0xff]
    %v86 = vld [vmem:[%s0 + $0x190] sm:$0xff]
    %v87 = vld [vmem:[%s0 + $0x198] sm:$0xff]
    %v88 = vld [vmem:[%s0 + $0x1a0] sm:$0xff]
    %v89 = vld [vmem:[%s0 + $0x1a8] sm:$0xff]
    %v90 = vld [vmem:[%s0 + $0x1b0] sm:$0xff]
    %v91 = vld [vmem:[%s0 + $0x1b8] sm:$0xff]
    %v92 = vld [vmem:[%s0 + $0x1c0] sm:$0xff]
    %v93 = vld [vmem:[%s0 + $0x1c8] sm:$0xff]
    %v94 = vld [vmem:[%s0 + $0x1d0] sm:$0xff]
    %v95 = vld [vmem:[%s0 + $0x1d8] sm:$0xff]
    %v96 = vld [vmem:[%s0 + $0x1e0] sm:$0xff]
    %v97 = vld [vmem:[%s0 + $0x1e8] sm:$0xff]
    %v98 = vld [vmem:[%s0 + $0x1f0] sm:$0xff]
    %v99 = vld [vmem:[%s0 + $0x1f8] sm:$0xff]
    %v100 = vld [vmem:[%s0 + $0x200] sm:$0xff]
    %v101 = vld [vmem:[%s0 + $0x208] sm:$0xff]
    %v102 = vld [vmem:[%s0 + $0x210] sm:$0xff]
    %v103 = vld [vmem:[%s0 + $0x218] sm:$0xff]
    %v104 = vld [vmem:[%s0 + $0x220] sm:$0xff]
    %v105 = vld [vmem:[%s0 + $0x228] sm:$0xff]
    %v106 = vld [vmem:[%s0 + $0x230] sm:$0xff]
    %v107 = vld [vmem:[%s0 + $0x238] sm:$0xff]
    %v108 = vld [vmem:[%s0 + $0x240] sm:$0xff]
    %v109 = vld [vmem:[%s0 + $0x248] sm:$0xff]
    %v110 = vld [vmem:[%s0 + $0x250] sm:$0xff]
    %v111 = vld [vmem:[%s0 + $0x258] sm:$0xff]
    %v112 = vld [vmem:[%s0 + $0x260] sm:$0xff]
    %v113 = vld [vmem:[%s0 + $0x268] sm:$0xff]
    %v114 = vld [vmem:[%s0 + $0x270] sm:$0xff]
    %v115 = vld [vmem:[%s0 + $0x278] sm:$0xff]
    %v116 = vld [vmem:[%s0 + $0x280] sm:$0xff]
    %v117 = vld [vmem:[%s0 + $0x288] sm:$0xff]
    %v118 = vld [vmem:[%s0 + $0x290] sm:$0xff]
    %v119 = vld [vmem:[%s0 + $0x298] sm:$0xff]
    %v120 = vld [vmem:[%s0 + $0x2a0] sm:$0xff]
    %v121 = vld [vmem:[%s0 + $0x2a8] sm:$0xff]
    %v122 = vld [vmem:[%s0 + $0x2b0] sm:$0xff]
    %v123 = vld [vmem:[%s0 + $0x2b8] sm:$0xff]
    %v124 = vld [vmem:[%s0 + $0x2c0] sm:$0xff]
    %v125 = vld [vmem:[%s0 + $0x2c8] sm:$0xff]
    %v126 = vld [vmem:[%s0 + $0x2d0] sm:$0xff]
    %v127 = vld [vmem:[%s0 + $0x2d8] sm:$0xff]
    %v128 = vld [vmem:[%s0 + $0x2e0] sm:$0xff]
    %v129 = vld [vmem:[%s0 + $0x2e8] sm:$0xff]
    %v130 = vld [vmem:[%s0 + $0x2f0] sm:$0xff]
    %v131 = vld [vmem:[%s0 + $0x2f8] sm:$0xff]
    %v132 = vld [vmem:[%s0 + $0x300] sm:$0xff]
    %v133 = vld [vmem:[%s0 + $0x308] sm:$0xff]
    %v134 = vld [vmem:[%s0 + $0x310] sm:$0xff]
    %v135 = vld [vmem:[%s0 + $0x318] sm:$0xff]
    %v136 = vld [vmem:[%s0 + $0x320] sm:$0xff]
    %v137 = vld [vmem:[%s0 + $0x328] sm:$0xff]
    %v138 = vld [vmem:[%s0 + $0x330] sm:$0xff]
    %v139 = vld [vmem:[%s0 + $0x338] sm:$0xff]
    %v140 = vld [vmem:[%s0 + $0x340] sm:$0xff]
    %v141 = vld [vmem:[%s0 + $0x348] sm:$0xff]
    %v142 = vld [vmem:[%s0 + $0x350] sm:$0xff]
    %v143 = vld [vmem:[%s0 + $0x358] sm:$0xff]
    %v144 = vld [vmem:[%s0 + $0x360] sm:$0xff]
    %v145 = vld [vmem:[%s0 + $0x368] sm:$0xff]
    %v146 = vld [vmem:[%s0 + $0x370] sm:$0xff]
    %v147 = vld [vmem:[%s0 + $0x378] sm:$0xff]
    %v148 = vld [vmem:[%s0 + $0x380] sm:$0xff]
    %v149 = vld [vmem:[%s0 + $0x388] sm:$0xff]
    %v150 = vld [vmem:[%s0 + $0x390] sm:$0xff]
    %v151 = vld [vmem:[%s0 + $0x398] sm:$0xff]
    %v152 = vld [vmem:[%s0 + $0x3a0] sm:$0xff]
    %v153 = vld [vmem:[%s0 + $0x3a8] sm:$0xff]
    %v154 = vld [vmem:[%s0 + $0x3b0] sm:$0xff]
    %v155 = vld [vmem:[%s0 + $0x3b8] sm:$0xff]
    %v156 = vld [vmem:[%s0 + $0x3c0] sm:$0xff]
    %v157 = vld [vmem:[%s0 + $0x3c8] sm:$0xff]
    %v158 = vld [vmem:[%s0 + $0x3d0] sm:$0xff]
    %v159 = vld [vmem:[%s0 + $0x3d8] sm:$0xff]
    %v160 = vld [vmem:[%s0 + $0x3e0] sm:$0xff]
    %v161 = vld [vmem:[%s0 + $0x3e8] sm:$0xff]
    %v162 = vld [vmem:[%s0 + $0x3f0] sm:$0xff]
    %v163 = vld [vmem:[%s0 + $0x3f8] sm:$0xff]
    %v164 = vld [vmem:[%s0 + $0x400] sm:$0xff]
    %v165 = vld [vmem:[%s0 + $0x408] sm:$0xff]
    %v166 = vld [vmem:[%s0 + $0x410] sm:$0xff]
    %v167 = vld [vmem:[%s0 + $0x418] sm:$0xff]
    %v168 = vld [vmem:[%s0 + $0x420] sm:$0xff]
    %v169 = vld [vmem:[%s0 + $0x428] sm:$0xff]
    %v170 = vld [vmem:[%s0 + $0x430] sm:$0xff]
    %v171 = vld [vmem:[%s0 + $0x438] sm:$0xff]
    %v172 = vld [vmem:[%s0 + $0x440] sm:$0xff]
    %v173 = vld [vmem:[%s0 + $0x448] sm:$0xff]
    %v174 = vld [vmem:[%s0 + $0x450] sm:$0xff]
    %v175 = vld [vmem:[%s0 + $0x458] sm:$0xff]
    %v176 = vld [vmem:[%s0 + $0x460] sm:$0xff]
    %v177 = vld [vmem:[%s0 + $0x468] sm:$0xff]
    %v178 = vld [vmem:[%s0 + $0x470] sm:$0xff]
    %v179 = vld [vmem:[%s0 + $0x478] sm:$0xff]
    %v180 = vld [vmem:[%s0 + $0x480] sm:$0xff]
    %v181 = vld [vmem:[%s0 + $0x488] sm:$0xff]
    %v182 = vld [vmem:[%s0 + $0x490] sm:$0xff]
    %v183 = vld [vmem:[%s0 + $0x498] sm:$0xff]
    %v184 = vld [vmem:[%s0 + $0x4a0] sm:$0xff]
    %v185 = vld [vmem:[%s0 + $0x4a8] sm:$0xff]
    %v186 = vld [vmem:[%s0 + $0x4b0] sm:$0xff]
    %v187 = vld [vmem:[%s0 + $0x4b8] sm:$0xff]
    %v188 = vld [vmem:[%s0 + $0x4c0] sm:$0xff]
    %v189 = vld [vmem:[%s0 + $0x4c8] sm:$0xff]
    %v190 = vld [vmem:[%s0 + $0x4d0] sm:$0xff]
    %v191 = vld [vmem:[%s0 + $0x4d8] sm:$0xff]
    %v192 = vld [vmem:[%s0 + $0x4e0] sm:$0xff]
    %v193 = vld [vmem:[%s0 + $0x4e8] sm:$0xff]
    %v194 = vld [vmem:[%s0 + $0x4f0] sm:$0xff]
    %v195 = vld [vmem:[%s0 + $0x4f8] sm:$0xff]
    %v196 = vld [vmem:[%s0 + $0x500] sm:$0xff]
    %v197 = vld [vmem:[%s0 + $0x508] sm:$0xff]
    %v198 = vld [vmem:[%s0 + $0x510] sm:$0xff]
    %v199 = vld [vmem:[%s0 + $0x518] sm:$0xff]
    %v200 = vld [vmem:[%s0 + $0x520] sm:$0xff]
    %v201 = vld [vmem:[%s0 + $0x528] sm:$0xff]
    %v202 = vld [vmem:[%s0 + $0x530] sm:$0xff]
    %v203 = vld [vmem:[%s0 + $0x538] sm:$0xff]
    %v204 = vld [vmem:[%s0 + $0x540] sm:$0xff]
    %v205 = vld [vmem:[%s0 + $0x548] sm:$0xff]
    %v206 = vld [vmem:[%s0 + $0x550] sm:$0xff]
    %v207 = vld [vmem:[%s0 + $0x558] sm:$0xff]
    %v208 = vld [vmem:[%s0 + $0x560] sm:$0xff]
    %v209 = vld [vmem:[%s0 + $0x568] sm:$0xff]
    %v210 = vld [vmem:[%s0 + $0x570] sm:$0xff]
    %v211 = vld [vmem:[%s0 + $0x578] sm:$0xff]
    %v212 = vld [vmem:[%s0 + $0x580] sm:$0xff]
    %v213 = vld [vmem:[%s0 + $0x588] sm:$0xff]
    %v214 = vld [vmem:[%s0 + $0x590] sm:$0xff]
    %v215 = vld [vmem:[%s0 + $0x598] sm:$0xff]
    %v216 = vld [vmem:[%s0 + $0x5a0] sm:$0xff]
    %v217 = vld [vmem:[%s0 + $0x5a8] sm:$0xff]
    %v218 = vld [vmem:[%s0 + $0x5b0] sm:$0xff]
    %v219 = vld [vmem:[%s0 + $0x5b8] sm:$0xff]
    %v220 = vld [vmem:[%s0 + $0x5c0] sm:$0xff]
    %v221 = vld [vmem:[%s0 + $0x5c8] sm:$0xff]
    %v222 = vld [vmem:[%s0 + $0x5d0] sm:$0xff]
    %v223 = vld [vmem:[%s0 + $0x5d8] sm:$0xff]
    %v224 = vld [vmem:[%s0 + $0x5e0] sm:$0xff]
    %v225 = vld [vmem:[%s0 + $0x5e8] sm:$0xff]
    %v226 = vld [vmem:[%s0 + $0x5f0] sm:$0xff]
    %v227 = vld [vmem:[%s0 + $0x5f8] sm:$0xff]
    %v228 = vld [vmem:[%s1] sm:$0xff]
    %v229 = vld [vmem:[%s1 + $0x8] sm:$0xff]
    %v230 = vld [vmem:[%s1 + $0x10] sm:$0xff]
    %v231 = vld [vmem:[%s1 + $0x18] sm:$0x1]
    %v232 = vld [vmem:[%s2] sm:$0x1]
    %v234 = vlaneseq
    %v235 = vshrl.u32 %v234, 7
    %v236 = vsub.s32 0, %v235
    %v237 = vrot.slane %v232, %v236
    %vm239 = vcmask 203776
    %v241 = vsel %vm239, %v36, 0
    %v244 = vsel %vm239, %v37, 0
    %v247 = vsel %vm239, %v38, 0
    %v250 = vsel %vm239, %v39, 0
    %v253 = vsel %vm239, %v40, 0
    %v256 = vsel %vm239, %v41, 0
    %v259 = vsel %vm239, %v42, 0
    %v262 = vsel %vm239, %v43, 0
    %v265 = vsel %vm239, %v44, 0
    %v268 = vsel %vm239, %v45, 0
    %v271 = vsel %vm239, %v46, 0
    %v274 = vsel %vm239, %v47, 0
    %v277 = vsel %vm239, %v48, 0
    %v280 = vsel %vm239, %v49, 0
    %v283 = vsel %vm239, %v50, 0
    %v286 = vsel %vm239, %v51, 0
    %v289 = vsel %vm239, %v52, 0
    %v292 = vsel %vm239, %v53, 0
    %v295 = vsel %vm239, %v54, 0
    %v298 = vsel %vm239, %v55, 0
    %v301 = vsel %vm239, %v56, 0
    %v304 = vsel %vm239, %v57, 0
    %v307 = vsel %vm239, %v58, 0
    %v310 = vsel %vm239, %v59, 0
    %v313 = vsel %vm239, %v60, 0
    %v316 = vsel %vm239, %v61, 0
    %v319 = vsel %vm239, %v62, 0
    %v322 = vsel %vm239, %v63, 0
    %v325 = vsel %vm239, %v64, 0
    %v328 = vsel %vm239, %v65, 0
    %v331 = vsel %vm239, %v66, 0
    %v334 = vsel %vm239, %v67, 0
    %v337 = vsel %vm239, %v68, 0
    %v340 = vsel %vm239, %v69, 0
    %v343 = vsel %vm239, %v70, 0
    %v346 = vsel %vm239, %v71, 0
    %v349 = vsel %vm239, %v72, 0
    %v352 = vsel %vm239, %v73, 0
    %v355 = vsel %vm239, %v74, 0
    %v358 = vsel %vm239, %v75, 0
    %v361 = vsel %vm239, %v76, 0
    %v364 = vsel %vm239, %v77, 0
    %v367 = vsel %vm239, %v78, 0
    %v370 = vsel %vm239, %v79, 0
    %v373 = vsel %vm239, %v80, 0
    %v376 = vsel %vm239, %v81, 0
    %v379 = vsel %vm239, %v82, 0
    %v382 = vsel %vm239, %v83, 0
    %v385 = vsel %vm239, %v84, 0
    %v388 = vsel %vm239, %v85, 0
    %v391 = vsel %vm239, %v86, 0
    %v394 = vsel %vm239, %v87, 0
    %v397 = vsel %vm239, %v88, 0
    %v400 = vsel %vm239, %v89, 0
    %v403 = vsel %vm239, %v90, 0
    %v406 = vsel %vm239, %v91, 0
    %v409 = vsel %vm239, %v92, 0
    %v412 = vsel %vm239, %v93, 0
    %v415 = vsel %vm239, %v94, 0
    %v418 = vsel %vm239, %v95, 0
    %v421 = vsel %vm239, %v96, 0
    %v424 = vsel %vm239, %v97, 0
    %v427 = vsel %vm239, %v98, 0
    %v430 = vsel %vm239, %v99, 0
    %v433 = vsel %vm239, %v100, 0
    %v436 = vsel %vm239, %v101, 0
    %v439 = vsel %vm239, %v102, 0
    %v442 = vsel %vm239, %v103, 0
    %v445 = vsel %vm239, %v104, 0
    %v448 = vsel %vm239, %v105, 0
    %v451 = vsel %vm239, %v106, 0
    %v454 = vsel %vm239, %v107, 0
    %v457 = vsel %vm239, %v108, 0
    %v460 = vsel %vm239, %v109, 0
    %v463 = vsel %vm239, %v110, 0
    %v466 = vsel %vm239, %v111, 0
    %v469 = vsel %vm239, %v112, 0
    %v472 = vsel %vm239, %v113, 0
    %v475 = vsel %vm239, %v114, 0
    %v478 = vsel %vm239, %v115, 0
    %v481 = vsel %vm239, %v116, 0
    %v484 = vsel %vm239, %v117, 0
    %v487 = vsel %vm239, %v118, 0
    %v490 = vsel %vm239, %v119, 0
    %v493 = vsel %vm239, %v120, 0
    %v496 = vsel %vm239, %v121, 0
    %v499 = vsel %vm239, %v122, 0
    %v502 = vsel %vm239, %v123, 0
    %v505 = vsel %vm239, %v124, 0
    %v508 = vsel %vm239, %v125, 0
    %v511 = vsel %vm239, %v126, 0
    %v514 = vsel %vm239, %v127, 0
    %v517 = vsel %vm239, %v128, 0
    %v520 = vsel %vm239, %v129, 0
    %v523 = vsel %vm239, %v130, 0
    %v526 = vsel %vm239, %v131, 0
    %v529 = vsel %vm239, %v132, 0
    %v532 = vsel %vm239, %v133, 0
    %v535 = vsel %vm239, %v134, 0
    %v538 = vsel %vm239, %v135, 0
    %v541 = vsel %vm239, %v136, 0
    %v544 = vsel %vm239, %v137, 0
    %v547 = vsel %vm239, %v138, 0
    %v550 = vsel %vm239, %v139, 0
    %v553 = vsel %vm239, %v140, 0
    %v556 = vsel %vm239, %v141, 0
    %v559 = vsel %vm239, %v142, 0
    %v562 = vsel %vm239, %v143, 0
    %v565 = vsel %vm239, %v144, 0
    %v568 = vsel %vm239, %v145, 0
    %v571 = vsel %vm239, %v146, 0
    %v574 = vsel %vm239, %v147, 0
    %v577 = vsel %vm239, %v148, 0
    %v580 = vsel %vm239, %v149, 0
    %v583 = vsel %vm239, %v150, 0
    %v586 = vsel %vm239, %v151, 0
    %v589 = vsel %vm239, %v152, 0
    %v592 = vsel %vm239, %v153, 0
    %v595 = vsel %vm239, %v154, 0
    %v598 = vsel %vm239, %v155, 0
    %v601 = vsel %vm239, %v156, 0
    %v604 = vsel %vm239, %v157, 0
    %v607 = vsel %vm239, %v158, 0
    %v610 = vsel %vm239, %v159, 0
    %v613 = vsel %vm239, %v160, 0
    %v616 = vsel %vm239, %v161, 0
    %v619 = vsel %vm239, %v162, 0
    %v622 = vsel %vm239, %v163, 0
    %v625 = vsel %vm239, %v164, 0
    %v628 = vsel %vm239, %v165, 0
    %v631 = vsel %vm239, %v166, 0
    %v634 = vsel %vm239, %v167, 0
    %v637 = vsel %vm239, %v168, 0
    %v640 = vsel %vm239, %v169, 0
    %v643 = vsel %vm239, %v170, 0
    %v646 = vsel %vm239, %v171, 0
    %v649 = vsel %vm239, %v172, 0
    %v652 = vsel %vm239, %v173, 0
    %v655 = vsel %vm239, %v174, 0
    %v658 = vsel %vm239, %v175, 0
    %v661 = vsel %vm239, %v176, 0
    %v664 = vsel %vm239, %v177, 0
    %v667 = vsel %vm239, %v178, 0
    %v670 = vsel %vm239, %v179, 0
    %v673 = vsel %vm239, %v180, 0
    %v676 = vsel %vm239, %v181, 0
    %v679 = vsel %vm239, %v182, 0
    %v682 = vsel %vm239, %v183, 0
    %v685 = vsel %vm239, %v184, 0
    %v688 = vsel %vm239, %v185, 0
    %v691 = vsel %vm239, %v186, 0
    %v694 = vsel %vm239, %v187, 0
    %v697 = vsel %vm239, %v188, 0
    %v700 = vsel %vm239, %v189, 0
    %v703 = vsel %vm239, %v190, 0
    %v706 = vsel %vm239, %v191, 0
    %v709 = vsel %vm239, %v192, 0
    %v712 = vsel %vm239, %v193, 0
    %v715 = vsel %vm239, %v194, 0
    %v718 = vsel %vm239, %v195, 0
    %v721 = vsel %vm239, %v196, 0
    %v724 = vsel %vm239, %v197, 0
    %v727 = vsel %vm239, %v198, 0
    %v730 = vsel %vm239, %v199, 0
    %v733 = vsel %vm239, %v200, 0
    %v736 = vsel %vm239, %v201, 0
    %v739 = vsel %vm239, %v202, 0
    %v742 = vsel %vm239, %v203, 0
    %v745 = vsel %vm239, %v204, 0
    %v748 = vsel %vm239, %v205, 0
    %v751 = vsel %vm239, %v206, 0
    %v754 = vsel %vm239, %v207, 0
    %v757 = vsel %vm239, %v208, 0
    %v760 = vsel %vm239, %v209, 0
    %v763 = vsel %vm239, %v210, 0
    %v766 = vsel %vm239, %v211, 0
    %v769 = vsel %vm239, %v212, 0
    %v772 = vsel %vm239, %v213, 0
    %v775 = vsel %vm239, %v214, 0
    %v778 = vsel %vm239, %v215, 0
    %v781 = vsel %vm239, %v216, 0
    %v784 = vsel %vm239, %v217, 0
    %v787 = vsel %vm239, %v218, 0
    %v790 = vsel %vm239, %v219, 0
    %v793 = vsel %vm239, %v220, 0
    %v796 = vsel %vm239, %v221, 0
    %v799 = vsel %vm239, %v222, 0
    %v802 = vsel %vm239, %v223, 0
    %v805 = vsel %vm239, %v224, 0
    %v808 = vsel %vm239, %v225, 0
    %v811 = vsel %vm239, %v226, 0
    %v814 = vsel %vm239, %v227, 0
    %vm816 = vcmask 1040384
    %v818 = vsel %vm816, %v231, 0
    %820 = vmatprep.subr.mxu0 0.0
    %821 = vmatpush1.msra.mxu0 %v228
    %822 = vmatprep.subr.mxu0 0.0
    %823 = vmatpush1.msra.mxu0 %v229
    %824 = vmatprep.subr.mxu0 0.0
    %825 = vmatpush1.msra.mxu0 %v230
    %826 = vmatprep.subr.mxu0 0.0
    %827 = vmatpush1.msra.mxu0 %v818
    %828 = vmatprep.subr.mxu0 0.0
    %829 = vmatpush1.msra.mxu0 0.0
    %830 = vmatprep.subr.mxu0 0.0
    %831 = vmatpush1.msra.mxu0 0.0
    %832 = vmatprep.subr.mxu0 0.0
    %833 = vmatpush1.msra.mxu0 0.0
    %834 = vmatprep.subr.mxu0 0.0
    %835 = vmatpush1.msra.mxu0 0.0
    %836 = vmatprep.subr.mxu0 0.0
    %837 = vmatpush1.msra.mxu0 0.0
    %838 = vmatprep.subr.mxu0 0.0
    %839 = vmatpush1.msra.mxu0 0.0
    %840 = vmatprep.subr.mxu0 0.0
    %841 = vmatpush1.msra.mxu0 0.0
    %842 = vmatprep.subr.mxu0 0.0
    %843 = vmatpush1.msra.mxu0 0.0
    %844 = vmatprep.subr.mxu0 0.0
    %845 = vmatpush1.msra.mxu0 0.0
    %846 = vmatprep.subr.mxu0 0.0
    %847 = vmatpush1.msra.mxu0 0.0
    %848 = vmatprep.subr.mxu0 0.0
    %849 = vmatpush1.msra.mxu0 0.0
    %850 = vmatprep.subr.mxu0 0.0
    %851 = vmatpush1.msra.mxu0 0.0
    %852 = vmatprep.subr.mxu0 0.0
    %853 = vmatpush1.msra.mxu0 0.0
    %854 = vmatprep.subr.mxu0 0.0
    %855 = vmatpush1.msra.mxu0 0.0
    %856 = vmatprep.subr.mxu0 0.0
    %857 = vmatpush1.msra.mxu0 0.0
    %858 = vmatprep.subr.mxu0 0.0
    %859 = vmatpush1.msra.mxu0 0.0
    %860 = vmatprep.subr.mxu0 0.0
    %861 = vmatpush1.msra.mxu0 0.0
    %862 = vmatprep.subr.mxu0 0.0
    %863 = vmatpush1.msra.mxu0 0.0
    %864 = vmatprep.subr.mxu0 0.0
    %865 = vmatpush1.msra.mxu0 0.0
    %866 = vmatprep.subr.mxu0 0.0
    %867 = vmatpush1.msra.mxu0 0.0
    %868 = vmatprep.subr.mxu0 0.0
    %869 = vmatpush1.msra.mxu0 0.0
    %870 = vmatprep.subr.mxu0 0.0
    %871 = vmatpush1.msra.mxu0 0.0
    %872 = vmatprep.subr.mxu0 0.0
    %873 = vmatpush1.msra.mxu0 0.0
    %874 = vmatprep.subr.mxu0 0.0
    %875 = vmatpush1.msra.mxu0 0.0
    %876 = vmatprep.subr.mxu0 0.0
    %877 = vmatpush1.msra.mxu0 0.0
    %878 = vmatprep.subr.mxu0 0.0
    %879 = vmatpush1.msra.mxu0 0.0
    %880 = vmatprep.subr.mxu0 0.0
    %881 = vmatpush1.msra.mxu0 0.0
    %882 = vmatprep.subr.mxu0 0.0
    %883 = vmatpush1.msra.mxu0 0.0
    %884 = vmatprep.mubr.f32.mxu0 0.0
    %885 = vmatmul.mubr.f32.gmra.mrb[0].mxu0 %v241
    %v886 = vpop.f32.mrb[0].mxu0
    %v887 = vadd.f32 %v237, %v886
    %v888 = vpop.f32.mrb[0].mxu0
    %889 = vmatprep.mubr.f32.mxu0 0.0
    %890 = vmatmul.mubr.f32.gmra.mrb[0].mxu0 %v244
    %v891 = vpop.f32.mrb[0].mxu0
    %v892 = vadd.f32 %v237, %v891
    %v893 = vpop.f32.mrb[0].mxu0
    %894 = vmatprep.mubr.f32.mxu0 0.0
    %895 = vmatmul.mubr.f32.gmra.mrb[0].mxu0 %v247
    %v896 = vpop.f32.mrb[0].mxu0
    %v897 = vadd.f32 %v237, %v896
    %v898 = vpop.f32.mrb[0].mxu0
    %899 = vmatprep.mubr.f32.mxu0 0.0
    %900 = vmatmul.mubr.f32.gmra.mrb[0].mxu0 %v250
    %v901 = vpop.f32.mrb[0].mxu0
    %v902 = vadd.f32 %v237, %v901
    %v903 = vpop.f32.mrb[0].mxu0
    %904 = vmatprep.mubr.f32.mxu0 0.0
    %905 = vmatmul.mubr.f32.gmra.mrb[0].mxu0 %v253
    %v906 = vpop.f32.mrb[0].mxu0
    %v907 = vadd.f32 %v237, %v906
    %v908 = vpop.f32.mrb[0].mxu0
    %909 = vmatprep.mubr.f32.mxu0 0.0
    %910 = vmatmul.mubr.f32.gmra.mrb[0].mxu0 %v256
    %v911 = vpop.f32.mrb[0].mxu0
    %v912 = vadd.f32 %v237, %v911
    %v913 = vpop.f32.mrb[0].mxu0
    %914 = vmatprep.mubr.f32.mxu0 0.0
    %915 = vmatmul.mubr.f32.gmra.mrb[0].mxu0 %v259
    %v916 = vpop.f32.mrb[0].mxu0
    %v917 = vadd.f32 %v237, %v916
    %v918 = vpop.f32.mrb[0].mxu0
    %919 = vmatprep.mubr.f32.mxu0 0.0
    %920 = vmatmul.mubr.f32.gmra.mrb[0].mxu0 %v262
    %v921 = vpop.f32.mrb[0].mxu0
    %v922 = vadd.f32 %v237, %v921
    %v923 = vpop.f32.mrb[0].mxu0
    %924 = vmatprep.mubr.f32.mxu0 0.0
    %925 = vmatmul.mubr.f32.gmra.mrb[0].mxu0 %v265
    %v926 = vpop.f32.mrb[0].mxu0
    %v927 = vadd.f32 %v237, %v926
    %v928 = vpop.f32.mrb[0].mxu0
    %929 = vmatprep.mubr.f32.mxu0 0.0
    %930 = vmatmul.mubr.f32.gmra.mrb[0].mxu0 %v268
    %v931 = vpop.f32.mrb[0].mxu0
    %v932 = vadd.f32 %v237, %v931
    %v933 = vpop.f32.mrb[0].mxu0
    %934 = vmatprep.mubr.f32.mxu0 0.0
    %935 = vmatmul.mubr.f32.gmra.mrb[0].mxu0 %v271
    %v936 = vpop.f32.mrb[0].mxu0
    %v937 = vadd.f32 %v237, %v936
    %v938 = vpop.f32.mrb[0].mxu0
    %939 = vmatprep.mubr.f32.mxu0 0.0
    %940 = vmatmul.mubr.f32.gmra.mrb[0].mxu0 %v274
    %v941 = vpop.f32.mrb[0].mxu0
    %v942 = vadd.f32 %v237, %v941
    %v943 = vpop.f32.mrb[0].mxu0
    %944 = vmatprep.mubr.f32.mxu0 0.0
    %945 = vmatmul.mubr.f32.gmra.mrb[0].mxu0 %v277
    %v946 = vpop.f32.mrb[0].mxu0
    %v947 = vadd.f32 %v237, %v946
    %v948 = vpop.f32.mrb[0].mxu0
    %949 = vmatprep.mubr.f32.mxu0 0.0
    %950 = vmatmul.mubr.f32.gmra.mrb[0].mxu0 %v280
    %v951 = vpop.f32.mrb[0].mxu0
    %v952 = vadd.f32 %v237, %v951
    %v953 = vpop.f32.mrb[0].mxu0
    %954 = vmatprep.mubr.f32.mxu0 0.0
    %955 = vmatmul.mubr.f32.gmra.mrb[0].mxu0 %v283
    %v956 = vpop.f32.mrb[0].mxu0
    %v957 = vadd.f32 %v237, %v956
    %v958 = vpop.f32.mrb[0].mxu0
    %959 = vmatprep.mubr.f32.mxu0 0.0
    %960 = vmatmul.mubr.f32.gmra.mrb[0].mxu0 %v286
    %v961 = vpop.f32.mrb[0].mxu0
    %v962 = vadd.f32 %v237, %v961
    %v963 = vpop.f32.mrb[0].mxu0
    %964 = vmatprep.mubr.f32.mxu0 0.0
    %965 = vmatmul.mubr.f32.gmra.mrb[0].mxu0 %v289
    %v966 = vpop.f32.mrb[0].mxu0
    %v967 = vadd.f32 %v237, %v966
    %v968 = vpop.f32.mrb[0].mxu0
    %969 = vmatprep.mubr.f32.mxu0 0.0
    %970 = vmatmul.mubr.f32.gmra.mrb[0].mxu0 %v292
    %v971 = vpop.f32.mrb[0].mxu0
    %v972 = vadd.f32 %v237, %v971
    %v973 = vpop.f32.mrb[0].mxu0
    %974 = vmatprep.mubr.f32.mxu0 0.0
    %975 = vmatmul.mubr.f32.gmra.mrb[0].mxu0 %v295
    %v976 = vpop.f32.mrb[0].mxu0
    %v977 = vadd.f32 %v237, %v976
    %v978 = vpop.f32.mrb[0].mxu0
    %979 = vmatprep.mubr.f32.mxu0 0.0
    %980 = vmatmul.mubr.f32.gmra.mrb[0].mxu0 %v298
    %v981 = vpop.f32.mrb[0].mxu0
    %v982 = vadd.f32 %v237, %v981
    %v983 = vpop.f32.mrb[0].mxu0
    %984 = vmatprep.mubr.f32.mxu0 0.0
    %985 = vmatmul.mubr.f32.gmra.mrb[0].mxu0 %v301
    %v986 = vpop.f32.mrb[0].mxu0
    %v987 = vadd.f32 %v237, %v986
    %v988 = vpop.f32.mrb[0].mxu0
    %989 = vmatprep.mubr.f32.mxu0 0.0
    %990 = vmatmul.mubr.f32.gmra.mrb[0].mxu0 %v304
    %v991 = vpop.f32.mrb[0].mxu0
    %v992 = vadd.f32 %v237, %v991
    %v993 = vpop.f32.mrb[0].mxu0
    %994 = vmatprep.mubr.f32.mxu0 0.0
    %995 = vmatmul.mubr.f32.gmra.mrb[0].mxu0 %v307
    %v996 = vpop.f32.mrb[0].mxu0
    %v997 = vadd.f32 %v237, %v996
    %v998 = vpop.f32.mrb[0].mxu0
    %999 = vmatprep.mubr.f32.mxu0 0.0
    %1000 = vmatmul.mubr.f32.gmra.mrb[0].mxu0 %v310
    %v1001 = vpop.f32.mrb[0].mxu0
    %v1002 = vadd.f32 %v237, %v1001
    %v1003 = vpop.f32.mrb[0].mxu0
    %1004 = vmatprep.mubr.f32.mxu0 0.0
    %1005 = vmatmul.mubr.f32.gmra.mrb[0].mxu0 %v313
    %v1006 = vpop.f32.mrb[0].mxu0
    %v1007 = vadd.f32 %v237, %v1006
    %v1008 = vpop.f32.mrb[0].mxu0
    %1009 = vmatprep.mubr.f32.mxu0 0.0
    %1010 = vmatmul.mubr.f32.gmra.mrb[0].mxu0 %v316
    %v1011 = vpop.f32.mrb[0].mxu0
    %v1012 = vadd.f32 %v237, %v1011
    %v1013 = vpop.f32.mrb[0].mxu0
    %1014 = vmatprep.mubr.f32.mxu0 0.0
    %1015 = vmatmul.mubr.f32.gmra.mrb[0].mxu0 %v319
    %v1016 = vpop.f32.mrb[0].mxu0
    %v1017 = vadd.f32 %v237, %v1016
    %v1018 = vpop.f32.mrb[0].mxu0
    %1019 = vmatprep.mubr.f32.mxu0 0.0
    %1020 = vmatmul.mubr.f32.gmra.mrb[0].mxu0 %v322
    %v1021 = vpop.f32.mrb[0].mxu0
    %v1022 = vadd.f32 %v237, %v1021
    %v1023 = vpop.f32.mrb[0].mxu0
    %1024 = vmatprep.mubr.f32.mxu0 0.0
    %1025 = vmatmul.mubr.f32.gmra.mrb[0].mxu0 %v325
    %v1026 = vpop.f32.mrb[0].mxu0
    %v1027 = vadd.f32 %v237, %v1026
    %v1028 = vpop.f32.mrb[0].mxu0
    %1029 = vmatprep.mubr.f32.mxu0 0.0
    %1030 = vmatmul.mubr.f32.gmra.mrb[0].mxu0 %v328
    %v1031 = vpop.f32.mrb[0].mxu0
    %v1032 = vadd.f32 %v237, %v1031
    %v1033 = vpop.f32.mrb[0].mxu0
    %1034 = vmatprep.mubr.f32.mxu0 0.0
    %1035 = vmatmul.mubr.f32.gmra.mrb[0].mxu0 %v331
    %v1036 = vpop.f32.mrb[0].mxu0
    %v1037 = vadd.f32 %v237, %v1036
    %v1038 = vpop.f32.mrb[0].mxu0
    %1039 = vmatprep.mubr.f32.mxu0 0.0
    %1040 = vmatmul.mubr.f32.gmra.mrb[0].mxu0 %v334
    %v1041 = vpop.f32.mrb[0].mxu0
    %v1042 = vadd.f32 %v237, %v1041
    %v1043 = vpop.f32.mrb[0].mxu0
    %1044 = vmatprep.mubr.f32.mxu0 0.0
    %1045 = vmatmul.mubr.f32.gmra.mrb[0].mxu0 %v337
    %v1046 = vpop.f32.mrb[0].mxu0
    %v1047 = vadd.f32 %v237, %v1046
    %v1048 = vpop.f32.mrb[0].mxu0
    %1049 = vmatprep.mubr.f32.mxu0 0.0
    %1050 = vmatmul.mubr.f32.gmra.mrb[0].mxu0 %v340
    %v1051 = vpop.f32.mrb[0].mxu0
    %v1052 = vadd.f32 %v237, %v1051
    %v1053 = vpop.f32.mrb[0].mxu0
    %1054 = vmatprep.mubr.f32.mxu0 0.0
    %1055 = vmatmul.mubr.f32.gmra.mrb[0].mxu0 %v343
    %v1056 = vpop.f32.mrb[0].mxu0
    %v1057 = vadd.f32 %v237, %v1056
    %v1058 = vpop.f32.mrb[0].mxu0
    %1059 = vmatprep.mubr.f32.mxu0 0.0
    %1060 = vmatmul.mubr.f32.gmra.mrb[0].mxu0 %v346
    %v1061 = vpop.f32.mrb[0].mxu0
    %v1062 = vadd.f32 %v237, %v1061
    %v1063 = vpop.f32.mrb[0].mxu0
    %1064 = vmatprep.mubr.f32.mxu0 0.0
    %1065 = vmatmul.mubr.f32.gmra.mrb[0].mxu0 %v349
    %v1066 = vpop.f32.mrb[0].mxu0
    %v1067 = vadd.f32 %v237, %v1066
    %v1068 = vpop.f32.mrb[0].mxu0
    %1069 = vmatprep.mubr.f32.mxu0 0.0
    %1070 = vmatmul.mubr.f32.gmra.mrb[0].mxu0 %v352
    %v1071 = vpop.f32.mrb[0].mxu0
    %v1072 = vadd.f32 %v237, %v1071
    %v1073 = vpop.f32.mrb[0].mxu0
    %1074 = vmatprep.mubr.f32.mxu0 0.0
    %1075 = vmatmul.mubr.f32.gmra.mrb[0].mxu0 %v355
    %v1076 = vpop.f32.mrb[0].mxu0
    %v1077 = vadd.f32 %v237, %v1076
    %v1078 = vpop.f32.mrb[0].mxu0
    %1079 = vmatprep.mubr.f32.mxu0 0.0
    %1080 = vmatmul.mubr.f32.gmra.mrb[0].mxu0 %v358
    %v1081 = vpop.f32.mrb[0].mxu0
    %v1082 = vadd.f32 %v237, %v1081
    %v1083 = vpop.f32.mrb[0].mxu0
    %1084 = vmatprep.mubr.f32.mxu0 0.0
    %1085 = vmatmul.mubr.f32.gmra.mrb[0].mxu0 %v361
    %v1086 = vpop.f32.mrb[0].mxu0
    %v1087 = vadd.f32 %v237, %v1086
    %v1088 = vpop.f32.mrb[0].mxu0
    %1089 = vmatprep.mubr.f32.mxu0 0.0
    %1090 = vmatmul.mubr.f32.gmra.mrb[0].mxu0 %v364
    %v1091 = vpop.f32.mrb[0].mxu0
    %v1092 = vadd.f32 %v237, %v1091
    %v1093 = vpop.f32.mrb[0].mxu0
    %1094 = vmatprep.mubr.f32.mxu0 0.0
    %1095 = vmatmul.mubr.f32.gmra.mrb[0].mxu0 %v367
    %v1096 = vpop.f32.mrb[0].mxu0
    %v1097 = vadd.f32 %v237, %v1096
    %v1098 = vpop.f32.mrb[0].mxu0
    %1099 = vmatprep.mubr.f32.mxu0 0.0
    %1100 = vmatmul.mubr.f32.gmra.mrb[0].mxu0 %v370
    %v1101 = vpop.f32.mrb[0].mxu0
    %v1102 = vadd.f32 %v237, %v1101
    %v1103 = vpop.f32.mrb[0].mxu0
    %1104 = vmatprep.mubr.f32.mxu0 0.0
    %1105 = vmatmul.mubr.f32.gmra.mrb[0].mxu0 %v373
    %v1106 = vpop.f32.mrb[0].mxu0
    %v1107 = vadd.f32 %v237, %v1106
    %v1108 = vpop.f32.mrb[0].mxu0
    %1109 = vmatprep.mubr.f32.mxu0 0.0
    %1110 = vmatmul.mubr.f32.gmra.mrb[0].mxu0 %v376
    %v1111 = vpop.f32.mrb[0].mxu0
    %v1112 = vadd.f32 %v237, %v1111
    %v1113 = vpop.f32.mrb[0].mxu0
    %1114 = vmatprep.mubr.f32.mxu0 0.0
    %1115 = vmatmul.mubr.f32.gmra.mrb[0].mxu0 %v379
    %v1116 = vpop.f32.mrb[0].mxu0
    %v1117 = vadd.f32 %v237, %v1116
    %v1118 = vpop.f32.mrb[0].mxu0
    %1119 = vmatprep.mubr.f32.mxu0 0.0
    %1120 = vmatmul.mubr.f32.gmra.mrb[0].mxu0 %v382
    %v1121 = vpop.f32.mrb[0].mxu0
    %v1122 = vadd.f32 %v237, %v1121
    %v1123 = vpop.f32.mrb[0].mxu0
    %1124 = vmatprep.mubr.f32.mxu0 0.0
    %1125 = vmatmul.mubr.f32.gmra.mrb[0].mxu0 %v385
    %v1126 = vpop.f32.mrb[0].mxu0
    %v1127 = vadd.f32 %v237, %v1126
    %v1128 = vpop.f32.mrb[0].mxu0
    %1129 = vmatprep.mubr.f32.mxu0 0.0
    %1130 = vmatmul.mubr.f32.gmra.mrb[0].mxu0 %v388
    %v1131 = vpop.f32.mrb[0].mxu0
    %v1132 = vadd.f32 %v237, %v1131
    %v1133 = vpop.f32.mrb[0].mxu0
    %1134 = vmatprep.mubr.f32.mxu0 0.0
    %1135 = vmatmul.mubr.f32.gmra.mrb[0].mxu0 %v391
    %v1136 = vpop.f32.mrb[0].mxu0
    %v1137 = vadd.f32 %v237, %v1136
    %v1138 = vpop.f32.mrb[0].mxu0
    %1139 = vmatprep.mubr.f32.mxu0 0.0
    %1140 = vmatmul.mubr.f32.gmra.mrb[0].mxu0 %v394
    %v1141 = vpop.f32.mrb[0].mxu0
    %v1142 = vadd.f32 %v237, %v1141
    %v1143 = vpop.f32.mrb[0].mxu0
    %1144 = vmatprep.mubr.f32.mxu0 0.0
    %1145 = vmatmul.mubr.f32.gmra.mrb[0].mxu0 %v397
    %v1146 = vpop.f32.mrb[0].mxu0
    %v1147 = vadd.f32 %v237, %v1146
    %v1148 = vpop.f32.mrb[0].mxu0
    %1149 = vmatprep.mubr.f32.mxu0 0.0
    %1150 = vmatmul.mubr.f32.gmra.mrb[0].mxu0 %v400
    %v1151 = vpop.f32.mrb[0].mxu0
    %v1152 = vadd.f32 %v237, %v1151
    %v1153 = vpop.f32.mrb[0].mxu0
    %1154 = vmatprep.mubr.f32.mxu0 0.0
    %1155 = vmatmul.mubr.f32.gmra.mrb[0].mxu0 %v403
    %v1156 = vpop.f32.mrb[0].mxu0
    %v1157 = vadd.f32 %v237, %v1156
    %v1158 = vpop.f32.mrb[0].mxu0
    %1159 = vmatprep.mubr.f32.mxu0 0.0
    %1160 = vmatmul.mubr.f32.gmra.mrb[0].mxu0 %v406
    %v1161 = vpop.f32.mrb[0].mxu0
    %v1162 = vadd.f32 %v237, %v1161
    %v1163 = vpop.f32.mrb[0].mxu0
    %1164 = vmatprep.mubr.f32.mxu0 0.0
    %1165 = vmatmul.mubr.f32.gmra.mrb[0].mxu0 %v409
    %v1166 = vpop.f32.mrb[0].mxu0
    %v1167 = vadd.f32 %v237, %v1166
    %v1168 = vpop.f32.mrb[0].mxu0
    %1169 = vmatprep.mubr.f32.mxu0 0.0
    %1170 = vmatmul.mubr.f32.gmra.mrb[0].mxu0 %v412
    %v1171 = vpop.f32.mrb[0].mxu0
    %v1172 = vadd.f32 %v237, %v1171
    %v1173 = vpop.f32.mrb[0].mxu0
    %1174 = vmatprep.mubr.f32.mxu0 0.0
    %1175 = vmatmul.mubr.f32.gmra.mrb[0].mxu0 %v415
    %v1176 = vpop.f32.mrb[0].mxu0
    %v1177 = vadd.f32 %v237, %v1176
    %v1178 = vpop.f32.mrb[0].mxu0
    %1179 = vmatprep.mubr.f32.mxu0 0.0
    %1180 = vmatmul.mubr.f32.gmra.mrb[0].mxu0 %v418
    %v1181 = vpop.f32.mrb[0].mxu0
    %v1182 = vadd.f32 %v237, %v1181
    %v1183 = vpop.f32.mrb[0].mxu0
    %1184 = vmatprep.mubr.f32.mxu0 0.0
    %1185 = vmatmul.mubr.f32.gmra.mrb[0].mxu0 %v421
    %v1186 = vpop.f32.mrb[0].mxu0
    %v1187 = vadd.f32 %v237, %v1186
    %v1188 = vpop.f32.mrb[0].mxu0
    %1189 = vmatprep.mubr.f32.mxu0 0.0
    %1190 = vmatmul.mubr.f32.gmra.mrb[0].mxu0 %v424
    %v1191 = vpop.f32.mrb[0].mxu0
    %v1192 = vadd.f32 %v237, %v1191
    %v1193 = vpop.f32.mrb[0].mxu0
    %1194 = vmatprep.mubr.f32.mxu0 0.0
    %1195 = vmatmul.mubr.f32.gmra.mrb[0].mxu0 %v427
    %v1196 = vpop.f32.mrb[0].mxu0
    %v1197 = vadd.f32 %v237, %v1196
    %v1198 = vpop.f32.mrb[0].mxu0
    %1199 = vmatprep.mubr.f32.mxu0 0.0
    %1200 = vmatmul.mubr.f32.gmra.mrb[0].mxu0 %v430
    %v1201 = vpop.f32.mrb[0].mxu0
    %v1202 = vadd.f32 %v237, %v1201
    %v1203 = vpop.f32.mrb[0].mxu0
    %1204 = vmatprep.mubr.f32.mxu0 0.0
    %1205 = vmatmul.mubr.f32.gmra.mrb[0].mxu0 %v433
    %v1206 = vpop.f32.mrb[0].mxu0
    %v1207 = vadd.f32 %v237, %v1206
    %v1208 = vpop.f32.mrb[0].mxu0
    %1209 = vmatprep.mubr.f32.mxu0 0.0
    %1210 = vmatmul.mubr.f32.gmra.mrb[0].mxu0 %v436
    %v1211 = vpop.f32.mrb[0].mxu0
    %v1212 = vadd.f32 %v237, %v1211
    %v1213 = vpop.f32.mrb[0].mxu0
    %1214 = vmatprep.mubr.f32.mxu0 0.0
    %1215 = vmatmul.mubr.f32.gmra.mrb[0].mxu0 %v439
    %v1216 = vpop.f32.mrb[0].mxu0
    %v1217 = vadd.f32 %v237, %v1216
    %v1218 = vpop.f32.mrb[0].mxu0
    %1219 = vmatprep.mubr.f32.mxu0 0.0
    %1220 = vmatmul.mubr.f32.gmra.mrb[0].mxu0 %v442
    %v1221 = vpop.f32.mrb[0].mxu0
    %v1222 = vadd.f32 %v237, %v1221
    %v1223 = vpop.f32.mrb[0].mxu0
    %1224 = vmatprep.mubr.f32.mxu0 0.0
    %1225 = vmatmul.mubr.f32.gmra.mrb[0].mxu0 %v445
    %v1226 = vpop.f32.mrb[0].mxu0
    %v1227 = vadd.f32 %v237, %v1226
    %v1228 = vpop.f32.mrb[0].mxu0
    %1229 = vmatprep.mubr.f32.mxu0 0.0
    %1230 = vmatmul.mubr.f32.gmra.mrb[0].mxu0 %v448
    %v1231 = vpop.f32.mrb[0].mxu0
    %v1232 = vadd.f32 %v237, %v1231
    %v1233 = vpop.f32.mrb[0].mxu0
    %1234 = vmatprep.mubr.f32.mxu0 0.0
    %1235 = vmatmul.mubr.f32.gmra.mrb[0].mxu0 %v451
    %v1236 = vpop.f32.mrb[0].mxu0
    %v1237 = vadd.f32 %v237, %v1236
    %v1238 = vpop.f32.mrb[0].mxu0
    %1239 = vmatprep.mubr.f32.mxu0 0.0
    %1240 = vmatmul.mubr.f32.gmra.mrb[0].mxu0 %v454
    %v1241 = vpop.f32.mrb[0].mxu0
    %v1242 = vadd.f32 %v237, %v1241
    %v1243 = vpop.f32.mrb[0].mxu0
    %1244 = vmatprep.mubr.f32.mxu0 0.0
    %1245 = vmatmul.mubr.f32.gmra.mrb[0].mxu0 %v457
    %v1246 = vpop.f32.mrb[0].mxu0
    %v1247 = vadd.f32 %v237, %v1246
    %v1248 = vpop.f32.mrb[0].mxu0
    %1249 = vmatprep.mubr.f32.mxu0 0.0
    %1250 = vmatmul.mubr.f32.gmra.mrb[0].mxu0 %v460
    %v1251 = vpop.f32.mrb[0].mxu0
    %v1252 = vadd.f32 %v237, %v1251
    %v1253 = vpop.f32.mrb[0].mxu0
    %1254 = vmatprep.mubr.f32.mxu0 0.0
    %1255 = vmatmul.mubr.f32.gmra.mrb[0].mxu0 %v463
    %v1256 = vpop.f32.mrb[0].mxu0
    %v1257 = vadd.f32 %v237, %v1256
    %v1258 = vpop.f32.mrb[0].mxu0
    %1259 = vmatprep.mubr.f32.mxu0 0.0
    %1260 = vmatmul.mubr.f32.gmra.mrb[0].mxu0 %v466
    %v1261 = vpop.f32.mrb[0].mxu0
    %v1262 = vadd.f32 %v237, %v1261
    %v1263 = vpop.f32.mrb[0].mxu0
    %1264 = vmatprep.mubr.f32.mxu0 0.0
    %1265 = vmatmul.mubr.f32.gmra.mrb[0].mxu0 %v469
    %v1266 = vpop.f32.mrb[0].mxu0
    %v1267 = vadd.f32 %v237, %v1266
    %v1268 = vpop.f32.mrb[0].mxu0
    %1269 = vmatprep.mubr.f32.mxu0 0.0
    %1270 = vmatmul.mubr.f32.gmra.mrb[0].mxu0 %v472
    %v1271 = vpop.f32.mrb[0].mxu0
    %v1272 = vadd.f32 %v237, %v1271
    %v1273 = vpop.f32.mrb[0].mxu0
    %1274 = vmatprep.mubr.f32.mxu0 0.0
    %1275 = vmatmul.mubr.f32.gmra.mrb[0].mxu0 %v475
    %v1276 = vpop.f32.mrb[0].mxu0
    %v1277 = vadd.f32 %v237, %v1276
    %v1278 = vpop.f32.mrb[0].mxu0
    %1279 = vmatprep.mubr.f32.mxu0 0.0
    %1280 = vmatmul.mubr.f32.gmra.mrb[0].mxu0 %v478
    %v1281 = vpop.f32.mrb[0].mxu0
    %v1282 = vadd.f32 %v237, %v1281
    %v1283 = vpop.f32.mrb[0].mxu0
    %1284 = vmatprep.mubr.f32.mxu0 0.0
    %1285 = vmatmul.mubr.f32.gmra.mrb[0].mxu0 %v481
    %v1286 = vpop.f32.mrb[0].mxu0
    %v1287 = vadd.f32 %v237, %v1286
    %v1288 = vpop.f32.mrb[0].mxu0
    %1289 = vmatprep.mubr.f32.mxu0 0.0
    %1290 = vmatmul.mubr.f32.gmra.mrb[0].mxu0 %v484
    %v1291 = vpop.f32.mrb[0].mxu0
    %v1292 = vadd.f32 %v237, %v1291
    %v1293 = vpop.f32.mrb[0].mxu0
    %1294 = vmatprep.mubr.f32.mxu0 0.0
    %1295 = vmatmul.mubr.f32.gmra.mrb[0].mxu0 %v487
    %v1296 = vpop.f32.mrb[0].mxu0
    %v1297 = vadd.f32 %v237, %v1296
    %v1298 = vpop.f32.mrb[0].mxu0
    %1299 = vmatprep.mubr.f32.mxu0 0.0
    %1300 = vmatmul.mubr.f32.gmra.mrb[0].mxu0 %v490
    %v1301 = vpop.f32.mrb[0].mxu0
    %v1302 = vadd.f32 %v237, %v1301
    %v1303 = vpop.f32.mrb[0].mxu0
    %1304 = vmatprep.mubr.f32.mxu0 0.0
    %1305 = vmatmul.mubr.f32.gmra.mrb[0].mxu0 %v493
    %v1306 = vpop.f32.mrb[0].mxu0
    %v1307 = vadd.f32 %v237, %v1306
    %v1308 = vpop.f32.mrb[0].mxu0
    %1309 = vmatprep.mubr.f32.mxu0 0.0
    %1310 = vmatmul.mubr.f32.gmra.mrb[0].mxu0 %v496
    %v1311 = vpop.f32.mrb[0].mxu0
    %v1312 = vadd.f32 %v237, %v1311
    %v1313 = vpop.f32.mrb[0].mxu0
    %1314 = vmatprep.mubr.f32.mxu0 0.0
    %1315 = vmatmul.mubr.f32.gmra.mrb[0].mxu0 %v499
    %v1316 = vpop.f32.mrb[0].mxu0
    %v1317 = vadd.f32 %v237, %v1316
    %v1318 = vpop.f32.mrb[0].mxu0
    %1319 = vmatprep.mubr.f32.mxu0 0.0
    %1320 = vmatmul.mubr.f32.gmra.mrb[0].mxu0 %v502
    %v1321 = vpop.f32.mrb[0].mxu0
    %v1322 = vadd.f32 %v237, %v1321
    %v1323 = vpop.f32.mrb[0].mxu0
    %1324 = vmatprep.mubr.f32.mxu0 0.0
    %1325 = vmatmul.mubr.f32.gmra.mrb[0].mxu0 %v505
    %v1326 = vpop.f32.mrb[0].mxu0
    %v1327 = vadd.f32 %v237, %v1326
    %v1328 = vpop.f32.mrb[0].mxu0
    %1329 = vmatprep.mubr.f32.mxu0 0.0
    %1330 = vmatmul.mubr.f32.gmra.mrb[0].mxu0 %v508
    %v1331 = vpop.f32.mrb[0].mxu0
    %v1332 = vadd.f32 %v237, %v1331
    %v1333 = vpop.f32.mrb[0].mxu0
    %1334 = vmatprep.mubr.f32.mxu0 0.0
    %1335 = vmatmul.mubr.f32.gmra.mrb[0].mxu0 %v511
    %v1336 = vpop.f32.mrb[0].mxu0
    %v1337 = vadd.f32 %v237, %v1336
    %v1338 = vpop.f32.mrb[0].mxu0
    %1339 = vmatprep.mubr.f32.mxu0 0.0
    %1340 = vmatmul.mubr.f32.gmra.mrb[0].mxu0 %v514
    %v1341 = vpop.f32.mrb[0].mxu0
    %v1342 = vadd.f32 %v237, %v1341
    %v1343 = vpop.f32.mrb[0].mxu0
    %1344 = vmatprep.mubr.f32.mxu0 0.0
    %1345 = vmatmul.mubr.f32.gmra.mrb[0].mxu0 %v517
    %v1346 = vpop.f32.mrb[0].mxu0
    %v1347 = vadd.f32 %v237, %v1346
    %v1348 = vpop.f32.mrb[0].mxu0
    %1349 = vmatprep.mubr.f32.mxu0 0.0
    %1350 = vmatmul.mubr.f32.gmra.mrb[0].mxu0 %v520
    %v1351 = vpop.f32.mrb[0].mxu0
    %v1352 = vadd.f32 %v237, %v1351
    %v1353 = vpop.f32.mrb[0].mxu0
    %1354 = vmatprep.mubr.f32.mxu0 0.0
    %1355 = vmatmul.mubr.f32.gmra.mrb[0].mxu0 %v523
    %v1356 = vpop.f32.mrb[0].mxu0
    %v1357 = vadd.f32 %v237, %v1356
    %v1358 = vpop.f32.mrb[0].mxu0
    %1359 = vmatprep.mubr.f32.mxu0 0.0
    %1360 = vmatmul.mubr.f32.gmra.mrb[0].mxu0 %v526
    %v1361 = vpop.f32.mrb[0].mxu0
    %v1362 = vadd.f32 %v237, %v1361
    %v1363 = vpop.f32.mrb[0].mxu0
    %1364 = vmatprep.mubr.f32.mxu0 0.0
    %1365 = vmatmul.mubr.f32.gmra.mrb[0].mxu0 %v529
    %v1366 = vpop.f32.mrb[0].mxu0
    %v1367 = vadd.f32 %v237, %v1366
    %v1368 = vpop.f32.mrb[0].mxu0
    %1369 = vmatprep.mubr.f32.mxu0 0.0
    %1370 = vmatmul.mubr.f32.gmra.mrb[0].mxu0 %v532
    %v1371 = vpop.f32.mrb[0].mxu0
    %v1372 = vadd.f32 %v237, %v1371
    %v1373 = vpop.f32.mrb[0].mxu0
    %1374 = vmatprep.mubr.f32.mxu0 0.0
    %1375 = vmatmul.mubr.f32.gmra.mrb[0].mxu0 %v535
    %v1376 = vpop.f32.mrb[0].mxu0
    %v1377 = vadd.f32 %v237, %v1376
    %v1378 = vpop.f32.mrb[0].mxu0
    %1379 = vmatprep.mubr.f32.mxu0 0.0
    %1380 = vmatmul.mubr.f32.gmra.mrb[0].mxu0 %v538
    %v1381 = vpop.f32.mrb[0].mxu0
    %v1382 = vadd.f32 %v237, %v1381
    %v1383 = vpop.f32.mrb[0].mxu0
    %1384 = vmatprep.mubr.f32.mxu0 0.0
    %1385 = vmatmul.mubr.f32.gmra.mrb[0].mxu0 %v541
    %v1386 = vpop.f32.mrb[0].mxu0
    %v1387 = vadd.f32 %v237, %v1386
    %v1388 = vpop.f32.mrb[0].mxu0
    %1389 = vmatprep.mubr.f32.mxu0 0.0
    %1390 = vmatmul.mubr.f32.gmra.mrb[0].mxu0 %v544
    %v1391 = vpop.f32.mrb[0].mxu0
    %v1392 = vadd.f32 %v237, %v1391
    %v1393 = vpop.f32.mrb[0].mxu0
    %1394 = vmatprep.mubr.f32.mxu0 0.0
    %1395 = vmatmul.mubr.f32.gmra.mrb[0].mxu0 %v547
    %v1396 = vpop.f32.mrb[0].mxu0
    %v1397 = vadd.f32 %v237, %v1396
    %v1398 = vpop.f32.mrb[0].mxu0
    %1399 = vmatprep.mubr.f32.mxu0 0.0
    %1400 = vmatmul.mubr.f32.gmra.mrb[0].mxu0 %v550
    %v1401 = vpop.f32.mrb[0].mxu0
    %v1402 = vadd.f32 %v237, %v1401
    %v1403 = vpop.f32.mrb[0].mxu0
    %1404 = vmatprep.mubr.f32.mxu0 0.0
    %1405 = vmatmul.mubr.f32.gmra.mrb[0].mxu0 %v553
    %v1406 = vpop.f32.mrb[0].mxu0
    %v1407 = vadd.f32 %v237, %v1406
    %v1408 = vpop.f32.mrb[0].mxu0
    %1409 = vmatprep.mubr.f32.mxu0 0.0
    %1410 = vmatmul.mubr.f32.gmra.mrb[0].mxu0 %v556
    %v1411 = vpop.f32.mrb[0].mxu0
    %v1412 = vadd.f32 %v237, %v1411
    %v1413 = vpop.f32.mrb[0].mxu0
    %1414 = vmatprep.mubr.f32.mxu0 0.0
    %1415 = vmatmul.mubr.f32.gmra.mrb[0].mxu0 %v559
    %v1416 = vpop.f32.mrb[0].mxu0
    %v1417 = vadd.f32 %v237, %v1416
    %v1418 = vpop.f32.mrb[0].mxu0
    %1419 = vmatprep.mubr.f32.mxu0 0.0
    %1420 = vmatmul.mubr.f32.gmra.mrb[0].mxu0 %v562
    %v1421 = vpop.f32.mrb[0].mxu0
    %v1422 = vadd.f32 %v237, %v1421
    %v1423 = vpop.f32.mrb[0].mxu0
    %1424 = vmatprep.mubr.f32.mxu0 0.0
    %1425 = vmatmul.mubr.f32.gmra.mrb[0].mxu0 %v565
    %v1426 = vpop.f32.mrb[0].mxu0
    %v1427 = vadd.f32 %v237, %v1426
    %v1428 = vpop.f32.mrb[0].mxu0
    %1429 = vmatprep.mubr.f32.mxu0 0.0
    %1430 = vmatmul.mubr.f32.gmra.mrb[0].mxu0 %v568
    %v1431 = vpop.f32.mrb[0].mxu0
    %v1432 = vadd.f32 %v237, %v1431
    %v1433 = vpop.f32.mrb[0].mxu0
    %1434 = vmatprep.mubr.f32.mxu0 0.0
    %1435 = vmatmul.mubr.f32.gmra.mrb[0].mxu0 %v571
    %v1436 = vpop.f32.mrb[0].mxu0
    %v1437 = vadd.f32 %v237, %v1436
    %v1438 = vpop.f32.mrb[0].mxu0
    %1439 = vmatprep.mubr.f32.mxu0 0.0
    %1440 = vmatmul.mubr.f32.gmra.mrb[0].mxu0 %v574
    %v1441 = vpop.f32.mrb[0].mxu0
    %v1442 = vadd.f32 %v237, %v1441
    %v1443 = vpop.f32.mrb[0].mxu0
    %1444 = vmatprep.mubr.f32.mxu0 0.0
    %1445 = vmatmul.mubr.f32.gmra.mrb[0].mxu0 %v577
    %v1446 = vpop.f32.mrb[0].mxu0
    %v1447 = vadd.f32 %v237, %v1446
    %v1448 = vpop.f32.mrb[0].mxu0
    %1449 = vmatprep.mubr.f32.mxu0 0.0
    %1450 = vmatmul.mubr.f32.gmra.mrb[0].mxu0 %v580
    %v1451 = vpop.f32.mrb[0].mxu0
    %v1452 = vadd.f32 %v237, %v1451
    %v1453 = vpop.f32.mrb[0].mxu0
    %1454 = vmatprep.mubr.f32.mxu0 0.0
    %1455 = vmatmul.mubr.f32.gmra.mrb[0].mxu0 %v583
    %v1456 = vpop.f32.mrb[0].mxu0
    %v1457 = vadd.f32 %v237, %v1456
    %v1458 = vpop.f32.mrb[0].mxu0
    %1459 = vmatprep.mubr.f32.mxu0 0.0
    %1460 = vmatmul.mubr.f32.gmra.mrb[0].mxu0 %v586
    %v1461 = vpop.f32.mrb[0].mxu0
    %v1462 = vadd.f32 %v237, %v1461
    %v1463 = vpop.f32.mrb[0].mxu0
    %1464 = vmatprep.mubr.f32.mxu0 0.0
    %1465 = vmatmul.mubr.f32.gmra.mrb[0].mxu0 %v589
    %v1466 = vpop.f32.mrb[0].mxu0
    %v1467 = vadd.f32 %v237, %v1466
    %v1468 = vpop.f32.mrb[0].mxu0
    %1469 = vmatprep.mubr.f32.mxu0 0.0
    %1470 = vmatmul.mubr.f32.gmra.mrb[0].mxu0 %v592
    %v1471 = vpop.f32.mrb[0].mxu0
    %v1472 = vadd.f32 %v237, %v1471
    %v1473 = vpop.f32.mrb[0].mxu0
    %1474 = vmatprep.mubr.f32.mxu0 0.0
    %1475 = vmatmul.mubr.f32.gmra.mrb[0].mxu0 %v595
    %v1476 = vpop.f32.mrb[0].mxu0
    %v1477 = vadd.f32 %v237, %v1476
    %v1478 = vpop.f32.mrb[0].mxu0
    %1479 = vmatprep.mubr.f32.mxu0 0.0
    %1480 = vmatmul.mubr.f32.gmra.mrb[0].mxu0 %v598
    %v1481 = vpop.f32.mrb[0].mxu0
    %v1482 = vadd.f32 %v237, %v1481
    %v1483 = vpop.f32.mrb[0].mxu0
    %1484 = vmatprep.mubr.f32.mxu0 0.0
    %1485 = vmatmul.mubr.f32.gmra.mrb[0].mxu0 %v601
    %v1486 = vpop.f32.mrb[0].mxu0
    %v1487 = vadd.f32 %v237, %v1486
    %v1488 = vpop.f32.mrb[0].mxu0
    %1489 = vmatprep.mubr.f32.mxu0 0.0
    %1490 = vmatmul.mubr.f32.gmra.mrb[0].mxu0 %v604
    %v1491 = vpop.f32.mrb[0].mxu0
    %v1492 = vadd.f32 %v237, %v1491
    %v1493 = vpop.f32.mrb[0].mxu0
    %1494 = vmatprep.mubr.f32.mxu0 0.0
    %1495 = vmatmul.mubr.f32.gmra.mrb[0].mxu0 %v607
    %v1496 = vpop.f32.mrb[0].mxu0
    %v1497 = vadd.f32 %v237, %v1496
    %v1498 = vpop.f32.mrb[0].mxu0
    %1499 = vmatprep.mubr.f32.mxu0 0.0
    %1500 = vmatmul.mubr.f32.gmra.mrb[0].mxu0 %v610
    %v1501 = vpop.f32.mrb[0].mxu0
    %v1502 = vadd.f32 %v237, %v1501
    %v1503 = vpop.f32.mrb[0].mxu0
    %1504 = vmatprep.mubr.f32.mxu0 0.0
    %1505 = vmatmul.mubr.f32.gmra.mrb[0].mxu0 %v613
    %v1506 = vpop.f32.mrb[0].mxu0
    %v1507 = vadd.f32 %v237, %v1506
    %v1508 = vpop.f32.mrb[0].mxu0
    %1509 = vmatprep.mubr.f32.mxu0 0.0
    %1510 = vmatmul.mubr.f32.gmra.mrb[0].mxu0 %v616
    %v1511 = vpop.f32.mrb[0].mxu0
    %v1512 = vadd.f32 %v237, %v1511
    %v1513 = vpop.f32.mrb[0].mxu0
    %1514 = vmatprep.mubr.f32.mxu0 0.0
    %1515 = vmatmul.mubr.f32.gmra.mrb[0].mxu0 %v619
    %v1516 = vpop.f32.mrb[0].mxu0
    %v1517 = vadd.f32 %v237, %v1516
    %v1518 = vpop.f32.mrb[0].mxu0
    %1519 = vmatprep.mubr.f32.mxu0 0.0
    %1520 = vmatmul.mubr.f32.gmra.mrb[0].mxu0 %v622
    %v1521 = vpop.f32.mrb[0].mxu0
    %v1522 = vadd.f32 %v237, %v1521
    %v1523 = vpop.f32.mrb[0].mxu0
    %1524 = vmatprep.mubr.f32.mxu0 0.0
    %1525 = vmatmul.mubr.f32.gmra.mrb[0].mxu0 %v625
    %v1526 = vpop.f32.mrb[0].mxu0
    %v1527 = vadd.f32 %v237, %v1526
    %v1528 = vpop.f32.mrb[0].mxu0
    %1529 = vmatprep.mubr.f32.mxu0 0.0
    %1530 = vmatmul.mubr.f32.gmra.mrb[0].mxu0 %v628
    %v1531 = vpop.f32.mrb[0].mxu0
    %v1532 = vadd.f32 %v237, %v1531
    %v1533 = vpop.f32.mrb[0].mxu0
    %1534 = vmatprep.mubr.f32.mxu0 0.0
    %1535 = vmatmul.mubr.f32.gmra.mrb[0].mxu0 %v631
    %v1536 = vpop.f32.mrb[0].mxu0
    %v1537 = vadd.f32 %v237, %v1536
    %v1538 = vpop.f32.mrb[0].mxu0
    %1539 = vmatprep.mubr.f32.mxu0 0.0
    %1540 = vmatmul.mubr.f32.gmra.mrb[0].mxu0 %v634
    %v1541 = vpop.f32.mrb[0].mxu0
    %v1542 = vadd.f32 %v237, %v1541
    %v1543 = vpop.f32.mrb[0].mxu0
    %1544 = vmatprep.mubr.f32.mxu0 0.0
    %1545 = vmatmul.mubr.f32.gmra.mrb[0].mxu0 %v637
    %v1546 = vpop.f32.mrb[0].mxu0
    %v1547 = vadd.f32 %v237, %v1546
    %v1548 = vpop.f32.mrb[0].mxu0
    %1549 = vmatprep.mubr.f32.mxu0 0.0
    %1550 = vmatmul.mubr.f32.gmra.mrb[0].mxu0 %v640
    %v1551 = vpop.f32.mrb[0].mxu0
    %v1552 = vadd.f32 %v237, %v1551
    %v1553 = vpop.f32.mrb[0].mxu0
    %1554 = vmatprep.mubr.f32.mxu0 0.0
    %1555 = vmatmul.mubr.f32.gmra.mrb[0].mxu0 %v643
    %v1556 = vpop.f32.mrb[0].mxu0
    %v1557 = vadd.f32 %v237, %v1556
    %v1558 = vpop.f32.mrb[0].mxu0
    %1559 = vmatprep.mubr.f32.mxu0 0.0
    %1560 = vmatmul.mubr.f32.gmra.mrb[0].mxu0 %v646
    %v1561 = vpop.f32.mrb[0].mxu0
    %v1562 = vadd.f32 %v237, %v1561
    %v1563 = vpop.f32.mrb[0].mxu0
    %1564 = vmatprep.mubr.f32.mxu0 0.0
    %1565 = vmatmul.mubr.f32.gmra.mrb[0].mxu0 %v649
    %v1566 = vpop.f32.mrb[0].mxu0
    %v1567 = vadd.f32 %v237, %v1566
    %v1568 = vpop.f32.mrb[0].mxu0
    %1569 = vmatprep.mubr.f32.mxu0 0.0
    %1570 = vmatmul.mubr.f32.gmra.mrb[0].mxu0 %v652
    %v1571 = vpop.f32.mrb[0].mxu0
    %v1572 = vadd.f32 %v237, %v1571
    %v1573 = vpop.f32.mrb[0].mxu0
    %1574 = vmatprep.mubr.f32.mxu0 0.0
    %1575 = vmatmul.mubr.f32.gmra.mrb[0].mxu0 %v655
    %v1576 = vpop.f32.mrb[0].mxu0
    %v1577 = vadd.f32 %v237, %v1576
    %v1578 = vpop.f32.mrb[0].mxu0
    %1579 = vmatprep.mubr.f32.mxu0 0.0
    %1580 = vmatmul.mubr.f32.gmra.mrb[0].mxu0 %v658
    %v1581 = vpop.f32.mrb[0].mxu0
    %v1582 = vadd.f32 %v237, %v1581
    %v1583 = vpop.f32.mrb[0].mxu0
    %1584 = vmatprep.mubr.f32.mxu0 0.0
    %1585 = vmatmul.mubr.f32.gmra.mrb[0].mxu0 %v661
    %v1586 = vpop.f32.mrb[0].mxu0
    %v1587 = vadd.f32 %v237, %v1586
    %v1588 = vpop.f32.mrb[0].mxu0
    %1589 = vmatprep.mubr.f32.mxu0 0.0
    %1590 = vmatmul.mubr.f32.gmra.mrb[0].mxu0 %v664
    %v1591 = vpop.f32.mrb[0].mxu0
    %v1592 = vadd.f32 %v237, %v1591
    %v1593 = vpop.f32.mrb[0].mxu0
    %1594 = vmatprep.mubr.f32.mxu0 0.0
    %1595 = vmatmul.mubr.f32.gmra.mrb[0].mxu0 %v667
    %v1596 = vpop.f32.mrb[0].mxu0
    %v1597 = vadd.f32 %v237, %v1596
    %v1598 = vpop.f32.mrb[0].mxu0
    %1599 = vmatprep.mubr.f32.mxu0 0.0
    %1600 = vmatmul.mubr.f32.gmra.mrb[0].mxu0 %v670
    %v1601 = vpop.f32.mrb[0].mxu0
    %v1602 = vadd.f32 %v237, %v1601
    %v1603 = vpop.f32.mrb[0].mxu0
    %1604 = vmatprep.mubr.f32.mxu0 0.0
    %1605 = vmatmul.mubr.f32.gmra.mrb[0].mxu0 %v673
    %v1606 = vpop.f32.mrb[0].mxu0
    %v1607 = vadd.f32 %v237, %v1606
    %v1608 = vpop.f32.mrb[0].mxu0
    %1609 = vmatprep.mubr.f32.mxu0 0.0
    %1610 = vmatmul.mubr.f32.gmra.mrb[0].mxu0 %v676
    %v1611 = vpop.f32.mrb[0].mxu0
    %v1612 = vadd.f32 %v237, %v1611
    %v1613 = vpop.f32.mrb[0].mxu0
    %1614 = vmatprep.mubr.f32.mxu0 0.0
    %1615 = vmatmul.mubr.f32.gmra.mrb[0].mxu0 %v679
    %v1616 = vpop.f32.mrb[0].mxu0
    %v1617 = vadd.f32 %v237, %v1616
    %v1618 = vpop.f32.mrb[0].mxu0
    %1619 = vmatprep.mubr.f32.mxu0 0.0
    %1620 = vmatmul.mubr.f32.gmra.mrb[0].mxu0 %v682
    %v1621 = vpop.f32.mrb[0].mxu0
    %v1622 = vadd.f32 %v237, %v1621
    %v1623 = vpop.f32.mrb[0].mxu0
    %1624 = vmatprep.mubr.f32.mxu0 0.0
    %1625 = vmatmul.mubr.f32.gmra.mrb[0].mxu0 %v685
    %v1626 = vpop.f32.mrb[0].mxu0
    %v1627 = vadd.f32 %v237, %v1626
    %v1628 = vpop.f32.mrb[0].mxu0
    %1629 = vmatprep.mubr.f32.mxu0 0.0
    %1630 = vmatmul.mubr.f32.gmra.mrb[0].mxu0 %v688
    %v1631 = vpop.f32.mrb[0].mxu0
    %v1632 = vadd.f32 %v237, %v1631
    %v1633 = vpop.f32.mrb[0].mxu0
    %1634 = vmatprep.mubr.f32.mxu0 0.0
    %1635 = vmatmul.mubr.f32.gmra.mrb[0].mxu0 %v691
    %v1636 = vpop.f32.mrb[0].mxu0
    %v1637 = vadd.f32 %v237, %v1636
    %v1638 = vpop.f32.mrb[0].mxu0
    %1639 = vmatprep.mubr.f32.mxu0 0.0
    %1640 = vmatmul.mubr.f32.gmra.mrb[0].mxu0 %v694
    %v1641 = vpop.f32.mrb[0].mxu0
    %v1642 = vadd.f32 %v237, %v1641
    %v1643 = vpop.f32.mrb[0].mxu0
    %1644 = vmatprep.mubr.f32.mxu0 0.0
    %1645 = vmatmul.mubr.f32.gmra.mrb[0].mxu0 %v697
    %v1646 = vpop.f32.mrb[0].mxu0
    %v1647 = vadd.f32 %v237, %v1646
    %v1648 = vpop.f32.mrb[0].mxu0
    %1649 = vmatprep.mubr.f32.mxu0 0.0
    %1650 = vmatmul.mubr.f32.gmra.mrb[0].mxu0 %v700
    %v1651 = vpop.f32.mrb[0].mxu0
    %v1652 = vadd.f32 %v237, %v1651
    %v1653 = vpop.f32.mrb[0].mxu0
    %1654 = vmatprep.mubr.f32.mxu0 0.0
    %1655 = vmatmul.mubr.f32.gmra.mrb[0].mxu0 %v703
    %v1656 = vpop.f32.mrb[0].mxu0
    %v1657 = vadd.f32 %v237, %v1656
    %v1658 = vpop.f32.mrb[0].mxu0
    %1659 = vmatprep.mubr.f32.mxu0 0.0
    %1660 = vmatmul.mubr.f32.gmra.mrb[0].mxu0 %v706
    %v1661 = vpop.f32.mrb[0].mxu0
    %v1662 = vadd.f32 %v237, %v1661
    %v1663 = vpop.f32.mrb[0].mxu0
    %1664 = vmatprep.mubr.f32.mxu0 0.0
    %1665 = vmatmul.mubr.f32.gmra.mrb[0].mxu0 %v709
    %v1666 = vpop.f32.mrb[0].mxu0
    %v1667 = vadd.f32 %v237, %v1666
    %v1668 = vpop.f32.mrb[0].mxu0
    %1669 = vmatprep.mubr.f32.mxu0 0.0
    %1670 = vmatmul.mubr.f32.gmra.mrb[0].mxu0 %v712
    %v1671 = vpop.f32.mrb[0].mxu0
    %v1672 = vadd.f32 %v237, %v1671
    %v1673 = vpop.f32.mrb[0].mxu0
    %1674 = vmatprep.mubr.f32.mxu0 0.0
    %1675 = vmatmul.mubr.f32.gmra.mrb[0].mxu0 %v715
    %v1676 = vpop.f32.mrb[0].mxu0
    %v1677 = vadd.f32 %v237, %v1676
    %v1678 = vpop.f32.mrb[0].mxu0
    %1679 = vmatprep.mubr.f32.mxu0 0.0
    %1680 = vmatmul.mubr.f32.gmra.mrb[0].mxu0 %v718
    %v1681 = vpop.f32.mrb[0].mxu0
    %v1682 = vadd.f32 %v237, %v1681
    %v1683 = vpop.f32.mrb[0].mxu0
    %1684 = vmatprep.mubr.f32.mxu0 0.0
    %1685 = vmatmul.mubr.f32.gmra.mrb[0].mxu0 %v721
    %v1686 = vpop.f32.mrb[0].mxu0
    %v1687 = vadd.f32 %v237, %v1686
    %v1688 = vpop.f32.mrb[0].mxu0
    %1689 = vmatprep.mubr.f32.mxu0 0.0
    %1690 = vmatmul.mubr.f32.gmra.mrb[0].mxu0 %v724
    %v1691 = vpop.f32.mrb[0].mxu0
    %v1692 = vadd.f32 %v237, %v1691
    %v1693 = vpop.f32.mrb[0].mxu0
    %1694 = vmatprep.mubr.f32.mxu0 0.0
    %1695 = vmatmul.mubr.f32.gmra.mrb[0].mxu0 %v727
    %v1696 = vpop.f32.mrb[0].mxu0
    %v1697 = vadd.f32 %v237, %v1696
    %v1698 = vpop.f32.mrb[0].mxu0
    %1699 = vmatprep.mubr.f32.mxu0 0.0
    %1700 = vmatmul.mubr.f32.gmra.mrb[0].mxu0 %v730
    %v1701 = vpop.f32.mrb[0].mxu0
    %v1702 = vadd.f32 %v237, %v1701
    %v1703 = vpop.f32.mrb[0].mxu0
    %1704 = vmatprep.mubr.f32.mxu0 0.0
    %1705 = vmatmul.mubr.f32.gmra.mrb[0].mxu0 %v733
    %v1706 = vpop.f32.mrb[0].mxu0
    %v1707 = vadd.f32 %v237, %v1706
    %v1708 = vpop.f32.mrb[0].mxu0
    %1709 = vmatprep.mubr.f32.mxu0 0.0
    %1710 = vmatmul.mubr.f32.gmra.mrb[0].mxu0 %v736
    %v1711 = vpop.f32.mrb[0].mxu0
    %v1712 = vadd.f32 %v237, %v1711
    %v1713 = vpop.f32.mrb[0].mxu0
    %1714 = vmatprep.mubr.f32.mxu0 0.0
    %1715 = vmatmul.mubr.f32.gmra.mrb[0].mxu0 %v739
    %v1716 = vpop.f32.mrb[0].mxu0
    %v1717 = vadd.f32 %v237, %v1716
    %v1718 = vpop.f32.mrb[0].mxu0
    %1719 = vmatprep.mubr.f32.mxu0 0.0
    %1720 = vmatmul.mubr.f32.gmra.mrb[0].mxu0 %v742
    %v1721 = vpop.f32.mrb[0].mxu0
    %v1722 = vadd.f32 %v237, %v1721
    %v1723 = vpop.f32.mrb[0].mxu0
    %1724 = vmatprep.mubr.f32.mxu0 0.0
    %1725 = vmatmul.mubr.f32.gmra.mrb[0].mxu0 %v745
    %v1726 = vpop.f32.mrb[0].mxu0
    %v1727 = vadd.f32 %v237, %v1726
    %v1728 = vpop.f32.mrb[0].mxu0
    %1729 = vmatprep.mubr.f32.mxu0 0.0
    %1730 = vmatmul.mubr.f32.gmra.mrb[0].mxu0 %v748
    %v1731 = vpop.f32.mrb[0].mxu0
    %v1732 = vadd.f32 %v237, %v1731
    %v1733 = vpop.f32.mrb[0].mxu0
    %1734 = vmatprep.mubr.f32.mxu0 0.0
    %1735 = vmatmul.mubr.f32.gmra.mrb[0].mxu0 %v751
    %v1736 = vpop.f32.mrb[0].mxu0
    %v1737 = vadd.f32 %v237, %v1736
    %v1738 = vpop.f32.mrb[0].mxu0
    %1739 = vmatprep.mubr.f32.mxu0 0.0
    %1740 = vmatmul.mubr.f32.gmra.mrb[0].mxu0 %v754
    %v1741 = vpop.f32.mrb[0].mxu0
    %v1742 = vadd.f32 %v237, %v1741
    %v1743 = vpop.f32.mrb[0].mxu0
    %1744 = vmatprep.mubr.f32.mxu0 0.0
    %1745 = vmatmul.mubr.f32.gmra.mrb[0].mxu0 %v757
    %v1746 = vpop.f32.mrb[0].mxu0
    %v1747 = vadd.f32 %v237, %v1746
    %v1748 = vpop.f32.mrb[0].mxu0
    %1749 = vmatprep.mubr.f32.mxu0 0.0
    %1750 = vmatmul.mubr.f32.gmra.mrb[0].mxu0 %v760
    %v1751 = vpop.f32.mrb[0].mxu0
    %v1752 = vadd.f32 %v237, %v1751
    %v1753 = vpop.f32.mrb[0].mxu0
    %1754 = vmatprep.mubr.f32.mxu0 0.0
    %1755 = vmatmul.mubr.f32.gmra.mrb[0].mxu0 %v763
    %v1756 = vpop.f32.mrb[0].mxu0
    %v1757 = vadd.f32 %v237, %v1756
    %v1758 = vpop.f32.mrb[0].mxu0
    %1759 = vmatprep.mubr.f32.mxu0 0.0
    %1760 = vmatmul.mubr.f32.gmra.mrb[0].mxu0 %v766
    %v1761 = vpop.f32.mrb[0].mxu0
    %v1762 = vadd.f32 %v237, %v1761
    %v1763 = vpop.f32.mrb[0].mxu0
    %1764 = vmatprep.mubr.f32.mxu0 0.0
    %1765 = vmatmul.mubr.f32.gmra.mrb[0].mxu0 %v769
    %v1766 = vpop.f32.mrb[0].mxu0
    %v1767 = vadd.f32 %v237, %v1766
    %v1768 = vpop.f32.mrb[0].mxu0
    %1769 = vmatprep.mubr.f32.mxu0 0.0
    %1770 = vmatmul.mubr.f32.gmra.mrb[0].mxu0 %v772
    %v1771 = vpop.f32.mrb[0].mxu0
    %v1772 = vadd.f32 %v237, %v1771
    %v1773 = vpop.f32.mrb[0].mxu0
    %1774 = vmatprep.mubr.f32.mxu0 0.0
    %1775 = vmatmul.mubr.f32.gmra.mrb[0].mxu0 %v775
    %v1776 = vpop.f32.mrb[0].mxu0
    %v1777 = vadd.f32 %v237, %v1776
    %v1778 = vpop.f32.mrb[0].mxu0
    %1779 = vmatprep.mubr.f32.mxu0 0.0
    %1780 = vmatmul.mubr.f32.gmra.mrb[0].mxu0 %v778
    %v1781 = vpop.f32.mrb[0].mxu0
    %v1782 = vadd.f32 %v237, %v1781
    %v1783 = vpop.f32.mrb[0].mxu0
    %1784 = vmatprep.mubr.f32.mxu0 0.0
    %1785 = vmatmul.mubr.f32.gmra.mrb[0].mxu0 %v781
    %v1786 = vpop.f32.mrb[0].mxu0
    %v1787 = vadd.f32 %v237, %v1786
    %v1788 = vpop.f32.mrb[0].mxu0
    %1789 = vmatprep.mubr.f32.mxu0 0.0
    %1790 = vmatmul.mubr.f32.gmra.mrb[0].mxu0 %v784
    %v1791 = vpop.f32.mrb[0].mxu0
    %v1792 = vadd.f32 %v237, %v1791
    %v1793 = vpop.f32.mrb[0].mxu0
    %1794 = vmatprep.mubr.f32.mxu0 0.0
    %1795 = vmatmul.mubr.f32.gmra.mrb[0].mxu0 %v787
    %v1796 = vpop.f32.mrb[0].mxu0
    %v1797 = vadd.f32 %v237, %v1796
    %v1798 = vpop.f32.mrb[0].mxu0
    %1799 = vmatprep.mubr.f32.mxu0 0.0
    %1800 = vmatmul.mubr.f32.gmra.mrb[0].mxu0 %v790
    %v1801 = vpop.f32.mrb[0].mxu0
    %v1802 = vadd.f32 %v237, %v1801
    %v1803 = vpop.f32.mrb[0].mxu0
    %1804 = vmatprep.mubr.f32.mxu0 0.0
    %1805 = vmatmul.mubr.f32.gmra.mrb[0].mxu0 %v793
    %v1806 = vpop.f32.mrb[0].mxu0
    %v1807 = vadd.f32 %v237, %v1806
    %v1808 = vpop.f32.mrb[0].mxu0
    %1809 = vmatprep.mubr.f32.mxu0 0.0
    %1810 = vmatmul.mubr.f32.gmra.mrb[0].mxu0 %v796
    %v1811 = vpop.f32.mrb[0].mxu0
    %v1812 = vadd.f32 %v237, %v1811
    %v1813 = vpop.f32.mrb[0].mxu0
    %1814 = vmatprep.mubr.f32.mxu0 0.0
    %1815 = vmatmul.mubr.f32.gmra.mrb[0].mxu0 %v799
    %v1816 = vpop.f32.mrb[0].mxu0
    %v1817 = vadd.f32 %v237, %v1816
    %v1818 = vpop.f32.mrb[0].mxu0
    %1819 = vmatprep.mubr.f32.mxu0 0.0
    %1820 = vmatmul.mubr.f32.gmra.mrb[0].mxu0 %v802
    %v1821 = vpop.f32.mrb[0].mxu0
    %v1822 = vadd.f32 %v237, %v1821
    %v1823 = vpop.f32.mrb[0].mxu0
    %1824 = vmatprep.mubr.f32.mxu0 0.0
    %1825 = vmatmul.mubr.f32.gmra.mrb[0].mxu0 %v805
    %v1826 = vpop.f32.mrb[0].mxu0
    %v1827 = vadd.f32 %v237, %v1826
    %v1828 = vpop.f32.mrb[0].mxu0
    %1829 = vmatprep.mubr.f32.mxu0 0.0
    %1830 = vmatmul.mubr.f32.gmra.mrb[0].mxu0 %v808
    %v1831 = vpop.f32.mrb[0].mxu0
    %v1832 = vadd.f32 %v237, %v1831
    %v1833 = vpop.f32.mrb[0].mxu0
    %1834 = vmatprep.mubr.f32.mxu0 0.0
    %1835 = vmatmul.mubr.f32.gmra.mrb[0].mxu0 %v811
    %v1836 = vpop.f32.mrb[0].mxu0
    %v1837 = vadd.f32 %v237, %v1836
    %v1838 = vpop.f32.mrb[0].mxu0
    %1839 = vmatprep.mubr.f32.mxu0 0.0
    %1840 = vmatmul.mubr.f32.gmra.mrb[0].mxu0 %v814
    %v1841 = vpop.f32.mrb[0].mxu0
    %v1842 = vadd.f32 %v237, %v1841
    %v1843 = vpop.f32.mrb[0].mxu0
    %1844 = vdwg.mxu0
    %v1845 = vmax.f32 %v887, %v1127
    %v1846 = vmax.f32 %v892, %v1132
    %v1847 = vmax.f32 %v897, %v1137
    %v1848 = vmax.f32 %v902, %v1142
    %v1849 = vmax.f32 %v907, %v1147
    %v1850 = vmax.f32 %v912, %v1152
    %v1851 = vmax.f32 %v917, %v1157
    %v1852 = vmax.f32 %v922, %v1162
    %v1853 = vmax.f32 %v927, %v1167
    %v1854 = vmax.f32 %v932, %v1172
    %v1855 = vmax.f32 %v937, %v1177
    %v1856 = vmax.f32 %v942, %v1182
    %v1857 = vmax.f32 %v947, %v1187
    %v1858 = vmax.f32 %v952, %v1192
    %v1859 = vmax.f32 %v957, %v1197
    %v1860 = vmax.f32 %v962, %v1202
    %v1861 = vmax.f32 %v967, %v1207
    %v1862 = vmax.f32 %v972, %v1212
    %v1863 = vmax.f32 %v977, %v1217
    %v1864 = vmax.f32 %v982, %v1222
    %v1865 = vmax.f32 %v987, %v1227
    %v1866 = vmax.f32 %v992, %v1232
    %v1867 = vmax.f32 %v997, %v1237
    %v1868 = vmax.f32 %v1002, %v1242
    %v1869 = vmax.f32 %v1007, %v1247
    %v1870 = vmax.f32 %v1012, %v1252
    %v1871 = vmax.f32 %v1017, %v1257
    %v1872 = vmax.f32 %v1022, %v1262
    %v1873 = vmax.f32 %v1027, %v1267
    %v1874 = vmax.f32 %v1032, %v1272
    %v1875 = vmax.f32 %v1037, %v1277
    %v1876 = vmax.f32 %v1042, %v1282
    %v1877 = vmax.f32 %v1047, %v1287
    %v1878 = vmax.f32 %v1052, %v1292
    %v1879 = vmax.f32 %v1057, %v1297
    %v1880 = vmax.f32 %v1062, %v1302
    %v1881 = vmax.f32 %v1067, %v1307
    %v1882 = vmax.f32 %v1072, %v1312
    %v1883 = vmax.f32 %v1077, %v1317
    %v1884 = vmax.f32 %v1082, %v1322
    %v1885 = vmax.f32 %v1087, %v1327
    %v1886 = vmax.f32 %v1092, %v1332
    %v1887 = vmax.f32 %v1097, %v1337
    %v1888 = vmax.f32 %v1102, %v1342
    %v1889 = vmax.f32 %v1107, %v1347
    %v1890 = vmax.f32 %v1112, %v1352
    %v1891 = vmax.f32 %v1117, %v1357
    %v1892 = vmax.f32 %v1122, %v1362
    %v1893 = vmax.f32 %v1367, %v1607
    %v1894 = vmax.f32 %v1372, %v1612
    %v1895 = vmax.f32 %v1377, %v1617
    %v1896 = vmax.f32 %v1382, %v1622
    %v1897 = vmax.f32 %v1387, %v1627
    %v1898 = vmax.f32 %v1392, %v1632
    %v1899 = vmax.f32 %v1397, %v1637
    %v1900 = vmax.f32 %v1402, %v1642
    %v1901 = vmax.f32 %v1407, %v1647
    %v1902 = vmax.f32 %v1412, %v1652
    %v1903 = vmax.f32 %v1417, %v1657
    %v1904 = vmax.f32 %v1422, %v1662
    %v1905 = vmax.f32 %v1427, %v1667
    %v1906 = vmax.f32 %v1432, %v1672
    %v1907 = vmax.f32 %v1437, %v1677
    %v1908 = vmax.f32 %v1442, %v1682
    %v1909 = vmax.f32 %v1447, %v1687
    %v1910 = vmax.f32 %v1452, %v1692
    %v1911 = vmax.f32 %v1457, %v1697
    %v1912 = vmax.f32 %v1462, %v1702
    %v1913 = vmax.f32 %v1467, %v1707
    %v1914 = vmax.f32 %v1472, %v1712
    %v1915 = vmax.f32 %v1477, %v1717
    %v1916 = vmax.f32 %v1482, %v1722
    %v1917 = vmax.f32 %v1487, %v1727
    %v1918 = vmax.f32 %v1492, %v1732
    %v1919 = vmax.f32 %v1497, %v1737
    %v1920 = vmax.f32 %v1502, %v1742
    %v1921 = vmax.f32 %v1507, %v1747
    %v1922 = vmax.f32 %v1512, %v1752
    %v1923 = vmax.f32 %v1517, %v1757
    %v1924 = vmax.f32 %v1522, %v1762
    %v1925 = vmax.f32 %v1527, %v1767
    %v1926 = vmax.f32 %v1532, %v1772
    %v1927 = vmax.f32 %v1537, %v1777
    %v1928 = vmax.f32 %v1542, %v1782
    %v1929 = vmax.f32 %v1547, %v1787
    %v1930 = vmax.f32 %v1552, %v1792
    %v1931 = vmax.f32 %v1557, %v1797
    %v1932 = vmax.f32 %v1562, %v1802
    %v1933 = vmax.f32 %v1567, %v1807
    %v1934 = vmax.f32 %v1572, %v1812
    %v1935 = vmax.f32 %v1577, %v1817
    %v1936 = vmax.f32 %v1582, %v1822
    %v1937 = vmax.f32 %v1587, %v1827
    %v1938 = vmax.f32 %v1592, %v1832
    %v1939 = vmax.f32 %v1597, %v1837
    %v1940 = vmax.f32 %v1602, %v1842
    %v1941 = vmax.f32 %v1845, %v1893
    %v1942 = vmax.f32 %v1846, %v1894
    %v1943 = vmax.f32 %v1847, %v1895
    %v1944 = vmax.f32 %v1848, %v1896
    %v1945 = vmax.f32 %v1849, %v1897
    %v1946 = vmax.f32 %v1850, %v1898
    %v1947 = vmax.f32 %v1851, %v1899
    %v1948 = vmax.f32 %v1852, %v1900
    %v1949 = vmax.f32 %v1853, %v1901
    %v1950 = vmax.f32 %v1854, %v1902
    %v1951 = vmax.f32 %v1855, %v1903
    %v1952 = vmax.f32 %v1856, %v1904
    %v1953 = vmax.f32 %v1857, %v1905
    %v1954 = vmax.f32 %v1858, %v1906
    %v1955 = vmax.f32 %v1859, %v1907
    %v1956 = vmax.f32 %v1860, %v1908
    %v1957 = vmax.f32 %v1861, %v1909
    %v1958 = vmax.f32 %v1862, %v1910
    %v1959 = vmax.f32 %v1863, %v1911
    %v1960 = vmax.f32 %v1864, %v1912
    %v1961 = vmax.f32 %v1865, %v1913
    %v1962 = vmax.f32 %v1866, %v1914
    %v1963 = vmax.f32 %v1867, %v1915
    %v1964 = vmax.f32 %v1868, %v1916
    %v1965 = vmax.f32 %v1869, %v1917
    %v1966 = vmax.f32 %v1870, %v1918
    %v1967 = vmax.f32 %v1871, %v1919
    %v1968 = vmax.f32 %v1872, %v1920
    %v1969 = vmax.f32 %v1873, %v1921
    %v1970 = vmax.f32 %v1874, %v1922
    %v1971 = vmax.f32 %v1875, %v1923
    %v1972 = vmax.f32 %v1876, %v1924
    %v1973 = vmax.f32 %v1877, %v1925
    %v1974 = vmax.f32 %v1878, %v1926
    %v1975 = vmax.f32 %v1879, %v1927
    %v1976 = vmax.f32 %v1880, %v1928
    %v1977 = vmax.f32 %v1881, %v1929
    %v1978 = vmax.f32 %v1882, %v1930
    %v1979 = vmax.f32 %v1883, %v1931
    %v1980 = vmax.f32 %v1884, %v1932
    %v1981 = vmax.f32 %v1885, %v1933
    %v1982 = vmax.f32 %v1886, %v1934
    %v1983 = vmax.f32 %v1887, %v1935
    %v1984 = vmax.f32 %v1888, %v1936
    %v1985 = vmax.f32 %v1889, %v1937
    %v1986 = vmax.f32 %v1890, %v1938
    %v1987 = vmax.f32 %v1891, %v1939
    %v1988 = vmax.f32 %v1892, %v1940
    %v1989 = vmax.f32 %v1941, 0.0
    %v1990 = vmax.f32 %v1942, 0.0
    %v1991 = vmax.f32 %v1943, 0.0
    %v1992 = vmax.f32 %v1944, 0.0
    %v1993 = vmax.f32 %v1945, 0.0
    %v1994 = vmax.f32 %v1946, 0.0
    %v1995 = vmax.f32 %v1947, 0.0
    %v1996 = vmax.f32 %v1948, 0.0
    %v1997 = vmax.f32 %v1949, 0.0
    %v1998 = vmax.f32 %v1950, 0.0
    %v1999 = vmax.f32 %v1951, 0.0
    %v2000 = vmax.f32 %v1952, 0.0
    %v2001 = vmax.f32 %v1953, 0.0
    %v2002 = vmax.f32 %v1954, 0.0
    %v2003 = vmax.f32 %v1955, 0.0
    %v2004 = vmax.f32 %v1956, 0.0
    %v2005 = vmax.f32 %v1957, 0.0
    %v2006 = vmax.f32 %v1958, 0.0
    %v2007 = vmax.f32 %v1959, 0.0
    %v2008 = vmax.f32 %v1960, 0.0
    %v2009 = vmax.f32 %v1961, 0.0
    %v2010 = vmax.f32 %v1962, 0.0
    %v2011 = vmax.f32 %v1963, 0.0
    %v2012 = vmax.f32 %v1964, 0.0
    %v2013 = vmax.f32 %v1965, 0.0
    %v2014 = vmax.f32 %v1966, 0.0
    %v2015 = vmax.f32 %v1967, 0.0
    %v2016 = vmax.f32 %v1968, 0.0
    %v2017 = vmax.f32 %v1969, 0.0
    %v2018 = vmax.f32 %v1970, 0.0
    %v2019 = vmax.f32 %v1971, 0.0
    %v2020 = vmax.f32 %v1972, 0.0
    %v2021 = vmax.f32 %v1973, 0.0
    %v2022 = vmax.f32 %v1974, 0.0
    %v2023 = vmax.f32 %v1975, 0.0
    %v2024 = vmax.f32 %v1976, 0.0
    %v2025 = vmax.f32 %v1977, 0.0
    %v2026 = vmax.f32 %v1978, 0.0
    %v2027 = vmax.f32 %v1979, 0.0
    %v2028 = vmax.f32 %v1980, 0.0
    %v2029 = vmax.f32 %v1981, 0.0
    %v2030 = vmax.f32 %v1982, 0.0
    %v2031 = vmax.f32 %v1983, 0.0
    %v2032 = vmax.f32 %v1984, 0.0
    %v2033 = vmax.f32 %v1985, 0.0
    %v2034 = vmax.f32 %v1986, 0.0
    %v2035 = vmax.f32 %v1987, 0.0
    %v2036 = vmax.f32 %v1988, 0.0
    %vm2037 = vcmask 162816
    %2038 = vst.msk [vmem:[#allocation2] sm:$0xff] %vm2037, %v1989
    %2039 = vst.msk [vmem:[#allocation2 + $0x8] sm:$0xff] %vm2037, %v1990
    %2040 = vst.msk [vmem:[#allocation2 + $0x10] sm:$0xff] %vm2037, %v1991
    %2041 = vst.msk [vmem:[#allocation2 + $0x18] sm:$0xff] %vm2037, %v1992
    %2042 = vst.msk [vmem:[#allocation2 + $0x20] sm:$0xff] %vm2037, %v1993
    %2043 = vst.msk [vmem:[#allocation2 + $0x28] sm:$0xff] %vm2037, %v1994
    %2044 = vst.msk [vmem:[#allocation2 + $0x30] sm:$0xff] %vm2037, %v1995
    %2045 = vst.msk [vmem:[#allocation2 + $0x38] sm:$0xff] %vm2037, %v1996
    %2046 = vst.msk [vmem:[#allocation2 + $0x40] sm:$0xff] %vm2037, %v1997
    %2047 = vst.msk [vmem:[#allocation2 + $0x48] sm:$0xff] %vm2037, %v1998
    %2048 = vst.msk [vmem:[#allocation2 + $0x50] sm:$0xff] %vm2037, %v1999
    %2049 = vst.msk [vmem:[#allocation2 + $0x58] sm:$0xff] %vm2037, %v2000
    %2050 = vst.msk [vmem:[#allocation2 + $0x60] sm:$0xff] %vm2037, %v2001
    %2051 = vst.msk [vmem:[#allocation2 + $0x68] sm:$0xff] %vm2037, %v2002
    %2052 = vst.msk [vmem:[#allocation2 + $0x70] sm:$0xff] %vm2037, %v2003
    %2053 = vst.msk [vmem:[#allocation2 + $0x78] sm:$0xff] %vm2037, %v2004
    %2054 = vst.msk [vmem:[#allocation2 + $0x80] sm:$0xff] %vm2037, %v2005
    %2055 = vst.msk [vmem:[#allocation2 + $0x88] sm:$0xff] %vm2037, %v2006
    %2056 = vst.msk [vmem:[#allocation2 + $0x90] sm:$0xff] %vm2037, %v2007
    %2057 = vst.msk [vmem:[#allocation2 + $0x98] sm:$0xff] %vm2037, %v2008
    %2058 = vst.msk [vmem:[#allocation2 + $0xa0] sm:$0xff] %vm2037, %v2009
    %2059 = vst.msk [vmem:[#allocation2 + $0xa8] sm:$0xff] %vm2037, %v2010
    %2060 = vst.msk [vmem:[#allocation2 + $0xb0] sm:$0xff] %vm2037, %v2011
    %2061 = vst.msk [vmem:[#allocation2 + $0xb8] sm:$0xff] %vm2037, %v2012
    %2062 = vst.msk [vmem:[#allocation2 + $0xc0] sm:$0xff] %vm2037, %v2013
    %2063 = vst.msk [vmem:[#allocation2 + $0xc8] sm:$0xff] %vm2037, %v2014
    %2064 = vst.msk [vmem:[#allocation2 + $0xd0] sm:$0xff] %vm2037, %v2015
    %2065 = vst.msk [vmem:[#allocation2 + $0xd8] sm:$0xff] %vm2037, %v2016
    %2066 = vst.msk [vmem:[#allocation2 + $0xe0] sm:$0xff] %vm2037, %v2017
    %2067 = vst.msk [vmem:[#allocation2 + $0xe8] sm:$0xff] %vm2037, %v2018
    %2068 = vst.msk [vmem:[#allocation2 + $0xf0] sm:$0xff] %vm2037, %v2019
    %2069 = vst.msk [vmem:[#allocation2 + $0xf8] sm:$0xff] %vm2037, %v2020
    %2070 = vst.msk [vmem:[#allocation2 + $0x100] sm:$0xff] %vm2037, %v2021
    %2071 = vst.msk [vmem:[#allocation2 + $0x108] sm:$0xff] %vm2037, %v2022
    %2072 = vst.msk [vmem:[#allocation2 + $0x110] sm:$0xff] %vm2037, %v2023
    %2073 = vst.msk [vmem:[#allocation2 + $0x118] sm:$0xff] %vm2037, %v2024
    %2074 = vst.msk [vmem:[#allocation2 + $0x120] sm:$0xff] %vm2037, %v2025
    %2075 = vst.msk [vmem:[#allocation2 + $0x128] sm:$0xff] %vm2037, %v2026
    %2076 = vst.msk [vmem:[#allocation2 + $0x130] sm:$0xff] %vm2037, %v2027
    %2077 = vst.msk [vmem:[#allocation2 + $0x138] sm:$0xff] %vm2037, %v2028
    %2078 = vst.msk [vmem:[#allocation2 + $0x140] sm:$0xff] %vm2037, %v2029
    %2079 = vst.msk [vmem:[#allocation2 + $0x148] sm:$0xff] %vm2037, %v2030
    %2080 = vst.msk [vmem:[#allocation2 + $0x150] sm:$0xff] %vm2037, %v2031
    %2081 = vst.msk [vmem:[#allocation2 + $0x158] sm:$0xff] %vm2037, %v2032
    %2082 = vst.msk [vmem:[#allocation2 + $0x160] sm:$0xff] %vm2037, %v2033
    %2083 = vst.msk [vmem:[#allocation2 + $0x168] sm:$0xff] %vm2037, %v2034
    %2084 = vst.msk [vmem:[#allocation2 + $0x170] sm:$0xff] %vm2037, %v2035
    %2085 = vst.msk [vmem:[#allocation2 + $0x178] sm:$0xff] %vm2037, %v2036
    %v2086 = vld [vmem:[#allocation2] sm:$0xff]
    %v2087 = vld [vmem:[#allocation2 + $0x10] sm:$0xff]
    %v2088 = vld [vmem:[#allocation2 + $0x20] sm:$0xff]
    %v2089 = vld [vmem:[#allocation2 + $0x30] sm:$0xff]
    %v2090 = vld [vmem:[#allocation2 + $0x40] sm:$0xff]
    %v2091 = vld [vmem:[#allocation2 + $0x50] sm:$0xff]
    %v2092 = vld [vmem:[#allocation2 + $0x60] sm:$0xff]
    %v2093 = vld [vmem:[#allocation2 + $0x70] sm:$0xff]
    %v2094 = vld [vmem:[#allocation2 + $0xc0] sm:$0xff]
    %v2095 = vld [vmem:[#allocation2 + $0xd0] sm:$0xff]
    %v2096 = vld [vmem:[#allocation2 + $0xe0] sm:$0xff]
    %v2097 = vld [vmem:[#allocation2 + $0xf0] sm:$0xff]
    %v2098 = vld [vmem:[#allocation2 + $0x100] sm:$0xff]
    %v2099 = vld [vmem:[#allocation2 + $0x110] sm:$0xff]
    %v2100 = vld [vmem:[#allocation2 + $0x120] sm:$0xff]
    %v2101 = vld [vmem:[#allocation2 + $0x130] sm:$0xff]
    %v2102 = vld [vmem:[#allocation2 + $0x1] sm:$0xff]
    %v2103 = vld [vmem:[#allocation2 + $0x11] sm:$0xff]
    %v2104 = vld [vmem:[#allocation2 + $0x21] sm:$0xff]
    %v2105 = vld [vmem:[#allocation2 + $0x31] sm:$0xff]
    %v2106 = vld [vmem:[#allocation2 + $0x41] sm:$0xff]
    %v2107 = vld [vmem:[#allocation2 + $0x51] sm:$0xff]
    %v2108 = vld [vmem:[#allocation2 + $0x61] sm:$0xff]
    %v2109 = vld [vmem:[#allocation2 + $0x71] sm:$0xff]
    %v2110 = vld [vmem:[#allocation2 + $0xc1] sm:$0xff]
    %v2111 = vld [vmem:[#allocation2 + $0xd1] sm:$0xff]
    %v2112 = vld [vmem:[#allocation2 + $0xe1] sm:$0xff]
    %v2113 = vld [vmem:[#allocation2 + $0xf1] sm:$0xff]
    %v2114 = vld [vmem:[#allocation2 + $0x101] sm:$0xff]
    %v2115 = vld [vmem:[#allocation2 + $0x111] sm:$0xff]
    %v2116 = vld [vmem:[#allocation2 + $0x121] sm:$0xff]
    %v2117 = vld [vmem:[#allocation2 + $0x131] sm:$0xff]
    %v2118 = vld [vmem:[#allocation2 + $0x2] sm:$0xff]
    %v2119 = vld [vmem:[#allocation2 + $0x12] sm:$0xff]
    %v2120 = vld [vmem:[#allocation2 + $0x22] sm:$0xff]
    %v2121 = vld [vmem:[#allocation2 + $0x32] sm:$0xff]
    %v2122 = vld [vmem:[#allocation2 + $0x42] sm:$0xff]
    %v2123 = vld [vmem:[#allocation2 + $0x52] sm:$0xff]
    %v2124 = vld [vmem:[#allocation2 + $0x62] sm:$0xff]
    %v2125 = vld [vmem:[#allocation2 + $0x72] sm:$0xff]
    %v2126 = vld [vmem:[#allocation2 + $0xc2] sm:$0xff]
    %v2127 = vld [vmem:[#allocation2 + $0xd2] sm:$0xff]
    %v2128 = vld [vmem:[#allocation2 + $0xe2] sm:$0xff]
    %v2129 = vld [vmem:[#allocation2 + $0xf2] sm:$0xff]
    %v2130 = vld [vmem:[#allocation2 + $0x102] sm:$0xff]
    %v2131 = vld [vmem:[#allocation2 + $0x112] sm:$0xff]
    %v2132 = vld [vmem:[#allocation2 + $0x122] sm:$0xff]
    %v2133 = vld [vmem:[#allocation2 + $0x132] sm:$0xff]
    %v2134 = vld [vmem:[#allocation2 + $0x3] sm:$0xff]
    %v2135 = vld [vmem:[#allocation2 + $0x13] sm:$0xff]
    %v2136 = vld [vmem:[#allocation2 + $0x23] sm:$0xff]
    %v2137 = vld [vmem:[#allocation2 + $0x33] sm:$0xff]
    %v2138 = vld [vmem:[#allocation2 + $0x43] sm:$0xff]
    %v2139 = vld [vmem:[#allocation2 + $0x53] sm:$0xff]
    %v2140 = vld [vmem:[#allocation2 + $0x63] sm:$0xff]
    %v2141 = vld [vmem:[#allocation2 + $0x73] sm:$0xff]
    %v2142 = vld [vmem:[#allocation2 + $0xc3] sm:$0xff]
    %v2143 = vld [vmem:[#allocation2 + $0xd3] sm:$0xff]
    %v2144 = vld [vmem:[#allocation2 + $0xe3] sm:$0xff]
    %v2145 = vld [vmem:[#allocation2 + $0xf3] sm:$0xff]
    %v2146 = vld [vmem:[#allocation2 + $0x103] sm:$0xff]
    %v2147 = vld [vmem:[#allocation2 + $0x113] sm:$0xff]
    %v2148 = vld [vmem:[#allocation2 + $0x123] sm:$0xff]
    %v2149 = vld [vmem:[#allocation2 + $0x133] sm:$0xff]
    %v2150 = vld [vmem:[#allocation2 + $0x4] sm:$0xff]
    %v2151 = vld [vmem:[#allocation2 + $0x14] sm:$0xff]
    %v2152 = vld [vmem:[#allocation2 + $0x24] sm:$0xff]
    %v2153 = vld [vmem:[#allocation2 + $0x34] sm:$0xff]
    %v2154 = vld [vmem:[#allocation2 + $0x44] sm:$0xff]
    %v2155 = vld [vmem:[#allocation2 + $0x54] sm:$0xff]
    %v2156 = vld [vmem:[#allocation2 + $0x64] sm:$0xff]
    %v2157 = vld [vmem:[#allocation2 + $0x74] sm:$0xff]
    %v2158 = vld [vmem:[#allocation2 + $0xc4] sm:$0xff]
    %v2159 = vld [vmem:[#allocation2 + $0xd4] sm:$0xff]
    %v2160 = vld [vmem:[#allocation2 + $0xe4] sm:$0xff]
    %v2161 = vld [vmem:[#allocation2 + $0xf4] sm:$0xff]
    %v2162 = vld [vmem:[#allocation2 + $0x104] sm:$0xff]
    %v2163 = vld [vmem:[#allocation2 + $0x114] sm:$0xff]
    %v2164 = vld [vmem:[#allocation2 + $0x124] sm:$0xff]
    %v2165 = vld [vmem:[#allocation2 + $0x134] sm:$0xff]
    %s2166 = scalar_lea.vmem [#allocation2], 16
    %v2167 = vld [vmem:[%s2166] sm:$0xff]
    %v2168 = vld [vmem:[%s2166 + $0x10] sm:$0xff]
    %v2169 = vld [vmem:[%s2166 + $0x20] sm:$0xff]
    %v2170 = vld [vmem:[%s2166 + $0x30] sm:$0xff]
    %v2171 = vld [vmem:[%s2166 + $0x40] sm:$0xff]
    %v2172 = vld [vmem:[%s2166 + $0x50] sm:$0xff]
    %v2173 = vld [vmem:[%s2166 + $0x60] sm:$0xff]
    %v2174 = vld [vmem:[%s2166 + $0x70] sm:$0xff]
    %v2175 = vld [vmem:[%s2166 + $0xc0] sm:$0xff]
    %v2176 = vld [vmem:[%s2166 + $0xd0] sm:$0xff]
    %v2177 = vld [vmem:[%s2166 + $0xe0] sm:$0xff]
    %v2178 = vld [vmem:[%s2166 + $0xf0] sm:$0xff]
    %v2179 = vld [vmem:[%s2166 + $0x100] sm:$0xff]
    %v2180 = vld [vmem:[%s2166 + $0x110] sm:$0xff]
    %v2181 = vld [vmem:[%s2166 + $0x120] sm:$0xff]
    %v2182 = vld [vmem:[%s2166 + $0x130] sm:$0xff]
    %v2183 = vld [vmem:[%s2166 + $0x1] sm:$0xff]
    %v2184 = vld [vmem:[%s2166 + $0x11] sm:$0xff]
    %v2185 = vld [vmem:[%s2166 + $0x21] sm:$0xff]
    %v2186 = vld [vmem:[%s2166 + $0x31] sm:$0xff]
    %v2187 = vld [vmem:[%s2166 + $0x41] sm:$0xff]
    %v2188 = vld [vmem:[%s2166 + $0x51] sm:$0xff]
    %v2189 = vld [vmem:[%s2166 + $0x61] sm:$0xff]
    %v2190 = vld [vmem:[%s2166 + $0x71] sm:$0xff]
    %v2191 = vld [vmem:[%s2166 + $0xc1] sm:$0xff]
    %v2192 = vld [vmem:[%s2166 + $0xd1] sm:$0xff]
    %v2193 = vld [vmem:[%s2166 + $0xe1] sm:$0xff]
    %v2194 = vld [vmem:[%s2166 + $0xf1] sm:$0xff]
    %v2195 = vld [vmem:[%s2166 + $0x101] sm:$0xff]
    %v2196 = vld [vmem:[%s2166 + $0x111] sm:$0xff]
    %v2197 = vld [vmem:[%s2166 + $0x121] sm:$0xff]
    %v2198 = vld [vmem:[%s2166 + $0x131] sm:$0xff]
    %v2199 = vld [vmem:[%s2166 + $0x2] sm:$0xff]
    %v2200 = vld [vmem:[%s2166 + $0x12] sm:$0xff]
    %v2201 = vld [vmem:[%s2166 + $0x22] sm:$0xff]
    %v2202 = vld [vmem:[%s2166 + $0x32] sm:$0xff]
    %v2203 = vld [vmem:[%s2166 + $0x42] sm:$0xff]
    %v2204 = vld [vmem:[%s2166 + $0x52] sm:$0xff]
    %v2205 = vld [vmem:[%s2166 + $0x62] sm:$0xff]
    %v2206 = vld [vmem:[%s2166 + $0x72] sm:$0xff]
    %v2207 = vld [vmem:[%s2166 + $0xc2] sm:$0xff]
    %v2208 = vld [vmem:[%s2166 + $0xd2] sm:$0xff]
    %v2209 = vld [vmem:[%s2166 + $0xe2] sm:$0xff]
    %v2210 = vld [vmem:[%s2166 + $0xf2] sm:$0xff]
    %v2211 = vld [vmem:[%s2166 + $0x102] sm:$0xff]
    %v2212 = vld [vmem:[%s2166 + $0x112] sm:$0xff]
    %v2213 = vld [vmem:[%s2166 + $0x122] sm:$0xff]
    %v2214 = vld [vmem:[%s2166 + $0x132] sm:$0xff]
    %v2215 = vld [vmem:[%s2166 + $0x3] sm:$0xff]
    %v2216 = vld [vmem:[%s2166 + $0x13] sm:$0xff]
    %v2217 = vld [vmem:[%s2166 + $0x23] sm:$0xff]
    %v2218 = vld [vmem:[%s2166 + $0x33] sm:$0xff]
    %v2219 = vld [vmem:[%s2166 + $0x43] sm:$0xff]
    %v2220 = vld [vmem:[%s2166 + $0x53] sm:$0xff]
    %v2221 = vld [vmem:[%s2166 + $0x63] sm:$0xff]
    %v2222 = vld [vmem:[%s2166 + $0x73] sm:$0xff]
    %v2223 = vld [vmem:[%s2166 + $0xc3] sm:$0xff]
    %v2224 = vld [vmem:[%s2166 + $0xd3] sm:$0xff]
    %v2225 = vld [vmem:[%s2166 + $0xe3] sm:$0xff]
    %v2226 = vld [vmem:[%s2166 + $0xf3] sm:$0xff]
    %v2227 = vld [vmem:[%s2166 + $0x103] sm:$0xff]
    %v2228 = vld [vmem:[%s2166 + $0x113] sm:$0xff]
    %v2229 = vld [vmem:[%s2166 + $0x123] sm:$0xff]
    %v2230 = vld [vmem:[%s2166 + $0x133] sm:$0xff]
    %v2231 = vld [vmem:[%s2166 + $0x4] sm:$0xff]
    %v2232 = vld [vmem:[%s2166 + $0x14] sm:$0xff]
    %v2233 = vld [vmem:[%s2166 + $0x24] sm:$0xff]
    %v2234 = vld [vmem:[%s2166 + $0x34] sm:$0xff]
    %v2235 = vld [vmem:[%s2166 + $0x44] sm:$0xff]
    %v2236 = vld [vmem:[%s2166 + $0x54] sm:$0xff]
    %v2237 = vld [vmem:[%s2166 + $0x64] sm:$0xff]
    %v2238 = vld [vmem:[%s2166 + $0x74] sm:$0xff]
    %v2239 = vld [vmem:[%s2166 + $0xc4] sm:$0xff]
    %v2240 = vld [vmem:[%s2166 + $0xd4] sm:$0xff]
    %v2241 = vld [vmem:[%s2166 + $0xe4] sm:$0xff]
    %v2242 = vld [vmem:[%s2166 + $0xf4] sm:$0xff]
    %v2243 = vld [vmem:[%s2166 + $0x104] sm:$0xff]
    %v2244 = vld [vmem:[%s2166 + $0x114] sm:$0xff]
    %v2245 = vld [vmem:[%s2166 + $0x124] sm:$0xff]
    %v2246 = vld [vmem:[%s2166 + $0x134] sm:$0xff]
    %s2247 = scalar_lea.vmem [#allocation2], 32
    %v2248 = vld [vmem:[%s2247] sm:$0xff]
    %v2249 = vld [vmem:[%s2247 + $0x10] sm:$0xff]
    %v2250 = vld [vmem:[%s2247 + $0x20] sm:$0xff]
    %v2251 = vld [vmem:[%s2247 + $0x30] sm:$0xff]
    %v2252 = vld [vmem:[%s2247 + $0x40] sm:$0xff]
    %v2253 = vld [vmem:[%s2247 + $0x50] sm:$0xff]
    %v2254 = vld [vmem:[%s2247 + $0x60] sm:$0xff]
    %v2255 = vld [vmem:[%s2247 + $0x70] sm:$0xff]
    %v2256 = vld [vmem:[%s2247 + $0xc0] sm:$0xff]
    %v2257 = vld [vmem:[%s2247 + $0xd0] sm:$0xff]
    %v2258 = vld [vmem:[%s2247 + $0xe0] sm:$0xff]
    %v2259 = vld [vmem:[%s2247 + $0xf0] sm:$0xff]
    %v2260 = vld [vmem:[%s2247 + $0x100] sm:$0xff]
    %v2261 = vld [vmem:[%s2247 + $0x110] sm:$0xff]
    %v2262 = vld [vmem:[%s2247 + $0x120] sm:$0xff]
    %v2263 = vld [vmem:[%s2247 + $0x130] sm:$0xff]
    %v2264 = vld [vmem:[%s2247 + $0x1] sm:$0xff]
    %v2265 = vld [vmem:[%s2247 + $0x11] sm:$0xff]
    %v2266 = vld [vmem:[%s2247 + $0x21] sm:$0xff]
    %v2267 = vld [vmem:[%s2247 + $0x31] sm:$0xff]
    %v2268 = vld [vmem:[%s2247 + $0x41] sm:$0xff]
    %v2269 = vld [vmem:[%s2247 + $0x51] sm:$0xff]
    %v2270 = vld [vmem:[%s2247 + $0x61] sm:$0xff]
    %v2271 = vld [vmem:[%s2247 + $0x71] sm:$0xff]
    %v2272 = vld [vmem:[%s2247 + $0xc1] sm:$0xff]
    %v2273 = vld [vmem:[%s2247 + $0xd1] sm:$0xff]
    %v2274 = vld [vmem:[%s2247 + $0xe1] sm:$0xff]
    %v2275 = vld [vmem:[%s2247 + $0xf1] sm:$0xff]
    %v2276 = vld [vmem:[%s2247 + $0x101] sm:$0xff]
    %v2277 = vld [vmem:[%s2247 + $0x111] sm:$0xff]
    %v2278 = vld [vmem:[%s2247 + $0x121] sm:$0xff]
    %v2279 = vld [vmem:[%s2247 + $0x131] sm:$0xff]
    %v2280 = vld [vmem:[%s2247 + $0x2] sm:$0xff]
    %v2281 = vld [vmem:[%s2247 + $0x12] sm:$0xff]
    %v2282 = vld [vmem:[%s2247 + $0x22] sm:$0xff]
    %v2283 = vld [vmem:[%s2247 + $0x32] sm:$0xff]
    %v2284 = vld [vmem:[%s2247 + $0x42] sm:$0xff]
    %v2285 = vld [vmem:[%s2247 + $0x52] sm:$0xff]
    %v2286 = vld [vmem:[%s2247 + $0x62] sm:$0xff]
    %v2287 = vld [vmem:[%s2247 + $0x72] sm:$0xff]
    %v2288 = vld [vmem:[%s2247 + $0xc2] sm:$0xff]
    %v2289 = vld [vmem:[%s2247 + $0xd2] sm:$0xff]
    %v2290 = vld [vmem:[%s2247 + $0xe2] sm:$0xff]
    %v2291 = vld [vmem:[%s2247 + $0xf2] sm:$0xff]
    %v2292 = vld [vmem:[%s2247 + $0x102] sm:$0xff]
    %v2293 = vld [vmem:[%s2247 + $0x112] sm:$0xff]
    %v2294 = vld [vmem:[%s2247 + $0x122] sm:$0xff]
    %v2295 = vld [vmem:[%s2247 + $0x132] sm:$0xff]
    %v2296 = vld [vmem:[%s2247 + $0x3] sm:$0xff]
    %v2297 = vld [vmem:[%s2247 + $0x13] sm:$0xff]
    %v2298 = vld [vmem:[%s2247 + $0x23] sm:$0xff]
    %v2299 = vld [vmem:[%s2247 + $0x33] sm:$0xff]
    %v2300 = vld [vmem:[%s2247 + $0x43] sm:$0xff]
    %v2301 = vld [vmem:[%s2247 + $0x53] sm:$0xff]
    %v2302 = vld [vmem:[%s2247 + $0x63] sm:$0xff]
    %v2303 = vld [vmem:[%s2247 + $0x73] sm:$0xff]
    %v2304 = vld [vmem:[%s2247 + $0xc3] sm:$0xff]
    %v2305 = vld [vmem:[%s2247 + $0xd3] sm:$0xff]
    %v2306 = vld [vmem:[%s2247 + $0xe3] sm:$0xff]
    %v2307 = vld [vmem:[%s2247 + $0xf3] sm:$0xff]
    %v2308 = vld [vmem:[%s2247 + $0x103] sm:$0xff]
    %v2309 = vld [vmem:[%s2247 + $0x113] sm:$0xff]
    %v2310 = vld [vmem:[%s2247 + $0x123] sm:$0xff]
    %v2311 = vld [vmem:[%s2247 + $0x133] sm:$0xff]
    %v2312 = vld [vmem:[%s2247 + $0x4] sm:$0xff]
    %v2313 = vld [vmem:[%s2247 + $0x14] sm:$0xff]
    %v2314 = vld [vmem:[%s2247 + $0x24] sm:$0xff]
    %v2315 = vld [vmem:[%s2247 + $0x34] sm:$0xff]
    %v2316 = vld [vmem:[%s2247 + $0x44] sm:$0xff]
    %v2317 = vld [vmem:[%s2247 + $0x54] sm:$0xff]
    %v2318 = vld [vmem:[%s2247 + $0x64] sm:$0xff]
    %v2319 = vld [vmem:[%s2247 + $0x74] sm:$0xff]
    %v2320 = vld [vmem:[%s2247 + $0xc4] sm:$0xff]
    %v2321 = vld [vmem:[%s2247 + $0xd4] sm:$0xff]
    %v2322 = vld [vmem:[%s2247 + $0xe4] sm:$0xff]
    %v2323 = vld [vmem:[%s2247 + $0xf4] sm:$0xff]
    %v2324 = vld [vmem:[%s2247 + $0x104] sm:$0xff]
    %v2325 = vld [vmem:[%s2247 + $0x114] sm:$0xff]
    %v2326 = vld [vmem:[%s2247 + $0x124] sm:$0xff]
    %v2327 = vld [vmem:[%s2247 + $0x134] sm:$0xff]
    %s2328 = scalar_lea.vmem [#allocation2], 48
    %v2329 = vld [vmem:[%s2328] sm:$0xff]
    %v2330 = vld [vmem:[%s2328 + $0x10] sm:$0xff]
    %v2331 = vld [vmem:[%s2328 + $0x20] sm:$0xff]
    %v2332 = vld [vmem:[%s2328 + $0x30] sm:$0xff]
    %v2333 = vld [vmem:[%s2328 + $0x40] sm:$0xff]
    %v2334 = vld [vmem:[%s2328 + $0x50] sm:$0xff]
    %v2335 = vld [vmem:[%s2328 + $0x60] sm:$0xff]
    %v2336 = vld [vmem:[%s2328 + $0x70] sm:$0xff]
    %v2337 = vld [vmem:[%s2328 + $0xc0] sm:$0xff]
    %v2338 = vld [vmem:[%s2328 + $0xd0] sm:$0xff]
    %v2339 = vld [vmem:[%s2328 + $0xe0] sm:$0xff]
    %v2340 = vld [vmem:[%s2328 + $0xf0] sm:$0xff]
    %v2341 = vld [vmem:[%s2328 + $0x100] sm:$0xff]
    %v2342 = vld [vmem:[%s2328 + $0x110] sm:$0xff]
    %v2343 = vld [vmem:[%s2328 + $0x120] sm:$0xff]
    %v2344 = vld [vmem:[%s2328 + $0x130] sm:$0xff]
    %v2345 = vld [vmem:[%s2328 + $0x1] sm:$0xff]
    %v2346 = vld [vmem:[%s2328 + $0x11] sm:$0xff]
    %v2347 = vld [vmem:[%s2328 + $0x21] sm:$0xff]
    %v2348 = vld [vmem:[%s2328 + $0x31] sm:$0xff]
    %v2349 = vld [vmem:[%s2328 + $0x41] sm:$0xff]
    %v2350 = vld [vmem:[%s2328 + $0x51] sm:$0xff]
    %v2351 = vld [vmem:[%s2328 + $0x61] sm:$0xff]
    %v2352 = vld [vmem:[%s2328 + $0x71] sm:$0xff]
    %v2353 = vld [vmem:[%s2328 + $0xc1] sm:$0xff]
    %v2354 = vld [vmem:[%s2328 + $0xd1] sm:$0xff]
    %v2355 = vld [vmem:[%s2328 + $0xe1] sm:$0xff]
    %v2356 = vld [vmem:[%s2328 + $0xf1] sm:$0xff]
    %v2357 = vld [vmem:[%s2328 + $0x101] sm:$0xff]
    %v2358 = vld [vmem:[%s2328 + $0x111] sm:$0xff]
    %v2359 = vld [vmem:[%s2328 + $0x121] sm:$0xff]
    %v2360 = vld [vmem:[%s2328 + $0x131] sm:$0xff]
    %v2361 = vld [vmem:[%s2328 + $0x2] sm:$0xff]
    %v2362 = vld [vmem:[%s2328 + $0x12] sm:$0xff]
    %v2363 = vld [vmem:[%s2328 + $0x22] sm:$0xff]
    %v2364 = vld [vmem:[%s2328 + $0x32] sm:$0xff]
    %v2365 = vld [vmem:[%s2328 + $0x42] sm:$0xff]
    %v2366 = vld [vmem:[%s2328 + $0x52] sm:$0xff]
    %v2367 = vld [vmem:[%s2328 + $0x62] sm:$0xff]
    %v2368 = vld [vmem:[%s2328 + $0x72] sm:$0xff]
    %v2369 = vld [vmem:[%s2328 + $0xc2] sm:$0xff]
    %v2370 = vld [vmem:[%s2328 + $0xd2] sm:$0xff]
    %v2371 = vld [vmem:[%s2328 + $0xe2] sm:$0xff]
    %v2372 = vld [vmem:[%s2328 + $0xf2] sm:$0xff]
    %v2373 = vld [vmem:[%s2328 + $0x102] sm:$0xff]
    %v2374 = vld [vmem:[%s2328 + $0x112] sm:$0xff]
    %v2375 = vld [vmem:[%s2328 + $0x122] sm:$0xff]
    %v2376 = vld [vmem:[%s2328 + $0x132] sm:$0xff]
    %v2377 = vld [vmem:[%s2328 + $0x3] sm:$0xff]
    %v2378 = vld [vmem:[%s2328 + $0x13] sm:$0xff]
    %v2379 = vld [vmem:[%s2328 + $0x23] sm:$0xff]
    %v2380 = vld [vmem:[%s2328 + $0x33] sm:$0xff]
    %v2381 = vld [vmem:[%s2328 + $0x43] sm:$0xff]
    %v2382 = vld [vmem:[%s2328 + $0x53] sm:$0xff]
    %v2383 = vld [vmem:[%s2328 + $0x63] sm:$0xff]
    %v2384 = vld [vmem:[%s2328 + $0x73] sm:$0xff]
    %v2385 = vld [vmem:[%s2328 + $0xc3] sm:$0xff]
    %v2386 = vld [vmem:[%s2328 + $0xd3] sm:$0xff]
    %v2387 = vld [vmem:[%s2328 + $0xe3] sm:$0xff]
    %v2388 = vld [vmem:[%s2328 + $0xf3] sm:$0xff]
    %v2389 = vld [vmem:[%s2328 + $0x103] sm:$0xff]
    %v2390 = vld [vmem:[%s2328 + $0x113] sm:$0xff]
    %v2391 = vld [vmem:[%s2328 + $0x123] sm:$0xff]
    %v2392 = vld [vmem:[%s2328 + $0x133] sm:$0xff]
    %v2393 = vld [vmem:[%s2328 + $0x4] sm:$0xff]
    %v2394 = vld [vmem:[%s2328 + $0x14] sm:$0xff]
    %v2395 = vld [vmem:[%s2328 + $0x24] sm:$0xff]
    %v2396 = vld [vmem:[%s2328 + $0x34] sm:$0xff]
    %v2397 = vld [vmem:[%s2328 + $0x44] sm:$0xff]
    %v2398 = vld [vmem:[%s2328 + $0x54] sm:$0xff]
    %v2399 = vld [vmem:[%s2328 + $0x64] sm:$0xff]
    %v2400 = vld [vmem:[%s2328 + $0x74] sm:$0xff]
    %v2401 = vld [vmem:[%s2328 + $0xc4] sm:$0xff]
    %v2402 = vld [vmem:[%s2328 + $0xd4] sm:$0xff]
    %v2403 = vld [vmem:[%s2328 + $0xe4] sm:$0xff]
    %v2404 = vld [vmem:[%s2328 + $0xf4] sm:$0xff]
    %v2405 = vld [vmem:[%s2328 + $0x104] sm:$0xff]
    %v2406 = vld [vmem:[%s2328 + $0x114] sm:$0xff]
    %v2407 = vld [vmem:[%s2328 + $0x124] sm:$0xff]
    %v2408 = vld [vmem:[%s2328 + $0x134] sm:$0xff]
    %s2409 = scalar_lea.vmem [#allocation2], 64
    %v2410 = vld [vmem:[%s2409] sm:$0xff]
    %v2411 = vld [vmem:[%s2409 + $0x10] sm:$0xff]
    %v2412 = vld [vmem:[%s2409 + $0x20] sm:$0xff]
    %v2413 = vld [vmem:[%s2409 + $0x30] sm:$0xff]
    %v2414 = vld [vmem:[%s2409 + $0x40] sm:$0xff]
    %v2415 = vld [vmem:[%s2409 + $0x50] sm:$0xff]
    %v2416 = vld [vmem:[%s2409 + $0x60] sm:$0xff]
    %v2417 = vld [vmem:[%s2409 + $0x70] sm:$0xff]
    %v2418 = vld [vmem:[%s2409 + $0xc0] sm:$0xff]
    %v2419 = vld [vmem:[%s2409 + $0xd0] sm:$0xff]
    %v2420 = vld [vmem:[%s2409 + $0xe0] sm:$0xff]
    %v2421 = vld [vmem:[%s2409 + $0xf0] sm:$0xff]
    %v2422 = vld [vmem:[%s2409 + $0x100] sm:$0xff]
    %v2423 = vld [vmem:[%s2409 + $0x110] sm:$0xff]
    %v2424 = vld [vmem:[%s2409 + $0x120] sm:$0xff]
    %v2425 = vld [vmem:[%s2409 + $0x130] sm:$0xff]
    %v2426 = vld [vmem:[%s2409 + $0x1] sm:$0xff]
    %v2427 = vld [vmem:[%s2409 + $0x11] sm:$0xff]
    %v2428 = vld [vmem:[%s2409 + $0x21] sm:$0xff]
    %v2429 = vld [vmem:[%s2409 + $0x31] sm:$0xff]
    %v2430 = vld [vmem:[%s2409 + $0x41] sm:$0xff]
    %v2431 = vld [vmem:[%s2409 + $0x51] sm:$0xff]
    %v2432 = vld [vmem:[%s2409 + $0x61] sm:$0xff]
    %v2433 = vld [vmem:[%s2409 + $0x71] sm:$0xff]
    %v2434 = vld [vmem:[%s2409 + $0xc1] sm:$0xff]
    %v2435 = vld [vmem:[%s2409 + $0xd1] sm:$0xff]
    %v2436 = vld [vmem:[%s2409 + $0xe1] sm:$0xff]
    %v2437 = vld [vmem:[%s2409 + $0xf1] sm:$0xff]
    %v2438 = vld [vmem:[%s2409 + $0x101] sm:$0xff]
    %v2439 = vld [vmem:[%s2409 + $0x111] sm:$0xff]
    %v2440 = vld [vmem:[%s2409 + $0x121] sm:$0xff]
    %v2441 = vld [vmem:[%s2409 + $0x131] sm:$0xff]
    %v2442 = vld [vmem:[%s2409 + $0x2] sm:$0xff]
    %v2443 = vld [vmem:[%s2409 + $0x12] sm:$0xff]
    %v2444 = vld [vmem:[%s2409 + $0x22] sm:$0xff]
    %v2445 = vld [vmem:[%s2409 + $0x32] sm:$0xff]
    %v2446 = vld [vmem:[%s2409 + $0x42] sm:$0xff]
    %v2447 = vld [vmem:[%s2409 + $0x52] sm:$0xff]
    %v2448 = vld [vmem:[%s2409 + $0x62] sm:$0xff]
    %v2449 = vld [vmem:[%s2409 + $0x72] sm:$0xff]
    %v2450 = vld [vmem:[%s2409 + $0xc2] sm:$0xff]
    %v2451 = vld [vmem:[%s2409 + $0xd2] sm:$0xff]
    %v2452 = vld [vmem:[%s2409 + $0xe2] sm:$0xff]
    %v2453 = vld [vmem:[%s2409 + $0xf2] sm:$0xff]
    %v2454 = vld [vmem:[%s2409 + $0x102] sm:$0xff]
    %v2455 = vld [vmem:[%s2409 + $0x112] sm:$0xff]
    %v2456 = vld [vmem:[%s2409 + $0x122] sm:$0xff]
    %v2457 = vld [vmem:[%s2409 + $0x132] sm:$0xff]
    %v2458 = vld [vmem:[%s2409 + $0x3] sm:$0xff]
    %v2459 = vld [vmem:[%s2409 + $0x13] sm:$0xff]
    %v2460 = vld [vmem:[%s2409 + $0x23] sm:$0xff]
    %v2461 = vld [vmem:[%s2409 + $0x33] sm:$0xff]
    %v2462 = vld [vmem:[%s2409 + $0x43] sm:$0xff]
    %v2463 = vld [vmem:[%s2409 + $0x53] sm:$0xff]
    %v2464 = vld [vmem:[%s2409 + $0x63] sm:$0xff]
    %v2465 = vld [vmem:[%s2409 + $0x73] sm:$0xff]
    %v2466 = vld [vmem:[%s2409 + $0xc3] sm:$0xff]
    %v2467 = vld [vmem:[%s2409 + $0xd3] sm:$0xff]
    %v2468 = vld [vmem:[%s2409 + $0xe3] sm:$0xff]
    %v2469 = vld [vmem:[%s2409 + $0xf3] sm:$0xff]
    %v2470 = vld [vmem:[%s2409 + $0x103] sm:$0xff]
    %v2471 = vld [vmem:[%s2409 + $0x113] sm:$0xff]
    %v2472 = vld [vmem:[%s2409 + $0x123] sm:$0xff]
    %v2473 = vld [vmem:[%s2409 + $0x133] sm:$0xff]
    %v2474 = vld [vmem:[%s2409 + $0x4] sm:$0xff]
    %v2475 = vld [vmem:[%s2409 + $0x14] sm:$0xff]
    %v2476 = vld [vmem:[%s2409 + $0x24] sm:$0xff]
    %v2477 = vld [vmem:[%s2409 + $0x34] sm:$0xff]
    %v2478 = vld [vmem:[%s2409 + $0x44] sm:$0xff]
    %v2479 = vld [vmem:[%s2409 + $0x54] sm:$0xff]
    %v2480 = vld [vmem:[%s2409 + $0x64] sm:$0xff]
    %v2481 = vld [vmem:[%s2409 + $0x74] sm:$0xff]
    %v2482 = vld [vmem:[%s2409 + $0xc4] sm:$0xff]
    %v2483 = vld [vmem:[%s2409 + $0xd4] sm:$0xff]
    %v2484 = vld [vmem:[%s2409 + $0xe4] sm:$0xff]
    %v2485 = vld [vmem:[%s2409 + $0xf4] sm:$0xff]
    %v2486 = vld [vmem:[%s2409 + $0x104] sm:$0xff]
    %v2487 = vld [vmem:[%s2409 + $0x114] sm:$0xff]
    %v2488 = vld [vmem:[%s2409 + $0x124] sm:$0xff]
    %v2489 = vld [vmem:[%s2409 + $0x134] sm:$0xff]
    %2506 = vrot.lane.b32.xlu0 %v2102, 20
    %v2507 = vpop.permute.xlu0 %2506
    %2508 = vrot.lane.b32.xlu0 %v2103, 20
    %v2509 = vpop.permute.xlu0 %2508
    %2510 = vrot.lane.b32.xlu0 %v2104, 20
    %v2511 = vpop.permute.xlu0 %2510
    %2512 = vrot.lane.b32.xlu0 %v2105, 20
    %v2513 = vpop.permute.xlu0 %2512
    %2514 = vrot.lane.b32.xlu0 %v2106, 20
    %v2515 = vpop.permute.xlu0 %2514
    %2516 = vrot.lane.b32.xlu0 %v2107, 20
    %v2517 = vpop.permute.xlu0 %2516
    %2518 = vrot.lane.b32.xlu0 %v2108, 20
    %v2519 = vpop.permute.xlu0 %2518
    %2520 = vrot.lane.b32.xlu0 %v2109, 20
    %v2521 = vpop.permute.xlu0 %2520
    %2522 = vrot.lane.b32.xlu0 %v2110, 20
    %v2523 = vpop.permute.xlu0 %2522
    %2524 = vrot.lane.b32.xlu0 %v2111, 20
    %v2525 = vpop.permute.xlu0 %2524
    %2526 = vrot.lane.b32.xlu0 %v2112, 20
    %v2527 = vpop.permute.xlu0 %2526
    %2528 = vrot.lane.b32.xlu0 %v2113, 20
    %v2529 = vpop.permute.xlu0 %2528
    %2530 = vrot.lane.b32.xlu0 %v2114, 20
    %v2531 = vpop.permute.xlu0 %2530
    %2532 = vrot.lane.b32.xlu0 %v2115, 20
    %v2533 = vpop.permute.xlu0 %2532
    %2534 = vrot.lane.b32.xlu0 %v2116, 20
    %v2535 = vpop.permute.xlu0 %2534
    %2536 = vrot.lane.b32.xlu0 %v2117, 20
    %v2537 = vpop.permute.xlu0 %2536
    %2570 = vrot.lane.b32.xlu0 %v2118, 40
    %v2571 = vpop.permute.xlu0 %2570
    %2572 = vrot.lane.b32.xlu0 %v2119, 40
    %v2573 = vpop.permute.xlu0 %2572
    %2574 = vrot.lane.b32.xlu0 %v2120, 40
    %v2575 = vpop.permute.xlu0 %2574
    %2576 = vrot.lane.b32.xlu0 %v2121, 40
    %v2577 = vpop.permute.xlu0 %2576
    %2578 = vrot.lane.b32.xlu0 %v2122, 40
    %v2579 = vpop.permute.xlu0 %2578
    %2580 = vrot.lane.b32.xlu0 %v2123, 40
    %v2581 = vpop.permute.xlu0 %2580
    %2582 = vrot.lane.b32.xlu0 %v2124, 40
    %v2583 = vpop.permute.xlu0 %2582
    %2584 = vrot.lane.b32.xlu0 %v2125, 40
    %v2585 = vpop.permute.xlu0 %2584
    %2586 = vrot.lane.b32.xlu0 %v2126, 40
    %v2587 = vpop.permute.xlu0 %2586
    %2588 = vrot.lane.b32.xlu0 %v2127, 40
    %v2589 = vpop.permute.xlu0 %2588
    %2590 = vrot.lane.b32.xlu0 %v2128, 40
    %v2591 = vpop.permute.xlu0 %2590
    %2592 = vrot.lane.b32.xlu0 %v2129, 40
    %v2593 = vpop.permute.xlu0 %2592
    %2594 = vrot.lane.b32.xlu0 %v2130, 40
    %v2595 = vpop.permute.xlu0 %2594
    %2596 = vrot.lane.b32.xlu0 %v2131, 40
    %v2597 = vpop.permute.xlu0 %2596
    %2598 = vrot.lane.b32.xlu0 %v2132, 40
    %v2599 = vpop.permute.xlu0 %2598
    %2600 = vrot.lane.b32.xlu0 %v2133, 40
    %v2601 = vpop.permute.xlu0 %2600
    %2634 = vrot.lane.b32.xlu0 %v2134, 60
    %v2635 = vpop.permute.xlu0 %2634
    %2636 = vrot.lane.b32.xlu0 %v2135, 60
    %v2637 = vpop.permute.xlu0 %2636
    %2638 = vrot.lane.b32.xlu0 %v2136, 60
    %v2639 = vpop.permute.xlu0 %2638
    %2640 = vrot.lane.b32.xlu0 %v2137, 60
    %v2641 = vpop.permute.xlu0 %2640
    %2642 = vrot.lane.b32.xlu0 %v2138, 60
    %v2643 = vpop.permute.xlu0 %2642
    %2644 = vrot.lane.b32.xlu0 %v2139, 60
    %v2645 = vpop.permute.xlu0 %2644
    %2646 = vrot.lane.b32.xlu0 %v2140, 60
    %v2647 = vpop.permute.xlu0 %2646
    %2648 = vrot.lane.b32.xlu0 %v2141, 60
    %v2649 = vpop.permute.xlu0 %2648
    %2650 = vrot.lane.b32.xlu0 %v2142, 60
    %v2651 = vpop.permute.xlu0 %2650
    %2652 = vrot.lane.b32.xlu0 %v2143, 60
    %v2653 = vpop.permute.xlu0 %2652
    %2654 = vrot.lane.b32.xlu0 %v2144, 60
    %v2655 = vpop.permute.xlu0 %2654
    %2656 = vrot.lane.b32.xlu0 %v2145, 60
    %v2657 = vpop.permute.xlu0 %2656
    %2658 = vrot.lane.b32.xlu0 %v2146, 60
    %v2659 = vpop.permute.xlu0 %2658
    %2660 = vrot.lane.b32.xlu0 %v2147, 60
    %v2661 = vpop.permute.xlu0 %2660
    %2662 = vrot.lane.b32.xlu0 %v2148, 60
    %v2663 = vpop.permute.xlu0 %2662
    %2664 = vrot.lane.b32.xlu0 %v2149, 60
    %v2665 = vpop.permute.xlu0 %2664
    %2698 = vrot.lane.b32.xlu0 %v2150, 80
    %v2699 = vpop.permute.xlu0 %2698
    %2700 = vrot.lane.b32.xlu0 %v2151, 80
    %v2701 = vpop.permute.xlu0 %2700
    %2702 = vrot.lane.b32.xlu0 %v2152, 80
    %v2703 = vpop.permute.xlu0 %2702
    %2704 = vrot.lane.b32.xlu0 %v2153, 80
    %v2705 = vpop.permute.xlu0 %2704
    %2706 = vrot.lane.b32.xlu0 %v2154, 80
    %v2707 = vpop.permute.xlu0 %2706
    %2708 = vrot.lane.b32.xlu0 %v2155, 80
    %v2709 = vpop.permute.xlu0 %2708
    %2710 = vrot.lane.b32.xlu0 %v2156, 80
    %v2711 = vpop.permute.xlu0 %2710
    %2712 = vrot.lane.b32.xlu0 %v2157, 80
    %v2713 = vpop.permute.xlu0 %2712
    %2714 = vrot.lane.b32.xlu0 %v2158, 80
    %v2715 = vpop.permute.xlu0 %2714
    %2716 = vrot.lane.b32.xlu0 %v2159, 80
    %v2717 = vpop.permute.xlu0 %2716
    %2718 = vrot.lane.b32.xlu0 %v2160, 80
    %v2719 = vpop.permute.xlu0 %2718
    %2720 = vrot.lane.b32.xlu0 %v2161, 80
    %v2721 = vpop.permute.xlu0 %2720
    %2722 = vrot.lane.b32.xlu0 %v2162, 80
    %v2723 = vpop.permute.xlu0 %2722
    %2724 = vrot.lane.b32.xlu0 %v2163, 80
    %v2725 = vpop.permute.xlu0 %2724
    %2726 = vrot.lane.b32.xlu0 %v2164, 80
    %v2727 = vpop.permute.xlu0 %2726
    %2728 = vrot.lane.b32.xlu0 %v2165, 80
    %v2729 = vpop.permute.xlu0 %2728
    %2762 = vrot.lane.b32.xlu0 %v2167, 100
    %v2763 = vpop.permute.xlu0 %2762
    %2764 = vrot.lane.b32.xlu0 %v2168, 100
    %v2765 = vpop.permute.xlu0 %2764
    %2766 = vrot.lane.b32.xlu0 %v2169, 100
    %v2767 = vpop.permute.xlu0 %2766
    %2768 = vrot.lane.b32.xlu0 %v2170, 100
    %v2769 = vpop.permute.xlu0 %2768
    %2770 = vrot.lane.b32.xlu0 %v2171, 100
    %v2771 = vpop.permute.xlu0 %2770
    %2772 = vrot.lane.b32.xlu0 %v2172, 100
    %v2773 = vpop.permute.xlu0 %2772
    %2774 = vrot.lane.b32.xlu0 %v2173, 100
    %v2775 = vpop.permute.xlu0 %2774
    %2776 = vrot.lane.b32.xlu0 %v2174, 100
    %v2777 = vpop.permute.xlu0 %2776
    %2778 = vrot.lane.b32.xlu0 %v2175, 100
    %v2779 = vpop.permute.xlu0 %2778
    %2780 = vrot.lane.b32.xlu0 %v2176, 100
    %v2781 = vpop.permute.xlu0 %2780
    %2782 = vrot.lane.b32.xlu0 %v2177, 100
    %v2783 = vpop.permute.xlu0 %2782
    %2784 = vrot.lane.b32.xlu0 %v2178, 100
    %v2785 = vpop.permute.xlu0 %2784
    %2786 = vrot.lane.b32.xlu0 %v2179, 100
    %v2787 = vpop.permute.xlu0 %2786
    %2788 = vrot.lane.b32.xlu0 %v2180, 100
    %v2789 = vpop.permute.xlu0 %2788
    %2790 = vrot.lane.b32.xlu0 %v2181, 100
    %v2791 = vpop.permute.xlu0 %2790
    %2792 = vrot.lane.b32.xlu0 %v2182, 100
    %v2793 = vpop.permute.xlu0 %2792
    %2826 = vrot.lane.b32.xlu0 %v2183, 120
    %v2827 = vpop.permute.xlu0 %2826
    %2828 = vrot.lane.b32.xlu0 %v2184, 120
    %v2829 = vpop.permute.xlu0 %2828
    %2830 = vrot.lane.b32.xlu0 %v2185, 120
    %v2831 = vpop.permute.xlu0 %2830
    %2832 = vrot.lane.b32.xlu0 %v2186, 120
    %v2833 = vpop.permute.xlu0 %2832
    %2834 = vrot.lane.b32.xlu0 %v2187, 120
    %v2835 = vpop.permute.xlu0 %2834
    %2836 = vrot.lane.b32.xlu0 %v2188, 120
    %v2837 = vpop.permute.xlu0 %2836
    %2838 = vrot.lane.b32.xlu0 %v2189, 120
    %v2839 = vpop.permute.xlu0 %2838
    %2840 = vrot.lane.b32.xlu0 %v2190, 120
    %v2841 = vpop.permute.xlu0 %2840
    %2842 = vrot.lane.b32.xlu0 %v2191, 120
    %v2843 = vpop.permute.xlu0 %2842
    %2844 = vrot.lane.b32.xlu0 %v2192, 120
    %v2845 = vpop.permute.xlu0 %2844
    %2846 = vrot.lane.b32.xlu0 %v2193, 120
    %v2847 = vpop.permute.xlu0 %2846
    %2848 = vrot.lane.b32.xlu0 %v2194, 120
    %v2849 = vpop.permute.xlu0 %2848
    %2850 = vrot.lane.b32.xlu0 %v2195, 120
    %v2851 = vpop.permute.xlu0 %2850
    %2852 = vrot.lane.b32.xlu0 %v2196, 120
    %v2853 = vpop.permute.xlu0 %2852
    %2854 = vrot.lane.b32.xlu0 %v2197, 120
    %v2855 = vpop.permute.xlu0 %2854
    %2856 = vrot.lane.b32.xlu0 %v2198, 120
    %v2857 = vpop.permute.xlu0 %2856
    %2890 = vrot.lane.b32.xlu0 %v2199, 12
    %v2891 = vpop.permute.xlu0 %2890
    %2892 = vrot.lane.b32.xlu0 %v2200, 12
    %v2893 = vpop.permute.xlu0 %2892
    %2894 = vrot.lane.b32.xlu0 %v2201, 12
    %v2895 = vpop.permute.xlu0 %2894
    %2896 = vrot.lane.b32.xlu0 %v2202, 12
    %v2897 = vpop.permute.xlu0 %2896
    %2898 = vrot.lane.b32.xlu0 %v2203, 12
    %v2899 = vpop.permute.xlu0 %2898
    %2900 = vrot.lane.b32.xlu0 %v2204, 12
    %v2901 = vpop.permute.xlu0 %2900
    %2902 = vrot.lane.b32.xlu0 %v2205, 12
    %v2903 = vpop.permute.xlu0 %2902
    %2904 = vrot.lane.b32.xlu0 %v2206, 12
    %v2905 = vpop.permute.xlu0 %2904
    %2906 = vrot.lane.b32.xlu0 %v2207, 12
    %v2907 = vpop.permute.xlu0 %2906
    %2908 = vrot.lane.b32.xlu0 %v2208, 12
    %v2909 = vpop.permute.xlu0 %2908
    %2910 = vrot.lane.b32.xlu0 %v2209, 12
    %v2911 = vpop.permute.xlu0 %2910
    %2912 = vrot.lane.b32.xlu0 %v2210, 12
    %v2913 = vpop.permute.xlu0 %2912
    %2914 = vrot.lane.b32.xlu0 %v2211, 12
    %v2915 = vpop.permute.xlu0 %2914
    %2916 = vrot.lane.b32.xlu0 %v2212, 12
    %v2917 = vpop.permute.xlu0 %2916
    %2918 = vrot.lane.b32.xlu0 %v2213, 12
    %v2919 = vpop.permute.xlu0 %2918
    %2920 = vrot.lane.b32.xlu0 %v2214, 12
    %v2921 = vpop.permute.xlu0 %2920
    %2954 = vrot.lane.b32.xlu0 %v2215, 32
    %v2955 = vpop.permute.xlu0 %2954
    %2956 = vrot.lane.b32.xlu0 %v2216, 32
    %v2957 = vpop.permute.xlu0 %2956
    %2958 = vrot.lane.b32.xlu0 %v2217, 32
    %v2959 = vpop.permute.xlu0 %2958
    %2960 = vrot.lane.b32.xlu0 %v2218, 32
    %v2961 = vpop.permute.xlu0 %2960
    %2962 = vrot.lane.b32.xlu0 %v2219, 32
    %v2963 = vpop.permute.xlu0 %2962
    %2964 = vrot.lane.b32.xlu0 %v2220, 32
    %v2965 = vpop.permute.xlu0 %2964
    %2966 = vrot.lane.b32.xlu0 %v2221, 32
    %v2967 = vpop.permute.xlu0 %2966
    %2968 = vrot.lane.b32.xlu0 %v2222, 32
    %v2969 = vpop.permute.xlu0 %2968
    %2970 = vrot.lane.b32.xlu0 %v2223, 32
    %v2971 = vpop.permute.xlu0 %2970
    %2972 = vrot.lane.b32.xlu0 %v2224, 32
    %v2973 = vpop.permute.xlu0 %2972
    %2974 = vrot.lane.b32.xlu0 %v2225, 32
    %v2975 = vpop.permute.xlu0 %2974
    %2976 = vrot.lane.b32.xlu0 %v2226, 32
    %v2977 = vpop.permute.xlu0 %2976
    %2978 = vrot.lane.b32.xlu0 %v2227, 32
    %v2979 = vpop.permute.xlu0 %2978
    %2980 = vrot.lane.b32.xlu0 %v2228, 32
    %v2981 = vpop.permute.xlu0 %2980
    %2982 = vrot.lane.b32.xlu0 %v2229, 32
    %v2983 = vpop.permute.xlu0 %2982
    %2984 = vrot.lane.b32.xlu0 %v2230, 32
    %v2985 = vpop.permute.xlu0 %2984
    %3018 = vrot.lane.b32.xlu0 %v2231, 52
    %v3019 = vpop.permute.xlu0 %3018
    %3020 = vrot.lane.b32.xlu0 %v2232, 52
    %v3021 = vpop.permute.xlu0 %3020
    %3022 = vrot.lane.b32.xlu0 %v2233, 52
    %v3023 = vpop.permute.xlu0 %3022
    %3024 = vrot.lane.b32.xlu0 %v2234, 52
    %v3025 = vpop.permute.xlu0 %3024
    %3026 = vrot.lane.b32.xlu0 %v2235, 52
    %v3027 = vpop.permute.xlu0 %3026
    %3028 = vrot.lane.b32.xlu0 %v2236, 52
    %v3029 = vpop.permute.xlu0 %3028
    %3030 = vrot.lane.b32.xlu0 %v2237, 52
    %v3031 = vpop.permute.xlu0 %3030
    %3032 = vrot.lane.b32.xlu0 %v2238, 52
    %v3033 = vpop.permute.xlu0 %3032
    %3034 = vrot.lane.b32.xlu0 %v2239, 52
    %v3035 = vpop.permute.xlu0 %3034
    %3036 = vrot.lane.b32.xlu0 %v2240, 52
    %v3037 = vpop.permute.xlu0 %3036
    %3038 = vrot.lane.b32.xlu0 %v2241, 52
    %v3039 = vpop.permute.xlu0 %3038
    %3040 = vrot.lane.b32.xlu0 %v2242, 52
    %v3041 = vpop.permute.xlu0 %3040
    %3042 = vrot.lane.b32.xlu0 %v2243, 52
    %v3043 = vpop.permute.xlu0 %3042
    %3044 = vrot.lane.b32.xlu0 %v2244, 52
    %v3045 = vpop.permute.xlu0 %3044
    %3046 = vrot.lane.b32.xlu0 %v2245, 52
    %v3047 = vpop.permute.xlu0 %3046
    %3048 = vrot.lane.b32.xlu0 %v2246, 52
    %v3049 = vpop.permute.xlu0 %3048
    %3082 = vrot.lane.b32.xlu0 %v2248, 72
    %v3083 = vpop.permute.xlu0 %3082
    %3084 = vrot.lane.b32.xlu0 %v2249, 72
    %v3085 = vpop.permute.xlu0 %3084
    %3086 = vrot.lane.b32.xlu0 %v2250, 72
    %v3087 = vpop.permute.xlu0 %3086
    %3088 = vrot.lane.b32.xlu0 %v2251, 72
    %v3089 = vpop.permute.xlu0 %3088
    %3090 = vrot.lane.b32.xlu0 %v2252, 72
    %v3091 = vpop.permute.xlu0 %3090
    %3092 = vrot.lane.b32.xlu0 %v2253, 72
    %v3093 = vpop.permute.xlu0 %3092
    %3094 = vrot.lane.b32.xlu0 %v2254, 72
    %v3095 = vpop.permute.xlu0 %3094
    %3096 = vrot.lane.b32.xlu0 %v2255, 72
    %v3097 = vpop.permute.xlu0 %3096
    %3098 = vrot.lane.b32.xlu0 %v2256, 72
    %v3099 = vpop.permute.xlu0 %3098
    %3100 = vrot.lane.b32.xlu0 %v2257, 72
    %v3101 = vpop.permute.xlu0 %3100
    %3102 = vrot.lane.b32.xlu0 %v2258, 72
    %v3103 = vpop.permute.xlu0 %3102
    %3104 = vrot.lane.b32.xlu0 %v2259, 72
    %v3105 = vpop.permute.xlu0 %3104
    %3106 = vrot.lane.b32.xlu0 %v2260, 72
    %v3107 = vpop.permute.xlu0 %3106
    %3108 = vrot.lane.b32.xlu0 %v2261, 72
    %v3109 = vpop.permute.xlu0 %3108
    %3110 = vrot.lane.b32.xlu0 %v2262, 72
    %v3111 = vpop.permute.xlu0 %3110
    %3112 = vrot.lane.b32.xlu0 %v2263, 72
    %v3113 = vpop.permute.xlu0 %3112
    %3146 = vrot.lane.b32.xlu0 %v2264, 92
    %v3147 = vpop.permute.xlu0 %3146
    %3148 = vrot.lane.b32.xlu0 %v2265, 92
    %v3149 = vpop.permute.xlu0 %3148
    %3150 = vrot.lane.b32.xlu0 %v2266, 92
    %v3151 = vpop.permute.xlu0 %3150
    %3152 = vrot.lane.b32.xlu0 %v2267, 92
    %v3153 = vpop.permute.xlu0 %3152
    %3154 = vrot.lane.b32.xlu0 %v2268, 92
    %v3155 = vpop.permute.xlu0 %3154
    %3156 = vrot.lane.b32.xlu0 %v2269, 92
    %v3157 = vpop.permute.xlu0 %3156
    %3158 = vrot.lane.b32.xlu0 %v2270, 92
    %v3159 = vpop.permute.xlu0 %3158
    %3160 = vrot.lane.b32.xlu0 %v2271, 92
    %v3161 = vpop.permute.xlu0 %3160
    %3162 = vrot.lane.b32.xlu0 %v2272, 92
    %v3163 = vpop.permute.xlu0 %3162
    %3164 = vrot.lane.b32.xlu0 %v2273, 92
    %v3165 = vpop.permute.xlu0 %3164
    %3166 = vrot.lane.b32.xlu0 %v2274, 92
    %v3167 = vpop.permute.xlu0 %3166
    %3168 = vrot.lane.b32.xlu0 %v2275, 92
    %v3169 = vpop.permute.xlu0 %3168
    %3170 = vrot.lane.b32.xlu0 %v2276, 92
    %v3171 = vpop.permute.xlu0 %3170
    %3172 = vrot.lane.b32.xlu0 %v2277, 92
    %v3173 = vpop.permute.xlu0 %3172
    %3174 = vrot.lane.b32.xlu0 %v2278, 92
    %v3175 = vpop.permute.xlu0 %3174
    %3176 = vrot.lane.b32.xlu0 %v2279, 92
    %v3177 = vpop.permute.xlu0 %3176
    %3210 = vrot.lane.b32.xlu0 %v2280, 112
    %v3211 = vpop.permute.xlu0 %3210
    %3212 = vrot.lane.b32.xlu0 %v2281, 112
    %v3213 = vpop.permute.xlu0 %3212
    %3214 = vrot.lane.b32.xlu0 %v2282, 112
    %v3215 = vpop.permute.xlu0 %3214
    %3216 = vrot.lane.b32.xlu0 %v2283, 112
    %v3217 = vpop.permute.xlu0 %3216
    %3218 = vrot.lane.b32.xlu0 %v2284, 112
    %v3219 = vpop.permute.xlu0 %3218
    %3220 = vrot.lane.b32.xlu0 %v2285, 112
    %v3221 = vpop.permute.xlu0 %3220
    %3222 = vrot.lane.b32.xlu0 %v2286, 112
    %v3223 = vpop.permute.xlu0 %3222
    %3224 = vrot.lane.b32.xlu0 %v2287, 112
    %v3225 = vpop.permute.xlu0 %3224
    %3226 = vrot.lane.b32.xlu0 %v2288, 112
    %v3227 = vpop.permute.xlu0 %3226
    %3228 = vrot.lane.b32.xlu0 %v2289, 112
    %v3229 = vpop.permute.xlu0 %3228
    %3230 = vrot.lane.b32.xlu0 %v2290, 112
    %v3231 = vpop.permute.xlu0 %3230
    %3232 = vrot.lane.b32.xlu0 %v2291, 112
    %v3233 = vpop.permute.xlu0 %3232
    %3234 = vrot.lane.b32.xlu0 %v2292, 112
    %v3235 = vpop.permute.xlu0 %3234
    %3236 = vrot.lane.b32.xlu0 %v2293, 112
    %v3237 = vpop.permute.xlu0 %3236
    %3238 = vrot.lane.b32.xlu0 %v2294, 112
    %v3239 = vpop.permute.xlu0 %3238
    %3240 = vrot.lane.b32.xlu0 %v2295, 112
    %v3241 = vpop.permute.xlu0 %3240
    %3274 = vrot.lane.b32.xlu0 %v2296, 4
    %v3275 = vpop.permute.xlu0 %3274
    %3276 = vrot.lane.b32.xlu0 %v2297, 4
    %v3277 = vpop.permute.xlu0 %3276
    %3278 = vrot.lane.b32.xlu0 %v2298, 4
    %v3279 = vpop.permute.xlu0 %3278
    %3280 = vrot.lane.b32.xlu0 %v2299, 4
    %v3281 = vpop.permute.xlu0 %3280
    %3282 = vrot.lane.b32.xlu0 %v2300, 4
    %v3283 = vpop.permute.xlu0 %3282
    %3284 = vrot.lane.b32.xlu0 %v2301, 4
    %v3285 = vpop.permute.xlu0 %3284
    %3286 = vrot.lane.b32.xlu0 %v2302, 4
    %v3287 = vpop.permute.xlu0 %3286
    %3288 = vrot.lane.b32.xlu0 %v2303, 4
    %v3289 = vpop.permute.xlu0 %3288
    %3290 = vrot.lane.b32.xlu0 %v2304, 4
    %v3291 = vpop.permute.xlu0 %3290
    %3292 = vrot.lane.b32.xlu0 %v2305, 4
    %v3293 = vpop.permute.xlu0 %3292
    %3294 = vrot.lane.b32.xlu0 %v2306, 4
    %v3295 = vpop.permute.xlu0 %3294
    %3296 = vrot.lane.b32.xlu0 %v2307, 4
    %v3297 = vpop.permute.xlu0 %3296
    %3298 = vrot.lane.b32.xlu0 %v2308, 4
    %v3299 = vpop.permute.xlu0 %3298
    %3300 = vrot.lane.b32.xlu0 %v2309, 4
    %v3301 = vpop.permute.xlu0 %3300
    %3302 = vrot.lane.b32.xlu0 %v2310, 4
    %v3303 = vpop.permute.xlu0 %3302
    %3304 = vrot.lane.b32.xlu0 %v2311, 4
    %v3305 = vpop.permute.xlu0 %3304
    %3338 = vrot.lane.b32.xlu0 %v2312, 24
    %v3339 = vpop.permute.xlu0 %3338
    %3340 = vrot.lane.b32.xlu0 %v2313, 24
    %v3341 = vpop.permute.xlu0 %3340
    %3342 = vrot.lane.b32.xlu0 %v2314, 24
    %v3343 = vpop.permute.xlu0 %3342
    %3344 = vrot.lane.b32.xlu0 %v2315, 24
    %v3345 = vpop.permute.xlu0 %3344
    %3346 = vrot.lane.b32.xlu0 %v2316, 24
    %v3347 = vpop.permute.xlu0 %3346
    %3348 = vrot.lane.b32.xlu0 %v2317, 24
    %v3349 = vpop.permute.xlu0 %3348
    %3350 = vrot.lane.b32.xlu0 %v2318, 24
    %v3351 = vpop.permute.xlu0 %3350
    %3352 = vrot.lane.b32.xlu0 %v2319, 24
    %v3353 = vpop.permute.xlu0 %3352
    %3354 = vrot.lane.b32.xlu0 %v2320, 24
    %v3355 = vpop.permute.xlu0 %3354
    %3356 = vrot.lane.b32.xlu0 %v2321, 24
    %v3357 = vpop.permute.xlu0 %3356
    %3358 = vrot.lane.b32.xlu0 %v2322, 24
    %v3359 = vpop.permute.xlu0 %3358
    %3360 = vrot.lane.b32.xlu0 %v2323, 24
    %v3361 = vpop.permute.xlu0 %3360
    %3362 = vrot.lane.b32.xlu0 %v2324, 24
    %v3363 = vpop.permute.xlu0 %3362
    %3364 = vrot.lane.b32.xlu0 %v2325, 24
    %v3365 = vpop.permute.xlu0 %3364
    %3366 = vrot.lane.b32.xlu0 %v2326, 24
    %v3367 = vpop.permute.xlu0 %3366
    %3368 = vrot.lane.b32.xlu0 %v2327, 24
    %v3369 = vpop.permute.xlu0 %3368
    %3402 = vrot.lane.b32.xlu0 %v2329, 44
    %v3403 = vpop.permute.xlu0 %3402
    %3404 = vrot.lane.b32.xlu0 %v2330, 44
    %v3405 = vpop.permute.xlu0 %3404
    %3406 = vrot.lane.b32.xlu0 %v2331, 44
    %v3407 = vpop.permute.xlu0 %3406
    %3408 = vrot.lane.b32.xlu0 %v2332, 44
    %v3409 = vpop.permute.xlu0 %3408
    %3410 = vrot.lane.b32.xlu0 %v2333, 44
    %v3411 = vpop.permute.xlu0 %3410
    %3412 = vrot.lane.b32.xlu0 %v2334, 44
    %v3413 = vpop.permute.xlu0 %3412
    %3414 = vrot.lane.b32.xlu0 %v2335, 44
    %v3415 = vpop.permute.xlu0 %3414
    %3416 = vrot.lane.b32.xlu0 %v2336, 44
    %v3417 = vpop.permute.xlu0 %3416
    %3418 = vrot.lane.b32.xlu0 %v2337, 44
    %v3419 = vpop.permute.xlu0 %3418
    %3420 = vrot.lane.b32.xlu0 %v2338, 44
    %v3421 = vpop.permute.xlu0 %3420
    %3422 = vrot.lane.b32.xlu0 %v2339, 44
    %v3423 = vpop.permute.xlu0 %3422
    %3424 = vrot.lane.b32.xlu0 %v2340, 44
    %v3425 = vpop.permute.xlu0 %3424
    %3426 = vrot.lane.b32.xlu0 %v2341, 44
    %v3427 = vpop.permute.xlu0 %3426
    %3428 = vrot.lane.b32.xlu0 %v2342, 44
    %v3429 = vpop.permute.xlu0 %3428
    %3430 = vrot.lane.b32.xlu0 %v2343, 44
    %v3431 = vpop.permute.xlu0 %3430
    %3432 = vrot.lane.b32.xlu0 %v2344, 44
    %v3433 = vpop.permute.xlu0 %3432
    %v3450 = vsel %vm2037, %v2086, %v2507
    %v3451 = vsel %vm2037, %v2087, %v2509
    %v3452 = vsel %vm2037, %v2088, %v2511
    %v3453 = vsel %vm2037, %v2089, %v2513
    %v3454 = vsel %vm2037, %v2090, %v2515
    %v3455 = vsel %vm2037, %v2091, %v2517
    %v3456 = vsel %vm2037, %v2092, %v2519
    %v3457 = vsel %vm2037, %v2093, %v2521
    %v3458 = vsel %vm2037, %v2094, %v2523
    %v3459 = vsel %vm2037, %v2095, %v2525
    %v3460 = vsel %vm2037, %v2096, %v2527
    %v3461 = vsel %vm2037, %v2097, %v2529
    %v3462 = vsel %vm2037, %v2098, %v2531
    %v3463 = vsel %vm2037, %v2099, %v2533
    %v3464 = vsel %vm2037, %v2100, %v2535
    %v3465 = vsel %vm2037, %v2101, %v2537
    %vm3466 = vcmask 326656
    %v3467 = vsel %vm3466, %v3450, %v2571
    %v3468 = vsel %vm3466, %v3451, %v2573
    %v3469 = vsel %vm3466, %v3452, %v2575
    %v3470 = vsel %vm3466, %v3453, %v2577
    %v3471 = vsel %vm3466, %v3454, %v2579
    %v3472 = vsel %vm3466, %v3455, %v2581
    %v3473 = vsel %vm3466, %v3456, %v2583
    %v3474 = vsel %vm3466, %v3457, %v2585
    %v3475 = vsel %vm3466, %v3458, %v2587
    %v3476 = vsel %vm3466, %v3459, %v2589
    %v3477 = vsel %vm3466, %v3460, %v2591
    %v3478 = vsel %vm3466, %v3461, %v2593
    %v3479 = vsel %vm3466, %v3462, %v2595
    %v3480 = vsel %vm3466, %v3463, %v2597
    %v3481 = vsel %vm3466, %v3464, %v2599
    %v3482 = vsel %vm3466, %v3465, %v2601
    %vm3483 = vcmask 490496
    %v3484 = vsel %vm3483, %v3467, %v2635
    %v3485 = vsel %vm3483, %v3468, %v2637
    %v3486 = vsel %vm3483, %v3469, %v2639
    %v3487 = vsel %vm3483, %v3470, %v2641
    %v3488 = vsel %vm3483, %v3471, %v2643
    %v3489 = vsel %vm3483, %v3472, %v2645
    %v3490 = vsel %vm3483, %v3473, %v2647
    %v3491 = vsel %vm3483, %v3474, %v2649
    %v3492 = vsel %vm3483, %v3475, %v2651
    %v3493 = vsel %vm3483, %v3476, %v2653
    %v3494 = vsel %vm3483, %v3477, %v2655
    %v3495 = vsel %vm3483, %v3478, %v2657
    %v3496 = vsel %vm3483, %v3479, %v2659
    %v3497 = vsel %vm3483, %v3480, %v2661
    %v3498 = vsel %vm3483, %v3481, %v2663
    %v3499 = vsel %vm3483, %v3482, %v2665
    %vm3500 = vcmask 654336
    %v3501 = vsel %vm3500, %v3484, %v2699
    %v3502 = vsel %vm3500, %v3485, %v2701
    %v3503 = vsel %vm3500, %v3486, %v2703
    %v3504 = vsel %vm3500, %v3487, %v2705
    %v3505 = vsel %vm3500, %v3488, %v2707
    %v3506 = vsel %vm3500, %v3489, %v2709
    %v3507 = vsel %vm3500, %v3490, %v2711
    %v3508 = vsel %vm3500, %v3491, %v2713
    %v3509 = vsel %vm3500, %v3492, %v2715
    %v3510 = vsel %vm3500, %v3493, %v2717
    %v3511 = vsel %vm3500, %v3494, %v2719
    %v3512 = vsel %vm3500, %v3495, %v2721
    %v3513 = vsel %vm3500, %v3496, %v2723
    %v3514 = vsel %vm3500, %v3497, %v2725
    %v3515 = vsel %vm3500, %v3498, %v2727
    %v3516 = vsel %vm3500, %v3499, %v2729
    %vm3517 = vcmask 818176
    %v3518 = vsel %vm3517, %v3501, %v2763
    %v3519 = vsel %vm3517, %v3502, %v2765
    %v3520 = vsel %vm3517, %v3503, %v2767
    %v3521 = vsel %vm3517, %v3504, %v2769
    %v3522 = vsel %vm3517, %v3505, %v2771
    %v3523 = vsel %vm3517, %v3506, %v2773
    %v3524 = vsel %vm3517, %v3507, %v2775
    %v3525 = vsel %vm3517, %v3508, %v2777
    %v3526 = vsel %vm3517, %v3509, %v2779
    %v3527 = vsel %vm3517, %v3510, %v2781
    %v3528 = vsel %vm3517, %v3511, %v2783
    %v3529 = vsel %vm3517, %v3512, %v2785
    %v3530 = vsel %vm3517, %v3513, %v2787
    %v3531 = vsel %vm3517, %v3514, %v2789
    %v3532 = vsel %vm3517, %v3515, %v2791
    %v3533 = vsel %vm3517, %v3516, %v2793
    %vm3534 = vcmask 982016
    %v3535 = vsel %vm3534, %v3518, %v2827
    %v3536 = vsel %vm3534, %v3519, %v2829
    %v3537 = vsel %vm3534, %v3520, %v2831
    %v3538 = vsel %vm3534, %v3521, %v2833
    %v3539 = vsel %vm3534, %v3522, %v2835
    %v3540 = vsel %vm3534, %v3523, %v2837
    %v3541 = vsel %vm3534, %v3524, %v2839
    %v3542 = vsel %vm3534, %v3525, %v2841
    %v3543 = vsel %vm3534, %v3526, %v2843
    %v3544 = vsel %vm3534, %v3527, %v2845
    %v3545 = vsel %vm3534, %v3528, %v2847
    %v3546 = vsel %vm3534, %v3529, %v2849
    %v3547 = vsel %vm3534, %v3530, %v2851
    %v3548 = vsel %vm3534, %v3531, %v2853
    %v3549 = vsel %vm3534, %v3532, %v2855
    %v3550 = vsel %vm3534, %v3533, %v2857
    %vm3551 = vcmask 97280
    %v3552 = vsel %vm3551, %v2827, %v2891
    %v3553 = vsel %vm3551, %v2829, %v2893
    %v3554 = vsel %vm3551, %v2831, %v2895
    %v3555 = vsel %vm3551, %v2833, %v2897
    %v3556 = vsel %vm3551, %v2835, %v2899
    %v3557 = vsel %vm3551, %v2837, %v2901
    %v3558 = vsel %vm3551, %v2839, %v2903
    %v3559 = vsel %vm3551, %v2841, %v2905
    %v3560 = vsel %vm3551, %v2843, %v2907
    %v3561 = vsel %vm3551, %v2845, %v2909
    %v3562 = vsel %vm3551, %v2847, %v2911
    %v3563 = vsel %vm3551, %v2849, %v2913
    %v3564 = vsel %vm3551, %v2851, %v2915
    %v3565 = vsel %vm3551, %v2853, %v2917
    %v3566 = vsel %vm3551, %v2855, %v2919
    %v3567 = vsel %vm3551, %v2857, %v2921
    %vm3568 = vcmask 261120
    %v3569 = vsel %vm3568, %v3552, %v2955
    %v3570 = vsel %vm3568, %v3553, %v2957
    %v3571 = vsel %vm3568, %v3554, %v2959
    %v3572 = vsel %vm3568, %v3555, %v2961
    %v3573 = vsel %vm3568, %v3556, %v2963
    %v3574 = vsel %vm3568, %v3557, %v2965
    %v3575 = vsel %vm3568, %v3558, %v2967
    %v3576 = vsel %vm3568, %v3559, %v2969
    %v3577 = vsel %vm3568, %v3560, %v2971
    %v3578 = vsel %vm3568, %v3561, %v2973
    %v3579 = vsel %vm3568, %v3562, %v2975
    %v3580 = vsel %vm3568, %v3563, %v2977
    %v3581 = vsel %vm3568, %v3564, %v2979
    %v3582 = vsel %vm3568, %v3565, %v2981
    %v3583 = vsel %vm3568, %v3566, %v2983
    %v3584 = vsel %vm3568, %v3567, %v2985
    %vm3585 = vcmask 424960
    %v3586 = vsel %vm3585, %v3569, %v3019
    %v3587 = vsel %vm3585, %v3570, %v3021
    %v3588 = vsel %vm3585, %v3571, %v3023
    %v3589 = vsel %vm3585, %v3572, %v3025
    %v3590 = vsel %vm3585, %v3573, %v3027
    %v3591 = vsel %vm3585, %v3574, %v3029
    %v3592 = vsel %vm3585, %v3575, %v3031
    %v3593 = vsel %vm3585, %v3576, %v3033
    %v3594 = vsel %vm3585, %v3577, %v3035
    %v3595 = vsel %vm3585, %v3578, %v3037
    %v3596 = vsel %vm3585, %v3579, %v3039
    %v3597 = vsel %vm3585, %v3580, %v3041
    %v3598 = vsel %vm3585, %v3581, %v3043
    %v3599 = vsel %vm3585, %v3582, %v3045
    %v3600 = vsel %vm3585, %v3583, %v3047
    %v3601 = vsel %vm3585, %v3584, %v3049
    %vm3602 = vcmask 588800
    %v3603 = vsel %vm3602, %v3586, %v3083
    %v3604 = vsel %vm3602, %v3587, %v3085
    %v3605 = vsel %vm3602, %v3588, %v3087
    %v3606 = vsel %vm3602, %v3589, %v3089
    %v3607 = vsel %vm3602, %v3590, %v3091
    %v3608 = vsel %vm3602, %v3591, %v3093
    %v3609 = vsel %vm3602, %v3592, %v3095
    %v3610 = vsel %vm3602, %v3593, %v3097
    %v3611 = vsel %vm3602, %v3594, %v3099
    %v3612 = vsel %vm3602, %v3595, %v3101
    %v3613 = vsel %vm3602, %v3596, %v3103
    %v3614 = vsel %vm3602, %v3597, %v3105
    %v3615 = vsel %vm3602, %v3598, %v3107
    %v3616 = vsel %vm3602, %v3599, %v3109
    %v3617 = vsel %vm3602, %v3600, %v3111
    %v3618 = vsel %vm3602, %v3601, %v3113
    %vm3619 = vcmask 752640
    %v3620 = vsel %vm3619, %v3603, %v3147
    %v3621 = vsel %vm3619, %v3604, %v3149
    %v3622 = vsel %vm3619, %v3605, %v3151
    %v3623 = vsel %vm3619, %v3606, %v3153
    %v3624 = vsel %vm3619, %v3607, %v3155
    %v3625 = vsel %vm3619, %v3608, %v3157
    %v3626 = vsel %vm3619, %v3609, %v3159
    %v3627 = vsel %vm3619, %v3610, %v3161
    %v3628 = vsel %vm3619, %v3611, %v3163
    %v3629 = vsel %vm3619, %v3612, %v3165
    %v3630 = vsel %vm3619, %v3613, %v3167
    %v3631 = vsel %vm3619, %v3614, %v3169
    %v3632 = vsel %vm3619, %v3615, %v3171
    %v3633 = vsel %vm3619, %v3616, %v3173
    %v3634 = vsel %vm3619, %v3617, %v3175
    %v3635 = vsel %vm3619, %v3618, %v3177
    %vm3636 = vcmask 916480
    %v3637 = vsel %vm3636, %v3620, %v3211
    %v3638 = vsel %vm3636, %v3621, %v3213
    %v3639 = vsel %vm3636, %v3622, %v3215
    %v3640 = vsel %vm3636, %v3623, %v3217
    %v3641 = vsel %vm3636, %v3624, %v3219
    %v3642 = vsel %vm3636, %v3625, %v3221
    %v3643 = vsel %vm3636, %v3626, %v3223
    %v3644 = vsel %vm3636, %v3627, %v3225
    %v3645 = vsel %vm3636, %v3628, %v3227
    %v3646 = vsel %vm3636, %v3629, %v3229
    %v3647 = vsel %vm3636, %v3630, %v3231
    %v3648 = vsel %vm3636, %v3631, %v3233
    %v3649 = vsel %vm3636, %v3632, %v3235
    %v3650 = vsel %vm3636, %v3633, %v3237
    %v3651 = vsel %vm3636, %v3634, %v3239
    %v3652 = vsel %vm3636, %v3635, %v3241
    %vm3653 = vcmask 31744
    %v3654 = vsel %vm3653, %v3211, %v3275
    %v3655 = vsel %vm3653, %v3213, %v3277
    %v3656 = vsel %vm3653, %v3215, %v3279
    %v3657 = vsel %vm3653, %v3217, %v3281
    %v3658 = vsel %vm3653, %v3219, %v3283
    %v3659 = vsel %vm3653, %v3221, %v3285
    %v3660 = vsel %vm3653, %v3223, %v3287
    %v3661 = vsel %vm3653, %v3225, %v3289
    %v3662 = vsel %vm3653, %v3227, %v3291
    %v3663 = vsel %vm3653, %v3229, %v3293
    %v3664 = vsel %vm3653, %v3231, %v3295
    %v3665 = vsel %vm3653, %v3233, %v3297
    %v3666 = vsel %vm3653, %v3235, %v3299
    %v3667 = vsel %vm3653, %v3237, %v3301
    %v3668 = vsel %vm3653, %v3239, %v3303
    %v3669 = vsel %vm3653, %v3241, %v3305
    %vm3670 = vcmask 195584
    %v3671 = vsel %vm3670, %v3654, %v3339
    %v3672 = vsel %vm3670, %v3655, %v3341
    %v3673 = vsel %vm3670, %v3656, %v3343
    %v3674 = vsel %vm3670, %v3657, %v3345
    %v3675 = vsel %vm3670, %v3658, %v3347
    %v3676 = vsel %vm3670, %v3659, %v3349
    %v3677 = vsel %vm3670, %v3660, %v3351
    %v3678 = vsel %vm3670, %v3661, %v3353
    %v3679 = vsel %vm3670, %v3662, %v3355
    %v3680 = vsel %vm3670, %v3663, %v3357
    %v3681 = vsel %vm3670, %v3664, %v3359
    %v3682 = vsel %vm3670, %v3665, %v3361
    %v3683 = vsel %vm3670, %v3666, %v3363
    %v3684 = vsel %vm3670, %v3667, %v3365
    %v3685 = vsel %vm3670, %v3668, %v3367
    %v3686 = vsel %vm3670, %v3669, %v3369
    %vm3687 = vcmask 359424
    %v3688 = vsel %vm3687, %v3671, %v3403
    %v3689 = vsel %vm3687, %v3672, %v3405
    %v3690 = vsel %vm3687, %v3673, %v3407
    %v3691 = vsel %vm3687, %v3674, %v3409
    %v3692 = vsel %vm3687, %v3675, %v3411
    %v3693 = vsel %vm3687, %v3676, %v3413
    %v3694 = vsel %vm3687, %v3677, %v3415
    %v3695 = vsel %vm3687, %v3678, %v3417
    %v3696 = vsel %vm3687, %v3679, %v3419
    %v3697 = vsel %vm3687, %v3680, %v3421
    %v3698 = vsel %vm3687, %v3681, %v3423
    %v3699 = vsel %vm3687, %v3682, %v3425
    %v3700 = vsel %vm3687, %v3683, %v3427
    %v3701 = vsel %vm3687, %v3684, %v3429
    %v3702 = vsel %vm3687, %v3685, %v3431
    %v3703 = vsel %vm3687, %v3686, %v3433
    %3720 = vrot.lane.b32.xlu0 %v2361, 20
    %v3721 = vpop.permute.xlu0 %3720
    %3722 = vrot.lane.b32.xlu0 %v2362, 20
    %v3723 = vpop.permute.xlu0 %3722
    %3724 = vrot.lane.b32.xlu0 %v2363, 20
    %v3725 = vpop.permute.xlu0 %3724
    %3726 = vrot.lane.b32.xlu0 %v2364, 20
    %v3727 = vpop.permute.xlu0 %3726
    %3728 = vrot.lane.b32.xlu0 %v2365, 20
    %v3729 = vpop.permute.xlu0 %3728
    %3730 = vrot.lane.b32.xlu0 %v2366, 20
    %v3731 = vpop.permute.xlu0 %3730
    %3732 = vrot.lane.b32.xlu0 %v2367, 20
    %v3733 = vpop.permute.xlu0 %3732
    %3734 = vrot.lane.b32.xlu0 %v2368, 20
    %v3735 = vpop.permute.xlu0 %3734
    %3736 = vrot.lane.b32.xlu0 %v2369, 20
    %v3737 = vpop.permute.xlu0 %3736
    %3738 = vrot.lane.b32.xlu0 %v2370, 20
    %v3739 = vpop.permute.xlu0 %3738
    %3740 = vrot.lane.b32.xlu0 %v2371, 20
    %v3741 = vpop.permute.xlu0 %3740
    %3742 = vrot.lane.b32.xlu0 %v2372, 20
    %v3743 = vpop.permute.xlu0 %3742
    %3744 = vrot.lane.b32.xlu0 %v2373, 20
    %v3745 = vpop.permute.xlu0 %3744
    %3746 = vrot.lane.b32.xlu0 %v2374, 20
    %v3747 = vpop.permute.xlu0 %3746
    %3748 = vrot.lane.b32.xlu0 %v2375, 20
    %v3749 = vpop.permute.xlu0 %3748
    %3750 = vrot.lane.b32.xlu0 %v2376, 20
    %v3751 = vpop.permute.xlu0 %3750
    %3784 = vrot.lane.b32.xlu0 %v2377, 40
    %v3785 = vpop.permute.xlu0 %3784
    %3786 = vrot.lane.b32.xlu0 %v2378, 40
    %v3787 = vpop.permute.xlu0 %3786
    %3788 = vrot.lane.b32.xlu0 %v2379, 40
    %v3789 = vpop.permute.xlu0 %3788
    %3790 = vrot.lane.b32.xlu0 %v2380, 40
    %v3791 = vpop.permute.xlu0 %3790
    %3792 = vrot.lane.b32.xlu0 %v2381, 40
    %v3793 = vpop.permute.xlu0 %3792
    %3794 = vrot.lane.b32.xlu0 %v2382, 40
    %v3795 = vpop.permute.xlu0 %3794
    %3796 = vrot.lane.b32.xlu0 %v2383, 40
    %v3797 = vpop.permute.xlu0 %3796
    %3798 = vrot.lane.b32.xlu0 %v2384, 40
    %v3799 = vpop.permute.xlu0 %3798
    %3800 = vrot.lane.b32.xlu0 %v2385, 40
    %v3801 = vpop.permute.xlu0 %3800
    %3802 = vrot.lane.b32.xlu0 %v2386, 40
    %v3803 = vpop.permute.xlu0 %3802
    %3804 = vrot.lane.b32.xlu0 %v2387, 40
    %v3805 = vpop.permute.xlu0 %3804
    %3806 = vrot.lane.b32.xlu0 %v2388, 40
    %v3807 = vpop.permute.xlu0 %3806
    %3808 = vrot.lane.b32.xlu0 %v2389, 40
    %v3809 = vpop.permute.xlu0 %3808
    %3810 = vrot.lane.b32.xlu0 %v2390, 40
    %v3811 = vpop.permute.xlu0 %3810
    %3812 = vrot.lane.b32.xlu0 %v2391, 40
    %v3813 = vpop.permute.xlu0 %3812
    %3814 = vrot.lane.b32.xlu0 %v2392, 40
    %v3815 = vpop.permute.xlu0 %3814
    %3848 = vrot.lane.b32.xlu0 %v2393, 60
    %v3849 = vpop.permute.xlu0 %3848
    %3850 = vrot.lane.b32.xlu0 %v2394, 60
    %v3851 = vpop.permute.xlu0 %3850
    %3852 = vrot.lane.b32.xlu0 %v2395, 60
    %v3853 = vpop.permute.xlu0 %3852
    %3854 = vrot.lane.b32.xlu0 %v2396, 60
    %v3855 = vpop.permute.xlu0 %3854
    %3856 = vrot.lane.b32.xlu0 %v2397, 60
    %v3857 = vpop.permute.xlu0 %3856
    %3858 = vrot.lane.b32.xlu0 %v2398, 60
    %v3859 = vpop.permute.xlu0 %3858
    %3860 = vrot.lane.b32.xlu0 %v2399, 60
    %v3861 = vpop.permute.xlu0 %3860
    %3862 = vrot.lane.b32.xlu0 %v2400, 60
    %v3863 = vpop.permute.xlu0 %3862
    %3864 = vrot.lane.b32.xlu0 %v2401, 60
    %v3865 = vpop.permute.xlu0 %3864
    %3866 = vrot.lane.b32.xlu0 %v2402, 60
    %v3867 = vpop.permute.xlu0 %3866
    %3868 = vrot.lane.b32.xlu0 %v2403, 60
    %v3869 = vpop.permute.xlu0 %3868
    %3870 = vrot.lane.b32.xlu0 %v2404, 60
    %v3871 = vpop.permute.xlu0 %3870
    %3872 = vrot.lane.b32.xlu0 %v2405, 60
    %v3873 = vpop.permute.xlu0 %3872
    %3874 = vrot.lane.b32.xlu0 %v2406, 60
    %v3875 = vpop.permute.xlu0 %3874
    %3876 = vrot.lane.b32.xlu0 %v2407, 60
    %v3877 = vpop.permute.xlu0 %3876
    %3878 = vrot.lane.b32.xlu0 %v2408, 60
    %v3879 = vpop.permute.xlu0 %3878
    %3912 = vrot.lane.b32.xlu0 %v2410, 80
    %v3913 = vpop.permute.xlu0 %3912
    %3914 = vrot.lane.b32.xlu0 %v2411, 80
    %v3915 = vpop.permute.xlu0 %3914
    %3916 = vrot.lane.b32.xlu0 %v2412, 80
    %v3917 = vpop.permute.xlu0 %3916
    %3918 = vrot.lane.b32.xlu0 %v2413, 80
    %v3919 = vpop.permute.xlu0 %3918
    %3920 = vrot.lane.b32.xlu0 %v2414, 80
    %v3921 = vpop.permute.xlu0 %3920
    %3922 = vrot.lane.b32.xlu0 %v2415, 80
    %v3923 = vpop.permute.xlu0 %3922
    %3924 = vrot.lane.b32.xlu0 %v2416, 80
    %v3925 = vpop.permute.xlu0 %3924
    %3926 = vrot.lane.b32.xlu0 %v2417, 80
    %v3927 = vpop.permute.xlu0 %3926
    %3928 = vrot.lane.b32.xlu0 %v2418, 80
    %v3929 = vpop.permute.xlu0 %3928
    %3930 = vrot.lane.b32.xlu0 %v2419, 80
    %v3931 = vpop.permute.xlu0 %3930
    %3932 = vrot.lane.b32.xlu0 %v2420, 80
    %v3933 = vpop.permute.xlu0 %3932
    %3934 = vrot.lane.b32.xlu0 %v2421, 80
    %v3935 = vpop.permute.xlu0 %3934
    %3936 = vrot.lane.b32.xlu0 %v2422, 80
    %v3937 = vpop.permute.xlu0 %3936
    %3938 = vrot.lane.b32.xlu0 %v2423, 80
    %v3939 = vpop.permute.xlu0 %3938
    %3940 = vrot.lane.b32.xlu0 %v2424, 80
    %v3941 = vpop.permute.xlu0 %3940
    %3942 = vrot.lane.b32.xlu0 %v2425, 80
    %v3943 = vpop.permute.xlu0 %3942
    %3976 = vrot.lane.b32.xlu0 %v2426, 100
    %v3977 = vpop.permute.xlu0 %3976
    %3978 = vrot.lane.b32.xlu0 %v2427, 100
    %v3979 = vpop.permute.xlu0 %3978
    %3980 = vrot.lane.b32.xlu0 %v2428, 100
    %v3981 = vpop.permute.xlu0 %3980
    %3982 = vrot.lane.b32.xlu0 %v2429, 100
    %v3983 = vpop.permute.xlu0 %3982
    %3984 = vrot.lane.b32.xlu0 %v2430, 100
    %v3985 = vpop.permute.xlu0 %3984
    %3986 = vrot.lane.b32.xlu0 %v2431, 100
    %v3987 = vpop.permute.xlu0 %3986
    %3988 = vrot.lane.b32.xlu0 %v2432, 100
    %v3989 = vpop.permute.xlu0 %3988
    %3990 = vrot.lane.b32.xlu0 %v2433, 100
    %v3991 = vpop.permute.xlu0 %3990
    %3992 = vrot.lane.b32.xlu0 %v2434, 100
    %v3993 = vpop.permute.xlu0 %3992
    %3994 = vrot.lane.b32.xlu0 %v2435, 100
    %v3995 = vpop.permute.xlu0 %3994
    %3996 = vrot.lane.b32.xlu0 %v2436, 100
    %v3997 = vpop.permute.xlu0 %3996
    %3998 = vrot.lane.b32.xlu0 %v2437, 100
    %v3999 = vpop.permute.xlu0 %3998
    %4000 = vrot.lane.b32.xlu0 %v2438, 100
    %v4001 = vpop.permute.xlu0 %4000
    %4002 = vrot.lane.b32.xlu0 %v2439, 100
    %v4003 = vpop.permute.xlu0 %4002
    %4004 = vrot.lane.b32.xlu0 %v2440, 100
    %v4005 = vpop.permute.xlu0 %4004
    %4006 = vrot.lane.b32.xlu0 %v2441, 100
    %v4007 = vpop.permute.xlu0 %4006
    %4040 = vrot.lane.b32.xlu0 %v2442, 120
    %v4041 = vpop.permute.xlu0 %4040
    %4042 = vrot.lane.b32.xlu0 %v2443, 120
    %v4043 = vpop.permute.xlu0 %4042
    %4044 = vrot.lane.b32.xlu0 %v2444, 120
    %v4045 = vpop.permute.xlu0 %4044
    %4046 = vrot.lane.b32.xlu0 %v2445, 120
    %v4047 = vpop.permute.xlu0 %4046
    %4048 = vrot.lane.b32.xlu0 %v2446, 120
    %v4049 = vpop.permute.xlu0 %4048
    %4050 = vrot.lane.b32.xlu0 %v2447, 120
    %v4051 = vpop.permute.xlu0 %4050
    %4052 = vrot.lane.b32.xlu0 %v2448, 120
    %v4053 = vpop.permute.xlu0 %4052
    %4054 = vrot.lane.b32.xlu0 %v2449, 120
    %v4055 = vpop.permute.xlu0 %4054
    %4056 = vrot.lane.b32.xlu0 %v2450, 120
    %v4057 = vpop.permute.xlu0 %4056
    %4058 = vrot.lane.b32.xlu0 %v2451, 120
    %v4059 = vpop.permute.xlu0 %4058
    %4060 = vrot.lane.b32.xlu0 %v2452, 120
    %v4061 = vpop.permute.xlu0 %4060
    %4062 = vrot.lane.b32.xlu0 %v2453, 120
    %v4063 = vpop.permute.xlu0 %4062
    %4064 = vrot.lane.b32.xlu0 %v2454, 120
    %v4065 = vpop.permute.xlu0 %4064
    %4066 = vrot.lane.b32.xlu0 %v2455, 120
    %v4067 = vpop.permute.xlu0 %4066
    %4068 = vrot.lane.b32.xlu0 %v2456, 120
    %v4069 = vpop.permute.xlu0 %4068
    %4070 = vrot.lane.b32.xlu0 %v2457, 120
    %v4071 = vpop.permute.xlu0 %4070
    %4104 = vrot.lane.b32.xlu0 %v2458, 12
    %v4105 = vpop.permute.xlu0 %4104
    %4106 = vrot.lane.b32.xlu0 %v2459, 12
    %v4107 = vpop.permute.xlu0 %4106
    %4108 = vrot.lane.b32.xlu0 %v2460, 12
    %v4109 = vpop.permute.xlu0 %4108
    %4110 = vrot.lane.b32.xlu0 %v2461, 12
    %v4111 = vpop.permute.xlu0 %4110
    %4112 = vrot.lane.b32.xlu0 %v2462, 12
    %v4113 = vpop.permute.xlu0 %4112
    %4114 = vrot.lane.b32.xlu0 %v2463, 12
    %v4115 = vpop.permute.xlu0 %4114
    %4116 = vrot.lane.b32.xlu0 %v2464, 12
    %v4117 = vpop.permute.xlu0 %4116
    %4118 = vrot.lane.b32.xlu0 %v2465, 12
    %v4119 = vpop.permute.xlu0 %4118
    %4120 = vrot.lane.b32.xlu0 %v2466, 12
    %v4121 = vpop.permute.xlu0 %4120
    %4122 = vrot.lane.b32.xlu0 %v2467, 12
    %v4123 = vpop.permute.xlu0 %4122
    %4124 = vrot.lane.b32.xlu0 %v2468, 12
    %v4125 = vpop.permute.xlu0 %4124
    %4126 = vrot.lane.b32.xlu0 %v2469, 12
    %v4127 = vpop.permute.xlu0 %4126
    %4128 = vrot.lane.b32.xlu0 %v2470, 12
    %v4129 = vpop.permute.xlu0 %4128
    %4130 = vrot.lane.b32.xlu0 %v2471, 12
    %v4131 = vpop.permute.xlu0 %4130
    %4132 = vrot.lane.b32.xlu0 %v2472, 12
    %v4133 = vpop.permute.xlu0 %4132
    %4134 = vrot.lane.b32.xlu0 %v2473, 12
    %v4135 = vpop.permute.xlu0 %4134
    %4168 = vrot.lane.b32.xlu0 %v2474, 32
    %v4169 = vpop.permute.xlu0 %4168
    %4170 = vrot.lane.b32.xlu0 %v2475, 32
    %v4171 = vpop.permute.xlu0 %4170
    %4172 = vrot.lane.b32.xlu0 %v2476, 32
    %v4173 = vpop.permute.xlu0 %4172
    %4174 = vrot.lane.b32.xlu0 %v2477, 32
    %v4175 = vpop.permute.xlu0 %4174
    %4176 = vrot.lane.b32.xlu0 %v2478, 32
    %v4177 = vpop.permute.xlu0 %4176
    %4178 = vrot.lane.b32.xlu0 %v2479, 32
    %v4179 = vpop.permute.xlu0 %4178
    %4180 = vrot.lane.b32.xlu0 %v2480, 32
    %v4181 = vpop.permute.xlu0 %4180
    %4182 = vrot.lane.b32.xlu0 %v2481, 32
    %v4183 = vpop.permute.xlu0 %4182
    %4184 = vrot.lane.b32.xlu0 %v2482, 32
    %v4185 = vpop.permute.xlu0 %4184
    %4186 = vrot.lane.b32.xlu0 %v2483, 32
    %v4187 = vpop.permute.xlu0 %4186
    %4188 = vrot.lane.b32.xlu0 %v2484, 32
    %v4189 = vpop.permute.xlu0 %4188
    %4190 = vrot.lane.b32.xlu0 %v2485, 32
    %v4191 = vpop.permute.xlu0 %4190
    %4192 = vrot.lane.b32.xlu0 %v2486, 32
    %v4193 = vpop.permute.xlu0 %4192
    %4194 = vrot.lane.b32.xlu0 %v2487, 32
    %v4195 = vpop.permute.xlu0 %4194
    %4196 = vrot.lane.b32.xlu0 %v2488, 32
    %v4197 = vpop.permute.xlu0 %4196
    %4198 = vrot.lane.b32.xlu0 %v2489, 32
    %v4199 = vpop.permute.xlu0 %4198
    %v4216 = vsel %vm2037, %v2345, %v3721
    %v4217 = vsel %vm2037, %v2346, %v3723
    %v4218 = vsel %vm2037, %v2347, %v3725
    %v4219 = vsel %vm2037, %v2348, %v3727
    %v4220 = vsel %vm2037, %v2349, %v3729
    %v4221 = vsel %vm2037, %v2350, %v3731
    %v4222 = vsel %vm2037, %v2351, %v3733
    %v4223 = vsel %vm2037, %v2352, %v3735
    %v4224 = vsel %vm2037, %v2353, %v3737
    %v4225 = vsel %vm2037, %v2354, %v3739
    %v4226 = vsel %vm2037, %v2355, %v3741
    %v4227 = vsel %vm2037, %v2356, %v3743
    %v4228 = vsel %vm2037, %v2357, %v3745
    %v4229 = vsel %vm2037, %v2358, %v3747
    %v4230 = vsel %vm2037, %v2359, %v3749
    %v4231 = vsel %vm2037, %v2360, %v3751
    %v4232 = vsel %vm3466, %v4216, %v3785
    %v4233 = vsel %vm3466, %v4217, %v3787
    %v4234 = vsel %vm3466, %v4218, %v3789
    %v4235 = vsel %vm3466, %v4219, %v3791
    %v4236 = vsel %vm3466, %v4220, %v3793
    %v4237 = vsel %vm3466, %v4221, %v3795
    %v4238 = vsel %vm3466, %v4222, %v3797
    %v4239 = vsel %vm3466, %v4223, %v3799
    %v4240 = vsel %vm3466, %v4224, %v3801
    %v4241 = vsel %vm3466, %v4225, %v3803
    %v4242 = vsel %vm3466, %v4226, %v3805
    %v4243 = vsel %vm3466, %v4227, %v3807
    %v4244 = vsel %vm3466, %v4228, %v3809
    %v4245 = vsel %vm3466, %v4229, %v3811
    %v4246 = vsel %vm3466, %v4230, %v3813
    %v4247 = vsel %vm3466, %v4231, %v3815
    %v4248 = vsel %vm3483, %v4232, %v3849
    %v4249 = vsel %vm3483, %v4233, %v3851
    %v4250 = vsel %vm3483, %v4234, %v3853
    %v4251 = vsel %vm3483, %v4235, %v3855
    %v4252 = vsel %vm3483, %v4236, %v3857
    %v4253 = vsel %vm3483, %v4237, %v3859
    %v4254 = vsel %vm3483, %v4238, %v3861
    %v4255 = vsel %vm3483, %v4239, %v3863
    %v4256 = vsel %vm3483, %v4240, %v3865
    %v4257 = vsel %vm3483, %v4241, %v3867
    %v4258 = vsel %vm3483, %v4242, %v3869
    %v4259 = vsel %vm3483, %v4243, %v3871
    %v4260 = vsel %vm3483, %v4244, %v3873
    %v4261 = vsel %vm3483, %v4245, %v3875
    %v4262 = vsel %vm3483, %v4246, %v3877
    %v4263 = vsel %vm3483, %v4247, %v3879
    %v4264 = vsel %vm3500, %v4248, %v3913
    %v4265 = vsel %vm3500, %v4249, %v3915
    %v4266 = vsel %vm3500, %v4250, %v3917
    %v4267 = vsel %vm3500, %v4251, %v3919
    %v4268 = vsel %vm3500, %v4252, %v3921
    %v4269 = vsel %vm3500, %v4253, %v3923
    %v4270 = vsel %vm3500, %v4254, %v3925
    %v4271 = vsel %vm3500, %v4255, %v3927
    %v4272 = vsel %vm3500, %v4256, %v3929
    %v4273 = vsel %vm3500, %v4257, %v3931
    %v4274 = vsel %vm3500, %v4258, %v3933
    %v4275 = vsel %vm3500, %v4259, %v3935
    %v4276 = vsel %vm3500, %v4260, %v3937
    %v4277 = vsel %vm3500, %v4261, %v3939
    %v4278 = vsel %vm3500, %v4262, %v3941
    %v4279 = vsel %vm3500, %v4263, %v3943
    %v4280 = vsel %vm3517, %v4264, %v3977
    %v4281 = vsel %vm3517, %v4265, %v3979
    %v4282 = vsel %vm3517, %v4266, %v3981
    %v4283 = vsel %vm3517, %v4267, %v3983
    %v4284 = vsel %vm3517, %v4268, %v3985
    %v4285 = vsel %vm3517, %v4269, %v3987
    %v4286 = vsel %vm3517, %v4270, %v3989
    %v4287 = vsel %vm3517, %v4271, %v3991
    %v4288 = vsel %vm3517, %v4272, %v3993
    %v4289 = vsel %vm3517, %v4273, %v3995
    %v4290 = vsel %vm3517, %v4274, %v3997
    %v4291 = vsel %vm3517, %v4275, %v3999
    %v4292 = vsel %vm3517, %v4276, %v4001
    %v4293 = vsel %vm3517, %v4277, %v4003
    %v4294 = vsel %vm3517, %v4278, %v4005
    %v4295 = vsel %vm3517, %v4279, %v4007
    %v4296 = vsel %vm3534, %v4280, %v4041
    %v4297 = vsel %vm3534, %v4281, %v4043
    %v4298 = vsel %vm3534, %v4282, %v4045
    %v4299 = vsel %vm3534, %v4283, %v4047
    %v4300 = vsel %vm3534, %v4284, %v4049
    %v4301 = vsel %vm3534, %v4285, %v4051
    %v4302 = vsel %vm3534, %v4286, %v4053
    %v4303 = vsel %vm3534, %v4287, %v4055
    %v4304 = vsel %vm3534, %v4288, %v4057
    %v4305 = vsel %vm3534, %v4289, %v4059
    %v4306 = vsel %vm3534, %v4290, %v4061
    %v4307 = vsel %vm3534, %v4291, %v4063
    %v4308 = vsel %vm3534, %v4292, %v4065
    %v4309 = vsel %vm3534, %v4293, %v4067
    %v4310 = vsel %vm3534, %v4294, %v4069
    %v4311 = vsel %vm3534, %v4295, %v4071
    %v4312 = vsel %vm3551, %v4041, %v4105
    %v4313 = vsel %vm3551, %v4043, %v4107
    %v4314 = vsel %vm3551, %v4045, %v4109
    %v4315 = vsel %vm3551, %v4047, %v4111
    %v4316 = vsel %vm3551, %v4049, %v4113
    %v4317 = vsel %vm3551, %v4051, %v4115
    %v4318 = vsel %vm3551, %v4053, %v4117
    %v4319 = vsel %vm3551, %v4055, %v4119
    %v4320 = vsel %vm3551, %v4057, %v4121
    %v4321 = vsel %vm3551, %v4059, %v4123
    %v4322 = vsel %vm3551, %v4061, %v4125
    %v4323 = vsel %vm3551, %v4063, %v4127
    %v4324 = vsel %vm3551, %v4065, %v4129
    %v4325 = vsel %vm3551, %v4067, %v4131
    %v4326 = vsel %vm3551, %v4069, %v4133
    %v4327 = vsel %vm3551, %v4071, %v4135
    %v4328 = vsel %vm3568, %v4312, %v4169
    %v4329 = vsel %vm3568, %v4313, %v4171
    %v4330 = vsel %vm3568, %v4314, %v4173
    %v4331 = vsel %vm3568, %v4315, %v4175
    %v4332 = vsel %vm3568, %v4316, %v4177
    %v4333 = vsel %vm3568, %v4317, %v4179
    %v4334 = vsel %vm3568, %v4318, %v4181
    %v4335 = vsel %vm3568, %v4319, %v4183
    %v4336 = vsel %vm3568, %v4320, %v4185
    %v4337 = vsel %vm3568, %v4321, %v4187
    %v4338 = vsel %vm3568, %v4322, %v4189
    %v4339 = vsel %vm3568, %v4323, %v4191
    %v4340 = vsel %vm3568, %v4324, %v4193
    %v4341 = vsel %vm3568, %v4325, %v4195
    %v4342 = vsel %vm3568, %v4326, %v4197
    %v4343 = vsel %vm3568, %v4327, %v4199
    %4376 = vrot.lane.b32.xlu0 %v4296, 64
    %v4377 = vpop.permute.xlu0 %4376
    %4378 = vrot.lane.b32.xlu0 %v4328, 64
    %v4379 = vpop.permute.xlu0 %4378
    %4380 = vrot.lane.b32.xlu0 %v4297, 64
    %v4381 = vpop.permute.xlu0 %4380
    %4382 = vrot.lane.b32.xlu0 %v4329, 64
    %v4383 = vpop.permute.xlu0 %4382
    %4384 = vrot.lane.b32.xlu0 %v4298, 64
    %v4385 = vpop.permute.xlu0 %4384
    %4386 = vrot.lane.b32.xlu0 %v4330, 64
    %v4387 = vpop.permute.xlu0 %4386
    %4388 = vrot.lane.b32.xlu0 %v4299, 64
    %v4389 = vpop.permute.xlu0 %4388
    %4390 = vrot.lane.b32.xlu0 %v4331, 64
    %v4391 = vpop.permute.xlu0 %4390
    %4392 = vrot.lane.b32.xlu0 %v4300, 64
    %v4393 = vpop.permute.xlu0 %4392
    %4394 = vrot.lane.b32.xlu0 %v4332, 64
    %v4395 = vpop.permute.xlu0 %4394
    %4396 = vrot.lane.b32.xlu0 %v4301, 64
    %v4397 = vpop.permute.xlu0 %4396
    %4398 = vrot.lane.b32.xlu0 %v4333, 64
    %v4399 = vpop.permute.xlu0 %4398
    %4400 = vrot.lane.b32.xlu0 %v4302, 64
    %v4401 = vpop.permute.xlu0 %4400
    %4402 = vrot.lane.b32.xlu0 %v4334, 64
    %v4403 = vpop.permute.xlu0 %4402
    %4404 = vrot.lane.b32.xlu0 %v4303, 64
    %v4405 = vpop.permute.xlu0 %4404
    %4406 = vrot.lane.b32.xlu0 %v4335, 64
    %v4407 = vpop.permute.xlu0 %4406
    %4408 = vrot.lane.b32.xlu0 %v4304, 64
    %v4409 = vpop.permute.xlu0 %4408
    %4410 = vrot.lane.b32.xlu0 %v4336, 64
    %v4411 = vpop.permute.xlu0 %4410
    %4412 = vrot.lane.b32.xlu0 %v4305, 64
    %v4413 = vpop.permute.xlu0 %4412
    %4414 = vrot.lane.b32.xlu0 %v4337, 64
    %v4415 = vpop.permute.xlu0 %4414
    %4416 = vrot.lane.b32.xlu0 %v4306, 64
    %v4417 = vpop.permute.xlu0 %4416
    %4418 = vrot.lane.b32.xlu0 %v4338, 64
    %v4419 = vpop.permute.xlu0 %4418
    %4420 = vrot.lane.b32.xlu0 %v4307, 64
    %v4421 = vpop.permute.xlu0 %4420
    %4422 = vrot.lane.b32.xlu0 %v4339, 64
    %v4423 = vpop.permute.xlu0 %4422
    %4424 = vrot.lane.b32.xlu0 %v4308, 64
    %v4425 = vpop.permute.xlu0 %4424
    %4426 = vrot.lane.b32.xlu0 %v4340, 64
    %v4427 = vpop.permute.xlu0 %4426
    %4428 = vrot.lane.b32.xlu0 %v4309, 64
    %v4429 = vpop.permute.xlu0 %4428
    %4430 = vrot.lane.b32.xlu0 %v4341, 64
    %v4431 = vpop.permute.xlu0 %4430
    %4432 = vrot.lane.b32.xlu0 %v4310, 64
    %v4433 = vpop.permute.xlu0 %4432
    %4434 = vrot.lane.b32.xlu0 %v4342, 64
    %v4435 = vpop.permute.xlu0 %4434
    %4436 = vrot.lane.b32.xlu0 %v4311, 64
    %v4437 = vpop.permute.xlu0 %4436
    %4438 = vrot.lane.b32.xlu0 %v4343, 64
    %v4439 = vpop.permute.xlu0 %4438
    %vm4440 = vcmask 523264
    %v4441 = vsel %vm4440, %v4377, %v4379
    %v4442 = vsel %vm4440, %v4381, %v4383
    %v4443 = vsel %vm4440, %v4385, %v4387
    %v4444 = vsel %vm4440, %v4389, %v4391
    %v4445 = vsel %vm4440, %v4393, %v4395
    %v4446 = vsel %vm4440, %v4397, %v4399
    %v4447 = vsel %vm4440, %v4401, %v4403
    %v4448 = vsel %vm4440, %v4405, %v4407
    %v4449 = vsel %vm4440, %v4409, %v4411
    %v4450 = vsel %vm4440, %v4413, %v4415
    %v4451 = vsel %vm4440, %v4417, %v4419
    %v4452 = vsel %vm4440, %v4421, %v4423
    %v4453 = vsel %vm4440, %v4425, %v4427
    %v4454 = vsel %vm4440, %v4429, %v4431
    %v4455 = vsel %vm4440, %v4433, %v4435
    %v4456 = vsel %vm4440, %v4437, %v4439
    %v4473 = vsel %vm4440, %v3688, %v4377
    %v4474 = vsel %vm4440, %v3689, %v4381
    %v4475 = vsel %vm4440, %v3690, %v4385
    %v4476 = vsel %vm4440, %v3691, %v4389
    %v4477 = vsel %vm4440, %v3692, %v4393
    %v4478 = vsel %vm4440, %v3693, %v4397
    %v4479 = vsel %vm4440, %v3694, %v4401
    %v4480 = vsel %vm4440, %v3695, %v4405
    %v4481 = vsel %vm4440, %v3696, %v4409
    %v4482 = vsel %vm4440, %v3697, %v4413
    %v4483 = vsel %vm4440, %v3698, %v4417
    %v4484 = vsel %vm4440, %v3699, %v4421
    %v4485 = vsel %vm4440, %v3700, %v4425
    %v4486 = vsel %vm4440, %v3701, %v4429
    %v4487 = vsel %vm4440, %v3702, %v4433
    %v4488 = vsel %vm4440, %v3703, %v4437
    %v4489 = vld [vmem:[%s3] sm:$0xff]
    %v4490 = vld [vmem:[%s3 + $0x8] sm:$0xff]
    %v4491 = vld [vmem:[%s3 + $0x10] sm:$0xff]
    %v4492 = vld [vmem:[%s3 + $0x18] sm:$0xff]
    %v4493 = vld [vmem:[%s3 + $0x20] sm:$0xff]
    %v4494 = vld [vmem:[%s3 + $0x28] sm:$0xff]
    %v4495 = vld [vmem:[%s3 + $0x30] sm:$0xff]
    %v4496 = vld [vmem:[%s3 + $0x38] sm:$0xff]
    %v4497 = vld [vmem:[%s3 + $0x40] sm:$0xff]
    %v4498 = vld [vmem:[%s3 + $0x48] sm:$0xff]
    %v4499 = vld [vmem:[%s3 + $0x50] sm:$0xff]
    %v4500 = vld [vmem:[%s3 + $0x58] sm:$0xff]
    %v4501 = vld [vmem:[%s3 + $0x60] sm:$0xff]
    %v4502 = vld [vmem:[%s3 + $0x68] sm:$0xff]
    %v4503 = vld [vmem:[%s3 + $0x70] sm:$0xff]
    %v4504 = vld [vmem:[%s3 + $0x78] sm:$0xff]
    %v4505 = vld [vmem:[%s3 + $0x80] sm:$0xff]
    %v4506 = vld [vmem:[%s3 + $0x88] sm:$0xff]
    %v4507 = vld [vmem:[%s3 + $0x90] sm:$0xff]
    %v4508 = vld [vmem:[%s3 + $0x98] sm:$0xff]
    %v4509 = vld [vmem:[%s3 + $0xa0] sm:$0xff]
    %v4510 = vld [vmem:[%s3 + $0xa8] sm:$0xff]
    %v4511 = vld [vmem:[%s3 + $0xb0] sm:$0xff]
    %v4512 = vld [vmem:[%s3 + $0xb8] sm:$0xff]
    %v4513 = vld [vmem:[%s3 + $0xc0] sm:$0xff]
    %v4514 = vld [vmem:[%s3 + $0xc8] sm:$0xff]
    %v4515 = vld [vmem:[%s3 + $0xd0] sm:$0xff]
    %v4516 = vld [vmem:[%s3 + $0xd8] sm:$0xff]
    %v4517 = vld [vmem:[%s3 + $0xe0] sm:$0xff]
    %v4518 = vld [vmem:[%s3 + $0xe8] sm:$0xff]
    %v4519 = vld [vmem:[%s3 + $0xf0] sm:$0xff]
    %v4520 = vld [vmem:[%s3 + $0xf8] sm:$0xff]
    %v4521 = vld [vmem:[%s3 + $0x100] sm:$0xff]
    %v4522 = vld [vmem:[%s3 + $0x108] sm:$0xff]
    %v4523 = vld [vmem:[%s3 + $0x110] sm:$0xff]
    %v4524 = vld [vmem:[%s3 + $0x118] sm:$0xff]
    %v4525 = vld [vmem:[%s3 + $0x120] sm:$0xff]
    %v4526 = vld [vmem:[%s3 + $0x128] sm:$0xff]
    %v4527 = vld [vmem:[%s3 + $0x130] sm:$0xff]
    %v4528 = vld [vmem:[%s3 + $0x138] sm:$0xff]
    %v4529 = vld [vmem:[%s3 + $0x140] sm:$0xff]
    %v4530 = vld [vmem:[%s3 + $0x148] sm:$0xff]
    %v4531 = vld [vmem:[%s3 + $0x150] sm:$0xff]
    %v4532 = vld [vmem:[%s3 + $0x158] sm:$0xff]
    %v4533 = vld [vmem:[%s3 + $0x160] sm:$0xff]
    %v4534 = vld [vmem:[%s3 + $0x168] sm:$0xff]
    %v4535 = vld [vmem:[%s3 + $0x170] sm:$0xff]
    %v4536 = vld [vmem:[%s3 + $0x178] sm:$0xff]
    %v4537 = vld [vmem:[%s3 + $0x180] sm:$0xff]
    %v4538 = vld [vmem:[%s3 + $0x188] sm:$0xff]
    %v4539 = vld [vmem:[%s3 + $0x190] sm:$0xff]
    %v4540 = vld [vmem:[%s3 + $0x198] sm:$0xff]
    %v4541 = vld [vmem:[%s3 + $0x1a0] sm:$0xff]
    %v4542 = vld [vmem:[%s3 + $0x1a8] sm:$0xff]
    %v4543 = vld [vmem:[%s3 + $0x1b0] sm:$0xff]
    %v4544 = vld [vmem:[%s3 + $0x1b8] sm:$0xff]
    %v4545 = vld [vmem:[%s3 + $0x1c0] sm:$0xff]
    %v4546 = vld [vmem:[%s3 + $0x1c8] sm:$0xff]
    %v4547 = vld [vmem:[%s3 + $0x1d0] sm:$0xff]
    %v4548 = vld [vmem:[%s3 + $0x1d8] sm:$0xff]
    %v4549 = vld [vmem:[%s3 + $0x1e0] sm:$0xff]
    %v4550 = vld [vmem:[%s3 + $0x1e8] sm:$0xff]
    %v4551 = vld [vmem:[%s3 + $0x1f0] sm:$0xf]
    %v4552 = vld [vmem:[%s4] sm:$0x1]
    %v4554 = vlaneseq
    %v4555 = vshrl.u32 %v4554, 7
    %v4556 = vsub.s32 0, %v4555
    %v4557 = vrot.slane %v4552, %v4556
    %vm4559 = vcmask 949248
    %v4560 = vsel %vm4559, %v4441, 0
    %v4562 = vsel %vm4559, %v4442, 0
    %v4564 = vsel %vm4559, %v4443, 0
    %v4566 = vsel %vm4559, %v4444, 0
    %v4568 = vsel %vm4559, %v4445, 0
    %v4570 = vsel %vm4559, %v4446, 0
    %v4572 = vsel %vm4559, %v4447, 0
    %v4574 = vsel %vm4559, %v4448, 0
    %v4576 = vsel %vm4559, %v4449, 0
    %v4578 = vsel %vm4559, %v4450, 0
    %v4580 = vsel %vm4559, %v4451, 0
    %v4582 = vsel %vm4559, %v4452, 0
    %v4584 = vsel %vm4559, %v4453, 0
    %v4586 = vsel %vm4559, %v4454, 0
    %v4588 = vsel %vm4559, %v4455, 0
    %v4590 = vsel %vm4559, %v4456, 0
    %vm4592 = vcmask 1043456
    %v4594 = vsel %vm4592, %v4551, 0
    %4596 = vmatprep.subr.mxu0 0.0
    %4597 = vmatpush1.msra.mxu0 %v4489
    %4598 = vmatprep.subr.mxu0 0.0
    %4599 = vmatpush1.msra.mxu0 %v4490
    %4600 = vmatprep.subr.mxu0 0.0
    %4601 = vmatpush1.msra.mxu0 %v4491
    %4602 = vmatprep.subr.mxu0 0.0
    %4603 = vmatpush1.msra.mxu0 %v4492
    %4604 = vmatprep.subr.mxu0 0.0
    %4605 = vmatpush1.msra.mxu0 %v4493
    %4606 = vmatprep.subr.mxu0 0.0
    %4607 = vmatpush1.msra.mxu0 %v4494
    %4608 = vmatprep.subr.mxu0 0.0
    %4609 = vmatpush1.msra.mxu0 %v4495
    %4610 = vmatprep.subr.mxu0 0.0
    %4611 = vmatpush1.msra.mxu0 %v4496
    %4612 = vmatprep.subr.mxu0 0.0
    %4613 = vmatpush1.msra.mxu0 %v4497
    %4614 = vmatprep.subr.mxu0 0.0
    %4615 = vmatpush1.msra.mxu0 %v4498
    %4616 = vmatprep.subr.mxu0 0.0
    %4617 = vmatpush1.msra.mxu0 %v4499
    %4618 = vmatprep.subr.mxu0 0.0
    %4619 = vmatpush1.msra.mxu0 %v4500
    %4620 = vmatprep.subr.mxu0 0.0
    %4621 = vmatpush1.msra.mxu0 %v4501
    %4622 = vmatprep.subr.mxu0 0.0
    %4623 = vmatpush1.msra.mxu0 %v4502
    %4624 = vmatprep.subr.mxu0 0.0
    %4625 = vmatpush1.msra.mxu0 %v4503
    %4626 = vmatprep.subr.mxu0 0.0
    %4627 = vmatpush1.msra.mxu0 %v4504
    %4628 = vmatprep.subr.mxu0 0.0
    %4629 = vmatpush1.msra.mxu0 %v4505
    %4630 = vmatprep.subr.mxu0 0.0
    %4631 = vmatpush1.msra.mxu0 %v4506
    %4632 = vmatprep.subr.mxu0 0.0
    %4633 = vmatpush1.msra.mxu0 %v4507
    %4634 = vmatprep.subr.mxu0 0.0
    %4635 = vmatpush1.msra.mxu0 %v4508
    %4636 = vmatprep.subr.mxu0 0.0
    %4637 = vmatpush1.msra.mxu0 %v4509
    %4638 = vmatprep.subr.mxu0 0.0
    %4639 = vmatpush1.msra.mxu0 %v4510
    %4640 = vmatprep.subr.mxu0 0.0
    %4641 = vmatpush1.msra.mxu0 %v4511
    %4642 = vmatprep.subr.mxu0 0.0
    %4643 = vmatpush1.msra.mxu0 %v4512
    %4644 = vmatprep.subr.mxu0 0.0
    %4645 = vmatpush1.msra.mxu0 %v4513
    %4646 = vmatprep.subr.mxu0 0.0
    %4647 = vmatpush1.msra.mxu0 %v4514
    %4648 = vmatprep.subr.mxu0 0.0
    %4649 = vmatpush1.msra.mxu0 %v4515
    %4650 = vmatprep.subr.mxu0 0.0
    %4651 = vmatpush1.msra.mxu0 %v4516
    %4652 = vmatprep.subr.mxu0 0.0
    %4653 = vmatpush1.msra.mxu0 %v4517
    %4654 = vmatprep.subr.mxu0 0.0
    %4655 = vmatpush1.msra.mxu0 %v4518
    %4656 = vmatprep.subr.mxu0 0.0
    %4657 = vmatpush1.msra.mxu0 %v4519
    %4658 = vmatprep.subr.mxu0 0.0
    %4659 = vmatpush1.msra.mxu0 %v4520
    %4660 = vmatprep.mubr.f32.mxu0 %v3637
    %4661 = vmatmul.mubr.f32.gmra.mrb[0].mxu0 %v3535
    %v4662 = vpop.f32.mrb[0].mxu0
    %v4663 = vadd.f32 %v4557, %v4662
    %v4664 = vpop.f32.mrb[0].mxu0
    %4665 = vmatprep.mubr.f32.mxu0 %v3638
    %4666 = vmatmul.mubr.f32.gmra.mrb[0].mxu0 %v3536
    %v4667 = vpop.f32.mrb[0].mxu0
    %v4668 = vadd.f32 %v4557, %v4667
    %v4669 = vpop.f32.mrb[0].mxu0
    %4670 = vmatprep.mubr.f32.mxu0 %v3639
    %4671 = vmatmul.mubr.f32.gmra.mrb[0].mxu0 %v3537
    %v4672 = vpop.f32.mrb[0].mxu0
    %v4673 = vadd.f32 %v4557, %v4672
    %v4674 = vpop.f32.mrb[0].mxu0
    %4675 = vmatprep.mubr.f32.mxu0 %v3640
    %4676 = vmatmul.mubr.f32.gmra.mrb[0].mxu0 %v3538
    %v4677 = vpop.f32.mrb[0].mxu0
    %v4678 = vadd.f32 %v4557, %v4677
    %v4679 = vpop.f32.mrb[0].mxu0
    %4680 = vmatprep.mubr.f32.mxu0 %v3641
    %4681 = vmatmul.mubr.f32.gmra.mrb[0].mxu0 %v3539
    %v4682 = vpop.f32.mrb[0].mxu0
    %v4683 = vadd.f32 %v4557, %v4682
    %v4684 = vpop.f32.mrb[0].mxu0
    %4685 = vmatprep.mubr.f32.mxu0 %v3642
    %4686 = vmatmul.mubr.f32.gmra.mrb[0].mxu0 %v3540
    %v4687 = vpop.f32.mrb[0].mxu0
    %v4688 = vadd.f32 %v4557, %v4687
    %v4689 = vpop.f32.mrb[0].mxu0
    %4690 = vmatprep.mubr.f32.mxu0 %v3643
    %4691 = vmatmul.mubr.f32.gmra.mrb[0].mxu0 %v3541
    %v4692 = vpop.f32.mrb[0].mxu0
    %v4693 = vadd.f32 %v4557, %v4692
    %v4694 = vpop.f32.mrb[0].mxu0
    %4695 = vmatprep.mubr.f32.mxu0 %v3644
    %4696 = vmatmul.mubr.f32.gmra.mrb[0].mxu0 %v3542
    %v4697 = vpop.f32.mrb[0].mxu0
    %v4698 = vadd.f32 %v4557, %v4697
    %v4699 = vpop.f32.mrb[0].mxu0
    %4700 = vmatprep.mubr.f32.mxu0 %v3645
    %4701 = vmatmul.mubr.f32.gmra.mrb[0].mxu0 %v3543
    %v4702 = vpop.f32.mrb[0].mxu0
    %v4703 = vadd.f32 %v4557, %v4702
    %v4704 = vpop.f32.mrb[0].mxu0
    %4705 = vmatprep.mubr.f32.mxu0 %v3646
    %4706 = vmatmul.mubr.f32.gmra.mrb[0].mxu0 %v3544
    %v4707 = vpop.f32.mrb[0].mxu0
    %v4708 = vadd.f32 %v4557, %v4707
    %v4709 = vpop.f32.mrb[0].mxu0
    %4710 = vmatprep.mubr.f32.mxu0 %v3647
    %4711 = vmatmul.mubr.f32.gmra.mrb[0].mxu0 %v3545
    %v4712 = vpop.f32.mrb[0].mxu0
    %v4713 = vadd.f32 %v4557, %v4712
    %v4714 = vpop.f32.mrb[0].mxu0
    %4715 = vmatprep.mubr.f32.mxu0 %v3648
    %4716 = vmatmul.mubr.f32.gmra.mrb[0].mxu0 %v3546
    %v4717 = vpop.f32.mrb[0].mxu0
    %v4718 = vadd.f32 %v4557, %v4717
    %v4719 = vpop.f32.mrb[0].mxu0
    %4720 = vmatprep.mubr.f32.mxu0 %v3649
    %4721 = vmatmul.mubr.f32.gmra.mrb[0].mxu0 %v3547
    %v4722 = vpop.f32.mrb[0].mxu0
    %v4723 = vadd.f32 %v4557, %v4722
    %v4724 = vpop.f32.mrb[0].mxu0
    %4725 = vmatprep.mubr.f32.mxu0 %v3650
    %4726 = vmatmul.mubr.f32.gmra.mrb[0].mxu0 %v3548
    %v4727 = vpop.f32.mrb[0].mxu0
    %v4728 = vadd.f32 %v4557, %v4727
    %v4729 = vpop.f32.mrb[0].mxu0
    %4730 = vmatprep.mubr.f32.mxu0 %v3651
    %4731 = vmatmul.mubr.f32.gmra.mrb[0].mxu0 %v3549
    %v4732 = vpop.f32.mrb[0].mxu0
    %v4733 = vadd.f32 %v4557, %v4732
    %v4734 = vpop.f32.mrb[0].mxu0
    %4735 = vmatprep.mubr.f32.mxu0 %v3652
    %4736 = vmatmul.mubr.f32.gmra.mrb[0].mxu0 %v3550
    %v4737 = vpop.f32.mrb[0].mxu0
    %v4738 = vadd.f32 %v4557, %v4737
    %v4739 = vpop.f32.mrb[0].mxu0
    %4740 = vdwg.mxu0
    %4741 = vmatprep.subr.mxu0 0.0
    %4742 = vmatpush1.msra.mxu0 %v4521
    %4743 = vmatprep.subr.mxu0 0.0
    %4744 = vmatpush1.msra.mxu0 %v4522
    %4745 = vmatprep.subr.mxu0 0.0
    %4746 = vmatpush1.msra.mxu0 %v4523
    %4747 = vmatprep.subr.mxu0 0.0
    %4748 = vmatpush1.msra.mxu0 %v4524
    %4749 = vmatprep.subr.mxu0 0.0
    %4750 = vmatpush1.msra.mxu0 %v4525
    %4751 = vmatprep.subr.mxu0 0.0
    %4752 = vmatpush1.msra.mxu0 %v4526
    %4753 = vmatprep.subr.mxu0 0.0
    %4754 = vmatpush1.msra.mxu0 %v4527
    %4755 = vmatprep.subr.mxu0 0.0
    %4756 = vmatpush1.msra.mxu0 %v4528
    %4757 = vmatprep.subr.mxu0 0.0
    %4758 = vmatpush1.msra.mxu0 %v4529
    %4759 = vmatprep.subr.mxu0 0.0
    %4760 = vmatpush1.msra.mxu0 %v4530
    %4761 = vmatprep.subr.mxu0 0.0
    %4762 = vmatpush1.msra.mxu0 %v4531
    %4763 = vmatprep.subr.mxu0 0.0
    %4764 = vmatpush1.msra.mxu0 %v4532
    %4765 = vmatprep.subr.mxu0 0.0
    %4766 = vmatpush1.msra.mxu0 %v4533
    %4767 = vmatprep.subr.mxu0 0.0
    %4768 = vmatpush1.msra.mxu0 %v4534
    %4769 = vmatprep.subr.mxu0 0.0
    %4770 = vmatpush1.msra.mxu0 %v4535
    %4771 = vmatprep.subr.mxu0 0.0
    %4772 = vmatpush1.msra.mxu0 %v4536
    %4773 = vmatprep.subr.mxu0 0.0
    %4774 = vmatpush1.msra.mxu0 %v4537
    %4775 = vmatprep.subr.mxu0 0.0
    %4776 = vmatpush1.msra.mxu0 %v4538
    %4777 = vmatprep.subr.mxu0 0.0
    %4778 = vmatpush1.msra.mxu0 %v4539
    %4779 = vmatprep.subr.mxu0 0.0
    %4780 = vmatpush1.msra.mxu0 %v4540
    %4781 = vmatprep.subr.mxu0 0.0
    %4782 = vmatpush1.msra.mxu0 %v4541
    %4783 = vmatprep.subr.mxu0 0.0
    %4784 = vmatpush1.msra.mxu0 %v4542
    %4785 = vmatprep.subr.mxu0 0.0
    %4786 = vmatpush1.msra.mxu0 %v4543
    %4787 = vmatprep.subr.mxu0 0.0
    %4788 = vmatpush1.msra.mxu0 %v4544
    %4789 = vmatprep.subr.mxu0 0.0
    %4790 = vmatpush1.msra.mxu0 %v4545
    %4791 = vmatprep.subr.mxu0 0.0
    %4792 = vmatpush1.msra.mxu0 %v4546
    %4793 = vmatprep.subr.mxu0 0.0
    %4794 = vmatpush1.msra.mxu0 %v4547
    %4795 = vmatprep.subr.mxu0 0.0
    %4796 = vmatpush1.msra.mxu0 %v4548
    %4797 = vmatprep.subr.mxu0 0.0
    %4798 = vmatpush1.msra.mxu0 %v4549
    %4799 = vmatprep.subr.mxu0 0.0
    %4800 = vmatpush1.msra.mxu0 %v4550
    %4801 = vmatprep.subr.mxu0 0.0
    %4802 = vmatpush1.msra.mxu0 %v4594
    %4803 = vmatprep.subr.mxu0 0.0
    %4804 = vmatpush1.msra.mxu0 0.0
    %4805 = vmatprep.mubr.f32.mxu0 %v4560
    %4806 = vmatmul.mubr.f32.gmra.mrb[0].mxu0 %v4473
    %v4807 = vpop.f32.mrb[0].mxu0
    %v4808 = vadd.f32 %v4663, %v4807
    %v4809 = vpop.f32.mrb[0].mxu0
    %4810 = vmatprep.mubr.f32.mxu0 %v4562
    %4811 = vmatmul.mubr.f32.gmra.mrb[0].mxu0 %v4474
    %v4812 = vpop.f32.mrb[0].mxu0
    %v4813 = vadd.f32 %v4668, %v4812
    %v4814 = vpop.f32.mrb[0].mxu0
    %4815 = vmatprep.mubr.f32.mxu0 %v4564
    %4816 = vmatmul.mubr.f32.gmra.mrb[0].mxu0 %v4475
    %v4817 = vpop.f32.mrb[0].mxu0
    %v4818 = vadd.f32 %v4673, %v4817
    %v4819 = vpop.f32.mrb[0].mxu0
    %4820 = vmatprep.mubr.f32.mxu0 %v4566
    %4821 = vmatmul.mubr.f32.gmra.mrb[0].mxu0 %v4476
    %v4822 = vpop.f32.mrb[0].mxu0
    %v4823 = vadd.f32 %v4678, %v4822
    %v4824 = vpop.f32.mrb[0].mxu0
    %4825 = vmatprep.mubr.f32.mxu0 %v4568
    %4826 = vmatmul.mubr.f32.gmra.mrb[0].mxu0 %v4477
    %v4827 = vpop.f32.mrb[0].mxu0
    %v4828 = vadd.f32 %v4683, %v4827
    %v4829 = vpop.f32.mrb[0].mxu0
    %4830 = vmatprep.mubr.f32.mxu0 %v4570
    %4831 = vmatmul.mubr.f32.gmra.mrb[0].mxu0 %v4478
    %v4832 = vpop.f32.mrb[0].mxu0
    %v4833 = vadd.f32 %v4688, %v4832
    %v4834 = vpop.f32.mrb[0].mxu0
    %4835 = vmatprep.mubr.f32.mxu0 %v4572
    %4836 = vmatmul.mubr.f32.gmra.mrb[0].mxu0 %v4479
    %v4837 = vpop.f32.mrb[0].mxu0
    %v4838 = vadd.f32 %v4693, %v4837
    %v4839 = vpop.f32.mrb[0].mxu0
    %4840 = vmatprep.mubr.f32.mxu0 %v4574
    %4841 = vmatmul.mubr.f32.gmra.mrb[0].mxu0 %v4480
    %v4842 = vpop.f32.mrb[0].mxu0
    %v4843 = vadd.f32 %v4698, %v4842
    %v4844 = vpop.f32.mrb[0].mxu0
    %4845 = vmatprep.mubr.f32.mxu0 %v4576
    %4846 = vmatmul.mubr.f32.gmra.mrb[0].mxu0 %v4481
    %v4847 = vpop.f32.mrb[0].mxu0
    %v4848 = vadd.f32 %v4703, %v4847
    %v4849 = vpop.f32.mrb[0].mxu0
    %4850 = vmatprep.mubr.f32.mxu0 %v4578
    %4851 = vmatmul.mubr.f32.gmra.mrb[0].mxu0 %v4482
    %v4852 = vpop.f32.mrb[0].mxu0
    %v4853 = vadd.f32 %v4708, %v4852
    %v4854 = vpop.f32.mrb[0].mxu0
    %4855 = vmatprep.mubr.f32.mxu0 %v4580
    %4856 = vmatmul.mubr.f32.gmra.mrb[0].mxu0 %v4483
    %v4857 = vpop.f32.mrb[0].mxu0
    %v4858 = vadd.f32 %v4713, %v4857
    %v4859 = vpop.f32.mrb[0].mxu0
    %4860 = vmatprep.mubr.f32.mxu0 %v4582
    %4861 = vmatmul.mubr.f32.gmra.mrb[0].mxu0 %v4484
    %v4862 = vpop.f32.mrb[0].mxu0
    %v4863 = vadd.f32 %v4718, %v4862
    %v4864 = vpop.f32.mrb[0].mxu0
    %4865 = vmatprep.mubr.f32.mxu0 %v4584
    %4866 = vmatmul.mubr.f32.gmra.mrb[0].mxu0 %v4485
    %v4867 = vpop.f32.mrb[0].mxu0
    %v4868 = vadd.f32 %v4723, %v4867
    %v4869 = vpop.f32.mrb[0].mxu0
    %4870 = vmatprep.mubr.f32.mxu0 %v4586
    %4871 = vmatmul.mubr.f32.gmra.mrb[0].mxu0 %v4486
    %v4872 = vpop.f32.mrb[0].mxu0
    %v4873 = vadd.f32 %v4728, %v4872
    %v4874 = vpop.f32.mrb[0].mxu0
    %4875 = vmatprep.mubr.f32.mxu0 %v4588
    %4876 = vmatmul.mubr.f32.gmra.mrb[0].mxu0 %v4487
    %v4877 = vpop.f32.mrb[0].mxu0
    %v4878 = vadd.f32 %v4733, %v4877
    %v4879 = vpop.f32.mrb[0].mxu0
    %4880 = vmatprep.mubr.f32.mxu0 %v4590
    %4881 = vmatmul.mubr.f32.gmra.mrb[0].mxu0 %v4488
    %v4882 = vpop.f32.mrb[0].mxu0
    %v4883 = vadd.f32 %v4738, %v4882
    %v4884 = vpop.f32.mrb[0].mxu0
    %4885 = vdwg.mxu0
    %v4886 = vld [vmem:[%s5] sm:$0xff]
    %v4887 = vld [vmem:[%s5 + $0x8] sm:$0xff]
    %v4888 = vld [vmem:[%s5 + $0x10] sm:$0xff]
    %v4889 = vld [vmem:[%s5 + $0x18] sm:$0xff]
    %v4890 = vld [vmem:[%s5 + $0x20] sm:$0xff]
    %v4891 = vld [vmem:[%s5 + $0x28] sm:$0xff]
    %v4892 = vld [vmem:[%s5 + $0x30] sm:$0xff]
    %v4893 = vld [vmem:[%s5 + $0x38] sm:$0xff]
    %v4894 = vld [vmem:[%s5 + $0x40] sm:$0xff]
    %v4895 = vld [vmem:[%s5 + $0x48] sm:$0xff]
    %v4896 = vld [vmem:[%s5 + $0x50] sm:$0xff]
    %v4897 = vld [vmem:[%s5 + $0x58] sm:$0xff]
    %v4898 = vld [vmem:[%s5 + $0x60] sm:$0xff]
    %v4899 = vld [vmem:[%s5 + $0x68] sm:$0xff]
    %v4900 = vld [vmem:[%s5 + $0x70] sm:$0xff]
    %v4901 = vld [vmem:[%s5 + $0x78] sm:$0xff]
    %4902 = vmatprep.subr.mxu0 0.0
    %4903 = vmatpush1.msra.mxu0 %v4808
    %4904 = vmatprep.subr.mxu0 0.0
    %4905 = vmatpush1.msra.mxu0 %v4813
    %4906 = vmatprep.subr.mxu0 0.0
    %4907 = vmatpush1.msra.mxu0 %v4818
    %4908 = vmatprep.subr.mxu0 0.0
    %4909 = vmatpush1.msra.mxu0 %v4823
    %4910 = vmatprep.subr.mxu0 0.0
    %4911 = vmatpush1.msra.mxu0 %v4828
    %4912 = vmatprep.subr.mxu0 0.0
    %4913 = vmatpush1.msra.mxu0 %v4833
    %4914 = vmatprep.subr.mxu0 0.0
    %4915 = vmatpush1.msra.mxu0 %v4838
    %4916 = vmatprep.subr.mxu0 0.0
    %4917 = vmatpush1.msra.mxu0 %v4843
    %4918 = vmatprep.subr.mxu0 0.0
    %4919 = vmatpush1.msra.mxu0 %v4848
    %4920 = vmatprep.subr.mxu0 0.0
    %4921 = vmatpush1.msra.mxu0 %v4853
    %4922 = vmatprep.subr.mxu0 0.0
    %4923 = vmatpush1.msra.mxu0 %v4858
    %4924 = vmatprep.subr.mxu0 0.0
    %4925 = vmatpush1.msra.mxu0 %v4863
    %4926 = vmatprep.subr.mxu0 0.0
    %4927 = vmatpush1.msra.mxu0 %v4868
    %4928 = vmatprep.subr.mxu0 0.0
    %4929 = vmatpush1.msra.mxu0 %v4873
    %4930 = vmatprep.subr.mxu0 0.0
    %4931 = vmatpush1.msra.mxu0 %v4878
    %4932 = vmatprep.subr.mxu0 0.0
    %4933 = vmatpush1.msra.mxu0 %v4883
    %4934 = vmatprep.subr.mxu0 0.0
    %4935 = vmatpush1.msra.mxu0 0.0
    %4936 = vmatprep.subr.mxu0 0.0
    %4937 = vmatpush1.msra.mxu0 0.0
    %4938 = vmatprep.subr.mxu0 0.0
    %4939 = vmatpush1.msra.mxu0 0.0
    %4940 = vmatprep.subr.mxu0 0.0
    %4941 = vmatpush1.msra.mxu0 0.0
    %4942 = vmatprep.subr.mxu0 0.0
    %4943 = vmatpush1.msra.mxu0 0.0
    %4944 = vmatprep.subr.mxu0 0.0
    %4945 = vmatpush1.msra.mxu0 0.0
    %4946 = vmatprep.subr.mxu0 0.0
    %4947 = vmatpush1.msra.mxu0 0.0
    %4948 = vmatprep.subr.mxu0 0.0
    %4949 = vmatpush1.msra.mxu0 0.0
    %4950 = vmatprep.subr.mxu0 0.0
    %4951 = vmatpush1.msra.mxu0 0.0
    %4952 = vmatprep.subr.mxu0 0.0
    %4953 = vmatpush1.msra.mxu0 0.0
    %4954 = vmatprep.subr.mxu0 0.0
    %4955 = vmatpush1.msra.mxu0 0.0
    %4956 = vmatprep.subr.mxu0 0.0
    %4957 = vmatpush1.msra.mxu0 0.0
    %4958 = vmatprep.subr.mxu0 0.0
    %4959 = vmatpush1.msra.mxu0 0.0
    %4960 = vmatprep.subr.mxu0 0.0
    %4961 = vmatpush1.msra.mxu0 0.0
    %4962 = vmatprep.subr.mxu0 0.0
    %4963 = vmatpush1.msra.mxu0 0.0
    %4964 = vmatprep.subr.mxu0 0.0
    %4965 = vmatpush1.msra.mxu0 0.0
    %4966 = vmatprep.mubr.f32.mxu0 0.0
    %4967 = vmatmul.mubr.f32.gmra.mrb[0].mxu0 %v4886
    %v4968 = vpop.f32.mrb[0].mxu0
    %v4969 = vadd.f32 0.0, %v4968
    %v4970 = vpop.f32.mrb[0].mxu0
    %4971 = vmatprep.mubr.f32.mxu0 0.0
    %4972 = vmatmul.mubr.f32.gmra.mrb[0].mxu0 %v4887
    %v4973 = vpop.f32.mrb[0].mxu0
    %v4974 = vadd.f32 0.0, %v4973
    %v4975 = vpop.f32.mrb[0].mxu0
    %4976 = vmatprep.mubr.f32.mxu0 0.0
    %4977 = vmatmul.mubr.f32.gmra.mrb[0].mxu0 %v4888
    %v4978 = vpop.f32.mrb[0].mxu0
    %v4979 = vadd.f32 0.0, %v4978
    %v4980 = vpop.f32.mrb[0].mxu0
    %4981 = vmatprep.mubr.f32.mxu0 0.0
    %4982 = vmatmul.mubr.f32.gmra.mrb[0].mxu0 %v4889
    %v4983 = vpop.f32.mrb[0].mxu0
    %v4984 = vadd.f32 0.0, %v4983
    %v4985 = vpop.f32.mrb[0].mxu0
    %4986 = vmatprep.mubr.f32.mxu0 0.0
    %4987 = vmatmul.mubr.f32.gmra.mrb[0].mxu0 %v4890
    %v4988 = vpop.f32.mrb[0].mxu0
    %v4989 = vadd.f32 0.0, %v4988
    %v4990 = vpop.f32.mrb[0].mxu0
    %4991 = vmatprep.mubr.f32.mxu0 0.0
    %4992 = vmatmul.mubr.f32.gmra.mrb[0].mxu0 %v4891
    %v4993 = vpop.f32.mrb[0].mxu0
    %v4994 = vadd.f32 0.0, %v4993
    %v4995 = vpop.f32.mrb[0].mxu0
    %4996 = vmatprep.mubr.f32.mxu0 0.0
    %4997 = vmatmul.mubr.f32.gmra.mrb[0].mxu0 %v4892
    %v4998 = vpop.f32.mrb[0].mxu0
    %v4999 = vadd.f32 0.0, %v4998
    %v5000 = vpop.f32.mrb[0].mxu0
    %5001 = vmatprep.mubr.f32.mxu0 0.0
    %5002 = vmatmul.mubr.f32.gmra.mrb[0].mxu0 %v4893
    %v5003 = vpop.f32.mrb[0].mxu0
    %v5004 = vadd.f32 0.0, %v5003
    %v5005 = vpop.f32.mrb[0].mxu0
    %5006 = vmatprep.mubr.f32.mxu0 0.0
    %5007 = vmatmul.mubr.f32.gmra.mrb[0].mxu0 %v4894
    %v5008 = vpop.f32.mrb[0].mxu0
    %v5009 = vadd.f32 0.0, %v5008
    %v5010 = vpop.f32.mrb[0].mxu0
    %5011 = vmatprep.mubr.f32.mxu0 0.0
    %5012 = vmatmul.mubr.f32.gmra.mrb[0].mxu0 %v4895
    %v5013 = vpop.f32.mrb[0].mxu0
    %v5014 = vadd.f32 0.0, %v5013
    %v5015 = vpop.f32.mrb[0].mxu0
    %5016 = vmatprep.mubr.f32.mxu0 0.0
    %5017 = vmatmul.mubr.f32.gmra.mrb[0].mxu0 %v4896
    %v5018 = vpop.f32.mrb[0].mxu0
    %v5019 = vadd.f32 0.0, %v5018
    %v5020 = vpop.f32.mrb[0].mxu0
    %5021 = vmatprep.mubr.f32.mxu0 0.0
    %5022 = vmatmul.mubr.f32.gmra.mrb[0].mxu0 %v4897
    %v5023 = vpop.f32.mrb[0].mxu0
    %v5024 = vadd.f32 0.0, %v5023
    %v5025 = vpop.f32.mrb[0].mxu0
    %5026 = vmatprep.mubr.f32.mxu0 0.0
    %5027 = vmatmul.mubr.f32.gmra.mrb[0].mxu0 %v4898
    %v5028 = vpop.f32.mrb[0].mxu0
    %v5029 = vadd.f32 0.0, %v5028
    %v5030 = vpop.f32.mrb[0].mxu0
    %5031 = vmatprep.mubr.f32.mxu0 0.0
    %5032 = vmatmul.mubr.f32.gmra.mrb[0].mxu0 %v4899
    %v5033 = vpop.f32.mrb[0].mxu0
    %v5034 = vadd.f32 0.0, %v5033
    %v5035 = vpop.f32.mrb[0].mxu0
    %5036 = vmatprep.mubr.f32.mxu0 0.0
    %5037 = vmatmul.mubr.f32.gmra.mrb[0].mxu0 %v4900
    %v5038 = vpop.f32.mrb[0].mxu0
    %v5039 = vadd.f32 0.0, %v5038
    %v5040 = vpop.f32.mrb[0].mxu0
    %5041 = vmatprep.mubr.f32.mxu0 0.0
    %5042 = vmatmul.mubr.f32.gmra.mrb[0].mxu0 %v4901
    %v5043 = vpop.f32.mrb[0].mxu0
    %v5044 = vadd.f32 0.0, %v5043
    %v5045 = vpop.f32.mrb[0].mxu0
    %5046 = vdwg.mxu0
    %v5047 = vmax.f32 %v4969, %v4989
    %v5048 = vmax.f32 %v4974, %v4994
    %v5049 = vmax.f32 %v4979, %v4999
    %v5050 = vmax.f32 %v4984, %v5004
    %v5051 = vmax.f32 %v5009, %v5029
    %v5052 = vmax.f32 %v5014, %v5034
    %v5053 = vmax.f32 %v5019, %v5039
    %v5054 = vmax.f32 %v5024, %v5044
    %v5055 = vmax.f32 %v5047, %v5051
    %v5056 = vmax.f32 %v5048, %v5052
    %v5057 = vmax.f32 %v5049, %v5053
    %v5058 = vmax.f32 %v5050, %v5054
    %v5059 = vmax.f32 %v5055, 0.0
    %v5060 = vmax.f32 %v5056, 0.0
    %v5061 = vmax.f32 %v5057, 0.0
    %v5062 = vmax.f32 %v5058, 0.0
    %vm5063 = vcmask 408576
    %5064 = vst.msk [vmem:[#allocation3] sm:$0xff] %vm5063, %v5059
    %5065 = vst.msk [vmem:[#allocation3 + $0x8] sm:$0xff] %vm5063, %v5060
    %5066 = vst.msk [vmem:[#allocation3 + $0x10] sm:$0xff] %vm5063, %v5061
    %5067 = vst.msk [vmem:[#allocation3 + $0x18] sm:$0xff] %vm5063, %v5062
    %v5068 = vld [vmem:[#allocation3] sm:$0x1]
    %v5069 = vld [vmem:[#allocation3 + $0x10] sm:$0x1]
    %v5070 = vld [vmem:[#allocation3 + $0x1] sm:$0x1]
    %v5071 = vld [vmem:[#allocation3 + $0x11] sm:$0x1]
    %v5072 = vld [vmem:[#allocation3 + $0x2] sm:$0x1]
    %v5073 = vld [vmem:[#allocation3 + $0x12] sm:$0x1]
    %v5074 = vld [vmem:[#allocation3 + $0x3] sm:$0x1]
    %v5075 = vld [vmem:[#allocation3 + $0x13] sm:$0x1]
    %v5076 = vld [vmem:[#allocation3 + $0x4] sm:$0x1]
    %v5077 = vld [vmem:[#allocation3 + $0x14] sm:$0x1]
    %v5078 = vld [vmem:[#allocation3 + $0x5] sm:$0x1]
    %v5079 = vld [vmem:[#allocation3 + $0x15] sm:$0x1]
    %v5080 = vld [vmem:[#allocation3 + $0x6] sm:$0x1]
    %v5081 = vld [vmem:[#allocation3 + $0x16] sm:$0x1]
    %v5082 = vld [vmem:[#allocation3 + $0x7] sm:$0x1]
    %v5083 = vld [vmem:[#allocation3 + $0x17] sm:$0x1]
    %v5084 = vld [vmem:[#allocation3 + $0x8] sm:$0x1]
    %v5085 = vld [vmem:[#allocation3 + $0x18] sm:$0x1]
    %v5086 = vld [vmem:[#allocation3 + $0x9] sm:$0x1]
    %v5087 = vld [vmem:[#allocation3 + $0x19] sm:$0x1]
    %v5088 = vld [vmem:[#allocation3 + $0xa] sm:$0x1]
    %v5089 = vld [vmem:[#allocation3 + $0x1a] sm:$0x1]
    %v5090 = vld [vmem:[#allocation3 + $0xb] sm:$0x1]
    %v5091 = vld [vmem:[#allocation3 + $0x1b] sm:$0x1]
    %v5092 = vld [vmem:[#allocation3 + $0xc] sm:$0x1]
    %v5093 = vld [vmem:[#allocation3 + $0x1c] sm:$0x1]
    %v5094 = vld [vmem:[#allocation3 + $0xd] sm:$0x1]
    %v5095 = vld [vmem:[#allocation3 + $0x1d] sm:$0x1]
    %v5096 = vld [vmem:[#allocation3 + $0xe] sm:$0x1]
    %v5097 = vld [vmem:[#allocation3 + $0x1e] sm:$0x1]
    %v5098 = vld [vmem:[#allocation3 + $0xf] sm:$0x1]
    %v5099 = vld [vmem:[#allocation3 + $0x1f] sm:$0x1]
    %v5102 = vrot.slane %v5069, 7
    %vm5103 = vcmask 1041409
    %v5104 = vsel %vm5103, %v5102, %v5068
    %v5108 = vrot.slane %v5071, 7
    %v5109 = vsel %vm5103, %v5108, %v5070
    %5110 = vrot.lane.b32.xlu0 %v5109, 50
    %v5111 = vpop.permute.xlu0 %5110
    %v5115 = vrot.slane %v5073, 7
    %v5116 = vsel %vm5103, %v5115, %v5072
    %5117 = vrot.lane.b32.xlu0 %v5116, 100
    %v5118 = vpop.permute.xlu0 %5117
    %v5122 = vrot.slane %v5075, 7
    %v5123 = vsel %vm5103, %v5122, %v5074
    %5124 = vrot.lane.b32.xlu0 %v5123, 22
    %v5125 = vpop.permute.xlu0 %5124
    %v5129 = vrot.slane %v5077, 7
    %v5130 = vsel %vm5103, %v5129, %v5076
    %5131 = vrot.lane.b32.xlu0 %v5130, 72
    %v5132 = vpop.permute.xlu0 %5131
    %v5136 = vrot.slane %v5079, 7
    %v5137 = vsel %vm5103, %v5136, %v5078
    %5138 = vrot.lane.b32.xlu0 %v5137, 122
    %v5139 = vpop.permute.xlu0 %5138
    %v5143 = vrot.slane %v5081, 7
    %v5144 = vsel %vm5103, %v5143, %v5080
    %5145 = vrot.lane.b32.xlu0 %v5144, 44
    %v5146 = vpop.permute.xlu0 %5145
    %v5150 = vrot.slane %v5083, 7
    %v5151 = vsel %vm5103, %v5150, %v5082
    %5152 = vrot.lane.b32.xlu0 %v5151, 94
    %v5153 = vpop.permute.xlu0 %5152
    %v5157 = vrot.slane %v5085, 7
    %v5158 = vsel %vm5103, %v5157, %v5084
    %5159 = vrot.lane.b32.xlu0 %v5158, 16
    %v5160 = vpop.permute.xlu0 %5159
    %v5164 = vrot.slane %v5087, 7
    %v5165 = vsel %vm5103, %v5164, %v5086
    %5166 = vrot.lane.b32.xlu0 %v5165, 66
    %v5167 = vpop.permute.xlu0 %5166
    %v5171 = vrot.slane %v5089, 7
    %v5172 = vsel %vm5103, %v5171, %v5088
    %5173 = vrot.lane.b32.xlu0 %v5172, 116
    %v5174 = vpop.permute.xlu0 %5173
    %v5178 = vrot.slane %v5091, 7
    %v5179 = vsel %vm5103, %v5178, %v5090
    %5180 = vrot.lane.b32.xlu0 %v5179, 38
    %v5181 = vpop.permute.xlu0 %5180
    %v5185 = vrot.slane %v5093, 7
    %v5186 = vsel %vm5103, %v5185, %v5092
    %5187 = vrot.lane.b32.xlu0 %v5186, 88
    %v5188 = vpop.permute.xlu0 %5187
    %v5192 = vrot.slane %v5095, 7
    %v5193 = vsel %vm5103, %v5192, %v5094
    %5194 = vrot.lane.b32.xlu0 %v5193, 10
    %v5195 = vpop.permute.xlu0 %5194
    %v5199 = vrot.slane %v5097, 7
    %v5200 = vsel %vm5103, %v5199, %v5096
    %5201 = vrot.lane.b32.xlu0 %v5200, 60
    %v5202 = vpop.permute.xlu0 %5201
    %v5206 = vrot.slane %v5099, 7
    %v5207 = vsel %vm5103, %v5206, %v5098
    %5208 = vrot.lane.b32.xlu0 %v5207, 110
    %v5209 = vpop.permute.xlu0 %5208
    %v5211 = vsel %vm5063, %v5104, %v5111
    %v5212 = vsel %vm3517, %v5211, %v5118
    %vm5213 = vcmask 179200
    %v5214 = vsel %vm5213, %v5118, %v5125
    %v5215 = vsel %vm3602, %v5214, %v5132
    %vm5216 = vcmask 998400
    %v5217 = vsel %vm5216, %v5215, %v5139
    %v5218 = vsel %vm3687, %v5139, %v5146
    %vm5219 = vcmask 769024
    %v5220 = vsel %vm5219, %v5218, %v5153
    %vm5221 = vcmask 130048
    %v5222 = vsel %vm5221, %v5153, %v5160
    %vm5223 = vcmask 539648
    %v5224 = vsel %vm5223, %v5222, %v5167
    %v5225 = vsel %vm4559, %v5224, %v5174
    %vm5226 = vcmask 310272
    %v5227 = vsel %vm5226, %v5174, %v5181
    %vm5228 = vcmask 719872
    %v5229 = vsel %vm5228, %v5227, %v5188
    %vm5230 = vcmask 80896
    %v5231 = vsel %vm5230, %v5188, %v5195
    %v5232 = vsel %vm3483, %v5231, %v5202
    %vm5233 = vcmask 900096
    %v5234 = vsel %vm5233, %v5232, %v5209
    %v5235 = vld [vmem:[%s6] sm:$0xff]
    %v5236 = vld [vmem:[%s6 + $0x8] sm:$0xff]
    %v5237 = vld [vmem:[%s6 + $0x10] sm:$0xff]
    %v5238 = vld [vmem:[%s6 + $0x18] sm:$0xff]
    %v5239 = vld [vmem:[%s6 + $0x20] sm:$0xff]
    %v5240 = vld [vmem:[%s6 + $0x28] sm:$0xff]
    %v5241 = vld [vmem:[%s6 + $0x30] sm:$0xff]
    %v5242 = vld [vmem:[%s6 + $0x38] sm:$0xff]
    %v5243 = vld [vmem:[%s6 + $0x40] sm:$0xff]
    %v5244 = vld [vmem:[%s6 + $0x48] sm:$0xff]
    %v5245 = vld [vmem:[%s6 + $0x50] sm:$0xff]
    %v5246 = vld [vmem:[%s6 + $0x58] sm:$0xff]
    %v5247 = vld [vmem:[%s6 + $0x60] sm:$0xff]
    %v5248 = vld [vmem:[%s6 + $0x68] sm:$0xff]
    %v5249 = vld [vmem:[%s6 + $0x70] sm:$0xff]
    %v5250 = vld [vmem:[%s6 + $0x78] sm:$0xff]
    %v5251 = vld [vmem:[%s6 + $0x80] sm:$0xff]
    %v5252 = vld [vmem:[%s6 + $0x88] sm:$0xff]
    %v5253 = vld [vmem:[%s6 + $0x90] sm:$0xff]
    %v5254 = vld [vmem:[%s6 + $0x98] sm:$0xff]
    %v5255 = vld [vmem:[%s6 + $0xa0] sm:$0xff]
    %v5256 = vld [vmem:[%s6 + $0xa8] sm:$0xff]
    %v5257 = vld [vmem:[%s6 + $0xb0] sm:$0xff]
    %v5258 = vld [vmem:[%s6 + $0xb8] sm:$0xff]
    %v5259 = vld [vmem:[%s6 + $0xc0] sm:$0xff]
    %v5260 = vld [vmem:[%s6 + $0xc8] sm:$0xff]
    %v5261 = vld [vmem:[%s6 + $0xd0] sm:$0xff]
    %v5262 = vld [vmem:[%s6 + $0xd8] sm:$0xff]
    %v5263 = vld [vmem:[%s6 + $0xe0] sm:$0xff]
    %v5264 = vld [vmem:[%s6 + $0xe8] sm:$0xff]
    %v5265 = vld [vmem:[%s6 + $0xf0] sm:$0xff]
    %v5266 = vld [vmem:[%s6 + $0xf8] sm:$0xff]
    %v5267 = vld [vmem:[%s6 + $0x100] sm:$0xff]
    %v5268 = vld [vmem:[%s6 + $0x108] sm:$0xff]
    %v5269 = vld [vmem:[%s6 + $0x110] sm:$0xff]
    %v5270 = vld [vmem:[%s6 + $0x118] sm:$0xff]
    %v5271 = vld [vmem:[%s6 + $0x120] sm:$0xff]
    %v5272 = vld [vmem:[%s6 + $0x128] sm:$0xff]
    %v5273 = vld [vmem:[%s6 + $0x130] sm:$0xff]
    %v5274 = vld [vmem:[%s6 + $0x138] sm:$0xff]
    %v5275 = vld [vmem:[%s6 + $0x140] sm:$0xff]
    %v5276 = vld [vmem:[%s6 + $0x148] sm:$0xff]
    %v5277 = vld [vmem:[%s6 + $0x150] sm:$0xff]
    %v5278 = vld [vmem:[%s6 + $0x158] sm:$0xff]
    %v5279 = vld [vmem:[%s6 + $0x160] sm:$0xff]
    %v5280 = vld [vmem:[%s6 + $0x168] sm:$0xff]
    %v5281 = vld [vmem:[%s6 + $0x170] sm:$0xff]
    %v5282 = vld [vmem:[%s6 + $0x178] sm:$0xff]
    %v5283 = vld [vmem:[%s6 + $0x180] sm:$0xff]
    %v5284 = vld [vmem:[%s6 + $0x188] sm:$0xff]
    %v5285 = vld [vmem:[%s6 + $0x190] sm:$0xff]
    %v5286 = vld [vmem:[%s6 + $0x198] sm:$0xff]
    %v5287 = vld [vmem:[%s6 + $0x1a0] sm:$0xff]
    %v5288 = vld [vmem:[%s6 + $0x1a8] sm:$0xff]
    %v5289 = vld [vmem:[%s6 + $0x1b0] sm:$0xff]
    %v5290 = vld [vmem:[%s6 + $0x1b8] sm:$0xff]
    %v5291 = vld [vmem:[%s6 + $0x1c0] sm:$0xff]
    %v5292 = vld [vmem:[%s6 + $0x1c8] sm:$0xff]
    %v5293 = vld [vmem:[%s6 + $0x1d0] sm:$0xff]
    %v5294 = vld [vmem:[%s6 + $0x1d8] sm:$0xff]
    %v5295 = vld [vmem:[%s6 + $0x1e0] sm:$0xff]
    %v5296 = vld [vmem:[%s6 + $0x1e8] sm:$0xff]
    %v5297 = vld [vmem:[%s6 + $0x1f0] sm:$0xff]
    %v5298 = vld [vmem:[%s6 + $0x1f8] sm:$0xff]
    %v5299 = vld [vmem:[%s6 + $0x200] sm:$0xff]
    %v5300 = vld [vmem:[%s6 + $0x208] sm:$0xff]
    %v5301 = vld [vmem:[%s6 + $0x210] sm:$0xff]
    %v5302 = vld [vmem:[%s6 + $0x218] sm:$0xff]
    %v5303 = vld [vmem:[%s6 + $0x220] sm:$0xff]
    %v5304 = vld [vmem:[%s6 + $0x228] sm:$0xff]
    %v5305 = vld [vmem:[%s6 + $0x230] sm:$0xff]
    %v5306 = vld [vmem:[%s6 + $0x238] sm:$0xff]
    %v5307 = vld [vmem:[%s6 + $0x240] sm:$0xff]
    %v5308 = vld [vmem:[%s6 + $0x248] sm:$0xff]
    %v5309 = vld [vmem:[%s6 + $0x250] sm:$0xff]
    %v5310 = vld [vmem:[%s6 + $0x258] sm:$0xff]
    %v5311 = vld [vmem:[%s6 + $0x260] sm:$0xff]
    %v5312 = vld [vmem:[%s6 + $0x268] sm:$0xff]
    %v5313 = vld [vmem:[%s6 + $0x270] sm:$0xff]
    %v5314 = vld [vmem:[%s6 + $0x278] sm:$0xff]
    %v5315 = vld [vmem:[%s6 + $0x280] sm:$0xff]
    %v5316 = vld [vmem:[%s6 + $0x288] sm:$0xff]
    %v5317 = vld [vmem:[%s6 + $0x290] sm:$0xff]
    %v5318 = vld [vmem:[%s6 + $0x298] sm:$0xff]
    %v5319 = vld [vmem:[%s6 + $0x2a0] sm:$0xff]
    %v5320 = vld [vmem:[%s6 + $0x2a8] sm:$0xff]
    %v5321 = vld [vmem:[%s6 + $0x2b0] sm:$0xff]
    %v5322 = vld [vmem:[%s6 + $0x2b8] sm:$0xff]
    %v5323 = vld [vmem:[%s6 + $0x2c0] sm:$0xff]
    %v5324 = vld [vmem:[%s6 + $0x2c8] sm:$0xff]
    %v5325 = vld [vmem:[%s6 + $0x2d0] sm:$0xff]
    %v5326 = vld [vmem:[%s6 + $0x2d8] sm:$0xff]
    %v5327 = vld [vmem:[%s6 + $0x2e0] sm:$0xff]
    %v5328 = vld [vmem:[%s6 + $0x2e8] sm:$0xff]
    %v5329 = vld [vmem:[%s6 + $0x2f0] sm:$0xff]
    %v5330 = vld [vmem:[%s6 + $0x2f8] sm:$0xff]
    %v5331 = vld [vmem:[%s6 + $0x300] sm:$0xff]
    %v5332 = vld [vmem:[%s6 + $0x308] sm:$0xff]
    %v5333 = vld [vmem:[%s6 + $0x310] sm:$0xff]
    %v5334 = vld [vmem:[%s6 + $0x318] sm:$0xff]
    %v5335 = vld [vmem:[%s6 + $0x320] sm:$0xff]
    %v5336 = vld [vmem:[%s6 + $0x328] sm:$0xff]
    %v5337 = vld [vmem:[%s6 + $0x330] sm:$0xff]
    %v5338 = vld [vmem:[%s6 + $0x338] sm:$0xff]
    %v5339 = vld [vmem:[%s6 + $0x340] sm:$0xff]
    %v5340 = vld [vmem:[%s6 + $0x348] sm:$0xff]
    %v5341 = vld [vmem:[%s6 + $0x350] sm:$0xff]
    %v5342 = vld [vmem:[%s6 + $0x358] sm:$0xff]
    %v5343 = vld [vmem:[%s6 + $0x360] sm:$0xff]
    %v5344 = vld [vmem:[%s6 + $0x368] sm:$0xff]
    %v5345 = vld [vmem:[%s6 + $0x370] sm:$0xff]
    %v5346 = vld [vmem:[%s6 + $0x378] sm:$0xff]
    %v5347 = vld [vmem:[%s6 + $0x380] sm:$0xff]
    %v5348 = vld [vmem:[%s6 + $0x388] sm:$0xff]
    %v5349 = vld [vmem:[%s6 + $0x390] sm:$0xff]
    %v5350 = vld [vmem:[%s6 + $0x398] sm:$0xff]
    %v5351 = vld [vmem:[%s6 + $0x3a0] sm:$0xff]
    %v5352 = vld [vmem:[%s6 + $0x3a8] sm:$0xff]
    %v5353 = vld [vmem:[%s6 + $0x3b0] sm:$0xff]
    %v5354 = vld [vmem:[%s6 + $0x3b8] sm:$0xff]
    %v5355 = vld [vmem:[%s6 + $0x3c0] sm:$0xff]
    %v5356 = vld [vmem:[%s6 + $0x3c8] sm:$0xff]
    %v5357 = vld [vmem:[%s6 + $0x3d0] sm:$0xff]
    %v5358 = vld [vmem:[%s6 + $0x3d8] sm:$0xff]
    %v5359 = vld [vmem:[%s6 + $0x3e0] sm:$0xff]
    %v5360 = vld [vmem:[%s6 + $0x3e8] sm:$0xff]
    %v5361 = vld [vmem:[%s6 + $0x3f0] sm:$0xff]
    %v5362 = vld [vmem:[%s6 + $0x3f8] sm:$0xff]
    %v5363 = vld [vmem:[%s6 + $0x400] sm:$0xff]
    %v5364 = vld [vmem:[%s6 + $0x408] sm:$0xff]
    %v5365 = vld [vmem:[%s6 + $0x410] sm:$0xff]
    %v5366 = vld [vmem:[%s6 + $0x418] sm:$0xff]
    %v5367 = vld [vmem:[%s6 + $0x420] sm:$0xff]
    %v5368 = vld [vmem:[%s6 + $0x428] sm:$0xff]
    %v5369 = vld [vmem:[%s6 + $0x430] sm:$0xff]
    %v5370 = vld [vmem:[%s6 + $0x438] sm:$0xff]
    %v5371 = vld [vmem:[%s6 + $0x440] sm:$0xff]
    %v5372 = vld [vmem:[%s6 + $0x448] sm:$0xff]
    %v5373 = vld [vmem:[%s6 + $0x450] sm:$0xff]
    %v5374 = vld [vmem:[%s6 + $0x458] sm:$0xff]
    %v5375 = vld [vmem:[%s6 + $0x460] sm:$0xff]
    %v5376 = vld [vmem:[%s6 + $0x468] sm:$0xff]
    %v5377 = vld [vmem:[%s6 + $0x470] sm:$0xff]
    %v5378 = vld [vmem:[%s6 + $0x478] sm:$0xff]
    %v5379 = vld [vmem:[%s6 + $0x480] sm:$0xff]
    %v5380 = vld [vmem:[%s6 + $0x488] sm:$0xff]
    %v5381 = vld [vmem:[%s6 + $0x490] sm:$0xff]
    %v5382 = vld [vmem:[%s6 + $0x498] sm:$0xff]
    %v5383 = vld [vmem:[%s6 + $0x4a0] sm:$0xff]
    %v5384 = vld [vmem:[%s6 + $0x4a8] sm:$0xff]
    %v5385 = vld [vmem:[%s6 + $0x4b0] sm:$0xff]
    %v5386 = vld [vmem:[%s6 + $0x4b8] sm:$0xff]
    %v5387 = vld [vmem:[%s6 + $0x4c0] sm:$0xff]
    %v5388 = vld [vmem:[%s6 + $0x4c8] sm:$0xff]
    %v5389 = vld [vmem:[%s6 + $0x4d0] sm:$0xff]
    %v5390 = vld [vmem:[%s6 + $0x4d8] sm:$0xff]
    %v5391 = vld [vmem:[%s6 + $0x4e0] sm:$0xff]
    %v5392 = vld [vmem:[%s6 + $0x4e8] sm:$0xff]
    %v5393 = vld [vmem:[%s6 + $0x4f0] sm:$0xff]
    %v5394 = vld [vmem:[%s6 + $0x4f8] sm:$0xff]
    %v5395 = vld [vmem:[%s6 + $0x500] sm:$0xff]
    %v5396 = vld [vmem:[%s6 + $0x508] sm:$0xff]
    %v5397 = vld [vmem:[%s6 + $0x510] sm:$0xff]
    %v5398 = vld [vmem:[%s6 + $0x518] sm:$0xff]
    %v5399 = vld [vmem:[%s6 + $0x520] sm:$0xff]
    %v5400 = vld [vmem:[%s6 + $0x528] sm:$0xff]
    %v5401 = vld [vmem:[%s6 + $0x530] sm:$0xff]
    %v5402 = vld [vmem:[%s6 + $0x538] sm:$0xff]
    %v5403 = vld [vmem:[%s6 + $0x540] sm:$0xff]
    %v5404 = vld [vmem:[%s6 + $0x548] sm:$0xff]
    %v5405 = vld [vmem:[%s6 + $0x550] sm:$0xff]
    %v5406 = vld [vmem:[%s6 + $0x558] sm:$0xff]
    %v5407 = vld [vmem:[%s6 + $0x560] sm:$0xff]
    %v5408 = vld [vmem:[%s6 + $0x568] sm:$0xff]
    %v5409 = vld [vmem:[%s6 + $0x570] sm:$0xff]
    %v5410 = vld [vmem:[%s6 + $0x578] sm:$0xff]
    %v5411 = vld [vmem:[%s6 + $0x580] sm:$0xff]
    %v5412 = vld [vmem:[%s6 + $0x588] sm:$0xff]
    %v5413 = vld [vmem:[%s6 + $0x590] sm:$0xff]
    %v5414 = vld [vmem:[%s6 + $0x598] sm:$0xff]
    %v5415 = vld [vmem:[%s6 + $0x5a0] sm:$0xff]
    %v5416 = vld [vmem:[%s6 + $0x5a8] sm:$0xff]
    %v5417 = vld [vmem:[%s6 + $0x5b0] sm:$0xff]
    %v5418 = vld [vmem:[%s6 + $0x5b8] sm:$0xff]
    %v5419 = vld [vmem:[%s6 + $0x5c0] sm:$0xff]
    %v5420 = vld [vmem:[%s6 + $0x5c8] sm:$0xff]
    %v5421 = vld [vmem:[%s6 + $0x5d0] sm:$0xff]
    %v5422 = vld [vmem:[%s6 + $0x5d8] sm:$0xff]
    %v5423 = vld [vmem:[%s6 + $0x5e0] sm:$0xff]
    %v5424 = vld [vmem:[%s6 + $0x5e8] sm:$0xff]
    %v5425 = vld [vmem:[%s6 + $0x5f0] sm:$0xff]
    %v5426 = vld [vmem:[%s6 + $0x5f8] sm:$0xff]
    %v5427 = vld [vmem:[%s6 + $0x600] sm:$0xff]
    %v5428 = vld [vmem:[%s6 + $0x608] sm:$0xff]
    %v5429 = vld [vmem:[%s6 + $0x610] sm:$0xff]
    %v5430 = vld [vmem:[%s6 + $0x618] sm:$0xff]
    %v5431 = vld [vmem:[%s6 + $0x620] sm:$0xff]
    %v5432 = vld [vmem:[%s6 + $0x628] sm:$0xff]
    %v5433 = vld [vmem:[%s6 + $0x630] sm:$0xff]
    %v5434 = vld [vmem:[%s6 + $0x638] sm:$0xff]
    %v5435 = vld [vmem:[%s7] sm:$0x3]
    %v5437 = vlaneseq
    %v5438 = vshrl.u32 %v5437, 7
    %v5439 = vsub.s32 0, %v5438
    %v5440 = vrot.slane %v5435, %v5439
    %v5441 = vlaneseq
    %v5442 = vshrl.u32 %v5441, 7
    %v5443 = vsub.s32 1, %v5442
    %v5444 = vrot.slane %v5435, %v5443
    %v5447 = vsel %vm3568, %v5209, 0
    %5449 = vmatprep.subr.mxu0 %v5236
    %5450 = vmatpush1.msra.mxu0 %v5235
    %5451 = vmatprep.subr.mxu0 %v5238
    %5452 = vmatpush1.msra.mxu0 %v5237
    %5453 = vmatprep.subr.mxu0 %v5240
    %5454 = vmatpush1.msra.mxu0 %v5239
    %5455 = vmatprep.subr.mxu0 %v5242
    %5456 = vmatpush1.msra.mxu0 %v5241
    %5457 = vmatprep.subr.mxu0 %v5244
    %5458 = vmatpush1.msra.mxu0 %v5243
    %5459 = vmatprep.subr.mxu0 %v5246
    %5460 = vmatpush1.msra.mxu0 %v5245
    %5461 = vmatprep.subr.mxu0 %v5248
    %5462 = vmatpush1.msra.mxu0 %v5247
    %5463 = vmatprep.subr.mxu0 %v5250
    %5464 = vmatpush1.msra.mxu0 %v5249
    %5465 = vmatprep.subr.mxu0 %v5252
    %5466 = vmatpush1.msra.mxu0 %v5251
    %5467 = vmatprep.subr.mxu0 %v5254
    %5468 = vmatpush1.msra.mxu0 %v5253
    %5469 = vmatprep.subr.mxu0 %v5256
    %5470 = vmatpush1.msra.mxu0 %v5255
    %5471 = vmatprep.subr.mxu0 %v5258
    %5472 = vmatpush1.msra.mxu0 %v5257
    %5473 = vmatprep.subr.mxu0 %v5260
    %5474 = vmatpush1.msra.mxu0 %v5259
    %5475 = vmatprep.subr.mxu0 %v5262
    %5476 = vmatpush1.msra.mxu0 %v5261
    %5477 = vmatprep.subr.mxu0 %v5264
    %5478 = vmatpush1.msra.mxu0 %v5263
    %5479 = vmatprep.subr.mxu0 %v5266
    %5480 = vmatpush1.msra.mxu0 %v5265
    %5481 = vmatprep.subr.mxu0 %v5268
    %5482 = vmatpush1.msra.mxu0 %v5267
    %5483 = vmatprep.subr.mxu0 %v5270
    %5484 = vmatpush1.msra.mxu0 %v5269
    %5485 = vmatprep.subr.mxu0 %v5272
    %5486 = vmatpush1.msra.mxu0 %v5271
    %5487 = vmatprep.subr.mxu0 %v5274
    %5488 = vmatpush1.msra.mxu0 %v5273
    %5489 = vmatprep.subr.mxu0 %v5276
    %5490 = vmatpush1.msra.mxu0 %v5275
    %5491 = vmatprep.subr.mxu0 %v5278
    %5492 = vmatpush1.msra.mxu0 %v5277
    %5493 = vmatprep.subr.mxu0 %v5280
    %5494 = vmatpush1.msra.mxu0 %v5279
    %5495 = vmatprep.subr.mxu0 %v5282
    %5496 = vmatpush1.msra.mxu0 %v5281
    %5497 = vmatprep.subr.mxu0 %v5284
    %5498 = vmatpush1.msra.mxu0 %v5283
    %5499 = vmatprep.subr.mxu0 %v5286
    %5500 = vmatpush1.msra.mxu0 %v5285
    %5501 = vmatprep.subr.mxu0 %v5288
    %5502 = vmatpush1.msra.mxu0 %v5287
    %5503 = vmatprep.subr.mxu0 %v5290
    %5504 = vmatpush1.msra.mxu0 %v5289
    %5505 = vmatprep.subr.mxu0 %v5292
    %5506 = vmatpush1.msra.mxu0 %v5291
    %5507 = vmatprep.subr.mxu0 %v5294
    %5508 = vmatpush1.msra.mxu0 %v5293
    %5509 = vmatprep.subr.mxu0 %v5296
    %5510 = vmatpush1.msra.mxu0 %v5295
    %5511 = vmatprep.subr.mxu0 %v5298
    %5512 = vmatpush1.msra.mxu0 %v5297
    %5513 = vmatprep.mubr.f32.mxu0 %v5217
    %5514 = vmatmul.mubr.f32.gmra.mrb[0].mxu0 %v5212
    %v5515 = vpop.f32.mrb[0].mxu0
    %v5516 = vadd.f32 %v5440, %v5515
    %v5517 = vpop.f32.mrb[0].mxu0
    %v5518 = vadd.f32 %v5444, %v5517
    %5519 = vdwg.mxu0
    %5520 = vmatprep.subr.mxu0 %v5300
    %5521 = vmatpush1.msra.mxu0 %v5299
    %5522 = vmatprep.subr.mxu0 %v5302
    %5523 = vmatpush1.msra.mxu0 %v5301
    %5524 = vmatprep.subr.mxu0 %v5304
    %5525 = vmatpush1.msra.mxu0 %v5303
    %5526 = vmatprep.subr.mxu0 %v5306
    %5527 = vmatpush1.msra.mxu0 %v5305
    %5528 = vmatprep.subr.mxu0 %v5308
    %5529 = vmatpush1.msra.mxu0 %v5307
    %5530 = vmatprep.subr.mxu0 %v5310
    %5531 = vmatpush1.msra.mxu0 %v5309
    %5532 = vmatprep.subr.mxu0 %v5312
    %5533 = vmatpush1.msra.mxu0 %v5311
    %5534 = vmatprep.subr.mxu0 %v5314
    %5535 = vmatpush1.msra.mxu0 %v5313
    %5536 = vmatprep.subr.mxu0 %v5316
    %5537 = vmatpush1.msra.mxu0 %v5315
    %5538 = vmatprep.subr.mxu0 %v5318
    %5539 = vmatpush1.msra.mxu0 %v5317
    %5540 = vmatprep.subr.mxu0 %v5320
    %5541 = vmatpush1.msra.mxu0 %v5319
    %5542 = vmatprep.subr.mxu0 %v5322
    %5543 = vmatpush1.msra.mxu0 %v5321
    %5544 = vmatprep.subr.mxu0 %v5324
    %5545 = vmatpush1.msra.mxu0 %v5323
    %5546 = vmatprep.subr.mxu0 %v5326
    %5547 = vmatpush1.msra.mxu0 %v5325
    %5548 = vmatprep.subr.mxu0 %v5328
    %5549 = vmatpush1.msra.mxu0 %v5327
    %5550 = vmatprep.subr.mxu0 %v5330
    %5551 = vmatpush1.msra.mxu0 %v5329
    %5552 = vmatprep.subr.mxu0 %v5332
    %5553 = vmatpush1.msra.mxu0 %v5331
    %5554 = vmatprep.subr.mxu0 %v5334
    %5555 = vmatpush1.msra.mxu0 %v5333
    %5556 = vmatprep.subr.mxu0 %v5336
    %5557 = vmatpush1.msra.mxu0 %v5335
    %5558 = vmatprep.subr.mxu0 %v5338
    %5559 = vmatpush1.msra.mxu0 %v5337
    %5560 = vmatprep.subr.mxu0 %v5340
    %5561 = vmatpush1.msra.mxu0 %v5339
    %5562 = vmatprep.subr.mxu0 %v5342
    %5563 = vmatpush1.msra.mxu0 %v5341
    %5564 = vmatprep.subr.mxu0 %v5344
    %5565 = vmatpush1.msra.mxu0 %v5343
    %5566 = vmatprep.subr.mxu0 %v5346
    %5567 = vmatpush1.msra.mxu0 %v5345
    %5568 = vmatprep.subr.mxu0 %v5348
    %5569 = vmatpush1.msra.mxu0 %v5347
    %5570 = vmatprep.subr.mxu0 %v5350
    %5571 = vmatpush1.msra.mxu0 %v5349
    %5572 = vmatprep.subr.mxu0 %v5352
    %5573 = vmatpush1.msra.mxu0 %v5351
    %5574 = vmatprep.subr.mxu0 %v5354
    %5575 = vmatpush1.msra.mxu0 %v5353
    %5576 = vmatprep.subr.mxu0 %v5356
    %5577 = vmatpush1.msra.mxu0 %v5355
    %5578 = vmatprep.subr.mxu0 %v5358
    %5579 = vmatpush1.msra.mxu0 %v5357
    %5580 = vmatprep.subr.mxu0 %v5360
    %5581 = vmatpush1.msra.mxu0 %v5359
    %5582 = vmatprep.subr.mxu0 %v5362
    %5583 = vmatpush1.msra.mxu0 %v5361
    %5584 = vmatprep.mubr.f32.mxu0 %v5225
    %5585 = vmatmul.mubr.f32.gmra.mrb[0].mxu0 %v5220
    %v5586 = vpop.f32.mrb[0].mxu0
    %v5587 = vadd.f32 %v5516, %v5586
    %v5588 = vpop.f32.mrb[0].mxu0
    %v5589 = vadd.f32 %v5518, %v5588
    %5590 = vdwg.mxu0
    %5591 = vmatprep.subr.mxu0 %v5364
    %5592 = vmatpush1.msra.mxu0 %v5363
    %5593 = vmatprep.subr.mxu0 %v5366
    %5594 = vmatpush1.msra.mxu0 %v5365
    %5595 = vmatprep.subr.mxu0 %v5368
    %5596 = vmatpush1.msra.mxu0 %v5367
    %5597 = vmatprep.subr.mxu0 %v5370
    %5598 = vmatpush1.msra.mxu0 %v5369
    %5599 = vmatprep.subr.mxu0 %v5372
    %5600 = vmatpush1.msra.mxu0 %v5371
    %5601 = vmatprep.subr.mxu0 %v5374
    %5602 = vmatpush1.msra.mxu0 %v5373
    %5603 = vmatprep.subr.mxu0 %v5376
    %5604 = vmatpush1.msra.mxu0 %v5375
    %5605 = vmatprep.subr.mxu0 %v5378
    %5606 = vmatpush1.msra.mxu0 %v5377
    %5607 = vmatprep.subr.mxu0 %v5380
    %5608 = vmatpush1.msra.mxu0 %v5379
    %5609 = vmatprep.subr.mxu0 %v5382
    %5610 = vmatpush1.msra.mxu0 %v5381
    %5611 = vmatprep.subr.mxu0 %v5384
    %5612 = vmatpush1.msra.mxu0 %v5383
    %5613 = vmatprep.subr.mxu0 %v5386
    %5614 = vmatpush1.msra.mxu0 %v5385
    %5615 = vmatprep.subr.mxu0 %v5388
    %5616 = vmatpush1.msra.mxu0 %v5387
    %5617 = vmatprep.subr.mxu0 %v5390
    %5618 = vmatpush1.msra.mxu0 %v5389
    %5619 = vmatprep.subr.mxu0 %v5392
    %5620 = vmatpush1.msra.mxu0 %v5391
    %5621 = vmatprep.subr.mxu0 %v5394
    %5622 = vmatpush1.msra.mxu0 %v5393
    %5623 = vmatprep.subr.mxu0 %v5396
    %5624 = vmatpush1.msra.mxu0 %v5395
    %5625 = vmatprep.subr.mxu0 %v5398
    %5626 = vmatpush1.msra.mxu0 %v5397
    %5627 = vmatprep.subr.mxu0 %v5400
    %5628 = vmatpush1.msra.mxu0 %v5399
    %5629 = vmatprep.subr.mxu0 %v5402
    %5630 = vmatpush1.msra.mxu0 %v5401
    %5631 = vmatprep.subr.mxu0 %v5404
    %5632 = vmatpush1.msra.mxu0 %v5403
    %5633 = vmatprep.subr.mxu0 %v5406
    %5634 = vmatpush1.msra.mxu0 %v5405
    %5635 = vmatprep.subr.mxu0 %v5408
    %5636 = vmatpush1.msra.mxu0 %v5407
    %5637 = vmatprep.subr.mxu0 %v5410
    %5638 = vmatpush1.msra.mxu0 %v5409
    %5639 = vmatprep.subr.mxu0 %v5412
    %5640 = vmatpush1.msra.mxu0 %v5411
    %5641 = vmatprep.subr.mxu0 %v5414
    %5642 = vmatpush1.msra.mxu0 %v5413
    %5643 = vmatprep.subr.mxu0 %v5416
    %5644 = vmatpush1.msra.mxu0 %v5415
    %5645 = vmatprep.subr.mxu0 %v5418
    %5646 = vmatpush1.msra.mxu0 %v5417
    %5647 = vmatprep.subr.mxu0 %v5420
    %5648 = vmatpush1.msra.mxu0 %v5419
    %5649 = vmatprep.subr.mxu0 %v5422
    %5650 = vmatpush1.msra.mxu0 %v5421
    %5651 = vmatprep.subr.mxu0 %v5424
    %5652 = vmatpush1.msra.mxu0 %v5423
    %5653 = vmatprep.subr.mxu0 %v5426
    %5654 = vmatpush1.msra.mxu0 %v5425
    %5655 = vmatprep.mubr.f32.mxu0 %v5234
    %5656 = vmatmul.mubr.f32.gmra.mrb[0].mxu0 %v5229
    %v5657 = vpop.f32.mrb[0].mxu0
    %v5658 = vadd.f32 %v5587, %v5657
    %v5659 = vpop.f32.mrb[0].mxu0
    %v5660 = vadd.f32 %v5589, %v5659
    %5661 = vdwg.mxu0
    %5662 = vmatprep.subr.mxu0 %v5428
    %5663 = vmatpush1.msra.mxu0 %v5427
    %5664 = vmatprep.subr.mxu0 %v5430
    %5665 = vmatpush1.msra.mxu0 %v5429
    %5666 = vmatprep.subr.mxu0 %v5432
    %5667 = vmatpush1.msra.mxu0 %v5431
    %5668 = vmatprep.subr.mxu0 %v5434
    %5669 = vmatpush1.msra.mxu0 %v5433
    %5670 = vmatprep.subr.mxu0 0.0
    %5671 = vmatpush1.msra.mxu0 0.0
    %5672 = vmatprep.subr.mxu0 0.0
    %5673 = vmatpush1.msra.mxu0 0.0
    %5674 = vmatprep.subr.mxu0 0.0
    %5675 = vmatpush1.msra.mxu0 0.0
    %5676 = vmatprep.subr.mxu0 0.0
    %5677 = vmatpush1.msra.mxu0 0.0
    %5678 = vmatprep.subr.mxu0 0.0
    %5679 = vmatpush1.msra.mxu0 0.0
    %5680 = vmatprep.subr.mxu0 0.0
    %5681 = vmatpush1.msra.mxu0 0.0
    %5682 = vmatprep.subr.mxu0 0.0
    %5683 = vmatpush1.msra.mxu0 0.0
    %5684 = vmatprep.subr.mxu0 0.0
    %5685 = vmatpush1.msra.mxu0 0.0
    %5686 = vmatprep.subr.mxu0 0.0
    %5687 = vmatpush1.msra.mxu0 0.0
    %5688 = vmatprep.subr.mxu0 0.0
    %5689 = vmatpush1.msra.mxu0 0.0
    %5690 = vmatprep.subr.mxu0 0.0
    %5691 = vmatpush1.msra.mxu0 0.0
    %5692 = vmatprep.subr.mxu0 0.0
    %5693 = vmatpush1.msra.mxu0 0.0
    %5694 = vmatprep.subr.mxu0 0.0
    %5695 = vmatpush1.msra.mxu0 0.0
    %5696 = vmatprep.subr.mxu0 0.0
    %5697 = vmatpush1.msra.mxu0 0.0
    %5698 = vmatprep.subr.mxu0 0.0
    %5699 = vmatpush1.msra.mxu0 0.0
    %5700 = vmatprep.subr.mxu0 0.0
    %5701 = vmatpush1.msra.mxu0 0.0
    %5702 = vmatprep.subr.mxu0 0.0
    %5703 = vmatpush1.msra.mxu0 0.0
    %5704 = vmatprep.subr.mxu0 0.0
    %5705 = vmatpush1.msra.mxu0 0.0
    %5706 = vmatprep.subr.mxu0 0.0
    %5707 = vmatpush1.msra.mxu0 0.0
    %5708 = vmatprep.subr.mxu0 0.0
    %5709 = vmatpush1.msra.mxu0 0.0
    %5710 = vmatprep.subr.mxu0 0.0
    %5711 = vmatpush1.msra.mxu0 0.0
    %5712 = vmatprep.subr.mxu0 0.0
    %5713 = vmatpush1.msra.mxu0 0.0
    %5714 = vmatprep.subr.mxu0 0.0
    %5715 = vmatpush1.msra.mxu0 0.0
    %5716 = vmatprep.subr.mxu0 0.0
    %5717 = vmatpush1.msra.mxu0 0.0
    %5718 = vmatprep.subr.mxu0 0.0
    %5719 = vmatpush1.msra.mxu0 0.0
    %5720 = vmatprep.subr.mxu0 0.0
    %5721 = vmatpush1.msra.mxu0 0.0
    %5722 = vmatprep.subr.mxu0 0.0
    %5723 = vmatpush1.msra.mxu0 0.0
    %5724 = vmatprep.subr.mxu0 0.0
    %5725 = vmatpush1.msra.mxu0 0.0
    %5726 = vmatprep.mubr.f32.mxu0 0.0
    %5727 = vmatmul.mubr.f32.gmra.mrb[0].mxu0 %v5447
    %v5728 = vpop.f32.mrb[0].mxu0
    %v5729 = vadd.f32 %v5658, %v5728
    %v5730 = vpop.f32.mrb[0].mxu0
    %v5731 = vadd.f32 %v5660, %v5730
    %5732 = vdwg.mxu0
    %v5733 = vmax.f32 %v5729, 0.0
    %v5734 = vmax.f32 %v5731, 0.0
    %v5735 = vld [vmem:[%s8] sm:$0xff]
    %v5736 = vld [vmem:[%s8 + $0x8] sm:$0xff]
    %v5737 = vld [vmem:[%s8 + $0x10] sm:$0xff]
    %v5738 = vld [vmem:[%s8 + $0x18] sm:$0xff]
    %v5739 = vld [vmem:[%s8 + $0x20] sm:$0xff]
    %v5740 = vld [vmem:[%s8 + $0x28] sm:$0xff]
    %v5741 = vld [vmem:[%s8 + $0x30] sm:$0xff]
    %v5742 = vld [vmem:[%s8 + $0x38] sm:$0xff]
    %v5743 = vld [vmem:[%s8 + $0x40] sm:$0xff]
    %v5744 = vld [vmem:[%s8 + $0x48] sm:$0xff]
    %v5745 = vld [vmem:[%s8 + $0x50] sm:$0xff]
    %v5746 = vld [vmem:[%s8 + $0x58] sm:$0xff]
    %v5747 = vld [vmem:[%s8 + $0x60] sm:$0xff]
    %v5748 = vld [vmem:[%s8 + $0x68] sm:$0xff]
    %v5749 = vld [vmem:[%s8 + $0x70] sm:$0xff]
    %v5750 = vld [vmem:[%s8 + $0x78] sm:$0xff]
    %v5751 = vld [vmem:[%s8 + $0x80] sm:$0xff]
    %v5752 = vld [vmem:[%s8 + $0x88] sm:$0xff]
    %v5753 = vld [vmem:[%s8 + $0x90] sm:$0xff]
    %v5754 = vld [vmem:[%s8 + $0x98] sm:$0xff]
    %v5755 = vld [vmem:[%s8 + $0xa0] sm:$0xff]
    %v5756 = vld [vmem:[%s8 + $0xa8] sm:$0xff]
    %v5757 = vld [vmem:[%s8 + $0xb0] sm:$0xff]
    %v5758 = vld [vmem:[%s8 + $0xb8] sm:$0xff]
    %v5759 = vld [vmem:[%s8 + $0xc0] sm:$0xff]
    %v5760 = vld [vmem:[%s9] sm:$0x1]
    %v5762 = vlaneseq
    %v5763 = vshrl.u32 %v5762, 7
    %v5764 = vsub.s32 0, %v5763
    %v5765 = vrot.slane %v5760, %v5764
    %v5768 = vsel %vm3602, %v5734, 0
    %5770 = vmatprep.subr.mxu0 0.0
    %5771 = vmatpush1.msra.mxu0 %v5735
    %5772 = vmatprep.subr.mxu0 0.0
    %5773 = vmatpush1.msra.mxu0 %v5736
    %5774 = vmatprep.subr.mxu0 0.0
    %5775 = vmatpush1.msra.mxu0 %v5737
    %5776 = vmatprep.subr.mxu0 0.0
    %5777 = vmatpush1.msra.mxu0 %v5738
    %5778 = vmatprep.subr.mxu0 0.0
    %5779 = vmatpush1.msra.mxu0 %v5739
    %5780 = vmatprep.subr.mxu0 0.0
    %5781 = vmatpush1.msra.mxu0 %v5740
    %5782 = vmatprep.subr.mxu0 0.0
    %5783 = vmatpush1.msra.mxu0 %v5741
    %5784 = vmatprep.subr.mxu0 0.0
    %5785 = vmatpush1.msra.mxu0 %v5742
    %5786 = vmatprep.subr.mxu0 0.0
    %5787 = vmatpush1.msra.mxu0 %v5743
    %5788 = vmatprep.subr.mxu0 0.0
    %5789 = vmatpush1.msra.mxu0 %v5744
    %5790 = vmatprep.subr.mxu0 0.0
    %5791 = vmatpush1.msra.mxu0 %v5745
    %5792 = vmatprep.subr.mxu0 0.0
    %5793 = vmatpush1.msra.mxu0 %v5746
    %5794 = vmatprep.subr.mxu0 0.0
    %5795 = vmatpush1.msra.mxu0 %v5747
    %5796 = vmatprep.subr.mxu0 0.0
    %5797 = vmatpush1.msra.mxu0 %v5748
    %5798 = vmatprep.subr.mxu0 0.0
    %5799 = vmatpush1.msra.mxu0 %v5749
    %5800 = vmatprep.subr.mxu0 0.0
    %5801 = vmatpush1.msra.mxu0 %v5750
    %5802 = vmatprep.subr.mxu0 0.0
    %5803 = vmatpush1.msra.mxu0 %v5751
    %5804 = vmatprep.subr.mxu0 0.0
    %5805 = vmatpush1.msra.mxu0 %v5752
    %5806 = vmatprep.subr.mxu0 0.0
    %5807 = vmatpush1.msra.mxu0 %v5753
    %5808 = vmatprep.subr.mxu0 0.0
    %5809 = vmatpush1.msra.mxu0 %v5754
    %5810 = vmatprep.subr.mxu0 0.0
    %5811 = vmatpush1.msra.mxu0 %v5755
    %5812 = vmatprep.subr.mxu0 0.0
    %5813 = vmatpush1.msra.mxu0 %v5756
    %5814 = vmatprep.subr.mxu0 0.0
    %5815 = vmatpush1.msra.mxu0 %v5757
    %5816 = vmatprep.subr.mxu0 0.0
    %5817 = vmatpush1.msra.mxu0 %v5758
    %5818 = vmatprep.subr.mxu0 0.0
    %5819 = vmatpush1.msra.mxu0 %v5759
    %5820 = vmatprep.subr.mxu0 0.0
    %5821 = vmatpush1.msra.mxu0 0.0
    %5822 = vmatprep.subr.mxu0 0.0
    %5823 = vmatpush1.msra.mxu0 0.0
    %5824 = vmatprep.subr.mxu0 0.0
    %5825 = vmatpush1.msra.mxu0 0.0
    %5826 = vmatprep.subr.mxu0 0.0
    %5827 = vmatpush1.msra.mxu0 0.0
    %5828 = vmatprep.subr.mxu0 0.0
    %5829 = vmatpush1.msra.mxu0 0.0
    %5830 = vmatprep.subr.mxu0 0.0
    %5831 = vmatpush1.msra.mxu0 0.0
    %5832 = vmatprep.subr.mxu0 0.0
    %5833 = vmatpush1.msra.mxu0 0.0
    %5834 = vmatprep.mubr.f32.mxu0 %v5768
    %5835 = vmatmul.mubr.f32.gmra.mrb[0].mxu0 %v5733
    %v5836 = vpop.f32.mrb[0].mxu0
    %v5837 = vadd.f32 %v5765, %v5836
    %v5838 = vpop.f32.mrb[0].mxu0
    %5839 = vdwg.mxu0
    %5840 = vst [vmem:[#allocation4] sm:$0x3] %v5837
    // Predicated region
    $region42: #{cnn_forward.1} parent=1 // pred_check
      _
    $region43: #{cnn_forward.1} parent=1 // pred_check_branch
      %5842 = sbr.rel (0) target = $region45
    $region44: #{cnn_forward.1} parent=1 // pred_region
      %s5844 = ssub.s32 32, 32
      %5845 = vsyncadd [#allocation5], %s5844
      %s5847 = sshll.u32 [#allocation4], 4
      %s5848 = int_to_ptr.vmem [resolvable:$true] %s5847
      %5850 = dma.vmem_to_hbm [thread:$0]  %s5848, 32, %s10, [#allocation5]
    $region45: #{cnn_forward.1} parent=1 // pred_fallthru
      _
    // Predicated region
    $region46: #{cnn_forward.1} parent=1 // pred_check
      _
    $region47: #{cnn_forward.1} parent=1 // pred_check_branch
      %5852 = sbr.rel (0) target = $region49
    $region48: #{cnn_forward.1} parent=1 // pred_region
      %5853 = dma.done [#allocation5], 32
    $region49: #{cnn_forward.1} parent=1 // pred_fallthru
      _
    %5854 = vsyncpa [#allocation5], 1

</llo_original>
